<compile_context>
chip_gen: v5e
topology: v5e:2x2
jax: 0.10.0
libtpu: 0.0.40
codegen_flags: <defaults>
</compile_context>

<pallas_src>
import functools

import jax
import jax.numpy as jnp
from jax.experimental import pallas as pl
from jax.experimental.pallas import tpu as pltpu

HIDDEN = 768          # fixed by the module definition
_TM_DEFAULT = 512     # row tile (multiple of 128 for v5e, 256 for v6e/v7x)
_TM_LARGE = 1024      # used when M is large enough to keep the grid >= 8 steps


def _contrastive_head_kernel(x_ref, w1_ref, b1_ref, w2_ref, b2_ref, o_ref):
    # x_ref:  (tm, 768)   input row tile (original dtype)
    # w1_ref: (768, 768)  dense weight, (in, out) layout, bf16
    # b1_ref: (1, 768)    dense bias, f32
    # w2_ref: (768, 768)  out_proj weight, (in, out) layout, bf16
    # b2_ref: (1, 768)    out_proj bias, f32
    # o_ref:  (tm, 768)   output row tile
    w1 = w1_ref[...]
    b1 = b1_ref[...]
    w2 = w2_ref[...]
    b2 = b2_ref[...]

    tm = x_ref.shape[0]
    # Statically unroll the row tile into two halves so matmul1 of half h+1
    # overlaps the tanh / bf16-cast / bias epilogue of half h (keeps the MXU
    # extended slot busy on MXU-bound v5e; hidden under the HBM bound elsewhere).
    n_splits = 2 if (tm >= 256 and tm % 2 == 0) else 1
    half = tm // n_splits
    for s in range(n_splits):
        rows = pl.ds(s * half, half)
        x = x_ref[rows, :].astype(jnp.bfloat16)       # bf16 in, f32 accumulate
        h = jnp.dot(x, w1, preferred_element_type=jnp.float32) + b1
        h = jnp.tanh(h)                               # EUP transcendental
        y = jnp.dot(h.astype(jnp.bfloat16), w2,
                    preferred_element_type=jnp.float32) + b2
        o_ref[rows, :] = y.astype(o_ref.dtype)


def prepare_params(w_dense, b_dense, w_out, b_out, *, torch_layout=False):
    """One-time (load-time) parameter prep; hoists casts off the hot path.

    torch_layout=True: weights are PyTorch nn.Linear (out, in) and are
    transposed to the (in, out) layout the kernel consumes.
    """
    if torch_layout:
        w_dense = jnp.asarray(w_dense).T
        w_out = jnp.asarray(w_out).T
    w1 = jnp.asarray(w_dense).astype(jnp.bfloat16)
    w2 = jnp.asarray(w_out).astype(jnp.bfloat16)
    b1 = jnp.asarray(b_dense).astype(jnp.float32).reshape(1, HIDDEN)
    b2 = jnp.asarray(b_out).astype(jnp.float32).reshape(1, HIDDEN)
    return w1, b1, w2, b2


def _pick_tm(M):
    if M <= _TM_DEFAULT:
        return M                     # single full tile for small inputs
    if M >= 8 * _TM_LARGE:
        return _TM_LARGE             # grid >= 8: plenty of pipeline/megacore steps
    return _TM_DEFAULT               # grid >= 2


@functools.partial(jax.jit, static_argnames=("tm",))
def _contrastive_head_2d(x2d, w1, b1, w2, b2, *, tm):
    M, H = x2d.shape
    assert H == HIDDEN

    # Grid-invariant operands: a second pipeline buffer is pure VMEM waste.
    resident = dict(pipeline_mode=pl.Buffered(1))

    out_itemsize = jnp.dtype(x2d.dtype).itemsize
    cost = pl.CostEstimate(
        flops=2 * 2 * M * H * H,                         # two (M,768)x(768,768) matmuls
        transcendentals=M * H,                           # tanh
        bytes_accessed=(x2d.size * x2d.dtype.itemsize    # x
                        + M * H * out_itemsize           # out
                        + 2 * H * H * 2                  # bf16 weights
                        + 2 * H * 4),                    # f32 biases
    )

    return pl.pallas_call(
        _contrastive_head_kernel,
        out_shape=jax.ShapeDtypeStruct((M, H), x2d.dtype),
        grid_spec=pltpu.PrefetchScalarGridSpec(
            num_scalar_prefetch=0,
            grid=(pl.cdiv(M, tm),),
            in_specs=[
                pl.BlockSpec((tm, H), lambda i: (i, 0)),             # x tile
                pl.BlockSpec((H, H), lambda i: (0, 0), **resident),  # dense W (bf16)
                pl.BlockSpec((1, H), lambda i: (0, 0), **resident),  # dense b (f32)
                pl.BlockSpec((H, H), lambda i: (0, 0), **resident),  # out_proj W (bf16)
                pl.BlockSpec((1, H), lambda i: (0, 0), **resident),  # out_proj b (f32)
            ],
            out_specs=pl.BlockSpec((tm, H), lambda i: (i, 0)),
        ),
        compiler_params=pltpu.CompilerParams(
            dimension_semantics=("parallel",),
            # ~14 MiB actual at tm=1024 with f32 I/O; 24 MiB leaves headroom
            # above v5e's 16 MiB default scoped budget, well under v7x's 64 MiB.
            vmem_limit_bytes=24 * 1024 * 1024,
        ),
        cost_estimate=cost,
    )(x2d, w1, b1, w2, b2)


def contrastive_head(feature, params, *, tm=None):
    """feature: (B, S, 768); params from prepare_params()."""
    B, S, H = feature.shape
    assert H == HIDDEN
    M = B * S
    if tm is None:
        tm = _pick_tm(M)
    w1, b1, w2, b2 = params
    out2d = _contrastive_head_2d(feature.reshape(M, H), w1, b1, w2, b2, tm=tm)
    return out2d.reshape(B, S, H)


def _reference(feature, w_dense, b_dense, w_out, b_out):
    # Pure-f32 reference of the module's forward (inference: dropout = identity).
    x = feature.astype(jnp.float32)
    x = jnp.tanh(x @ w_dense.astype(jnp.float32) + b_dense.astype(jnp.float32))
    x = x @ w_out.astype(jnp.float32) + b_out.astype(jnp.float32)
    return x


if __name__ == "__main__":
    key = jax.random.PRNGKey(0)
    k_x, k_w1, k_b1, k_w2, k_b2 = jax.random.split(key, 5)

    # Deterministic parameter init (roughly PyTorch Linear's uniform scale),
    # generated directly in (in, out) layout.
    bound = 1.0 / (HIDDEN ** 0.5)
    w_dense = jax.random.uniform(k_w1, (HIDDEN, HIDDEN), jnp.float32, -bound, bound)
    b_dense = jax.random.uniform(k_b1, (HIDDEN,), jnp.float32, -bound, bound)
    w_out = jax.random.uniform(k_w2, (HIDDEN, HIDDEN), jnp.float32, -bound, bound)
    b_out = jax.random.uniform(k_b2, (HIDDEN,), jnp.float32, -bound, bound)

    # One-time param prep (bf16 weights, (1,768) f32 biases) -- off the hot path.
    params = prepare_params(w_dense, b_dense, w_out, b_out)

    # 1) Small shape consistent with the module: batch=2, seq=8, hidden=768.
    feature = jax.random.normal(k_x, (2, 8, HIDDEN), dtype=jnp.float32)
    out = jax.block_until_ready(contrastive_head(feature, params))
    ref = _reference(feature, w_dense, b_dense, w_out, b_out)
    assert out.shape == feature.shape, out.shape
    assert jnp.allclose(out.astype(jnp.float32), ref, atol=3e-2, rtol=3e-2), \
        float(jnp.max(jnp.abs(out.astype(jnp.float32) - ref)))

    # 2) Multi-tile pipelined path: M = 2*768 = 1536 rows -> grid length 3 at tm=512.
    feature2 = jax.random.normal(k_x, (2, 768, HIDDEN), dtype=jnp.float32)
    out2 = jax.block_until_ready(contrastive_head(feature2, params))
    ref2 = _reference(feature2, w_dense, b_dense, w_out, b_out)
    assert out2.shape == feature2.shape, out2.shape
    assert jnp.allclose(out2.astype(jnp.float32), ref2, atol=3e-2, rtol=3e-2), \
        float(jnp.max(jnp.abs(out2.astype(jnp.float32) - ref2)))

    # 3) bf16 activation I/O path (preferred on v6e/v7x where the f32 version is
    #    HBM-bound): same kernel, no extra astype passes at the boundary.
    feature3 = jax.random.normal(k_x, (2, 64, HIDDEN), dtype=jnp.bfloat16)
    out3 = jax.block_until_ready(contrastive_head(feature3, params))
    ref3 = _reference(feature3, w_dense, b_dense, w_out, b_out)
    assert out3.shape == feature3.shape and out3.dtype == jnp.bfloat16
    assert jnp.allclose(out3.astype(jnp.float32), ref3, atol=6e-2, rtol=6e-2), \
        float(jnp.max(jnp.abs(out3.astype(jnp.float32) - ref3)))

    print("KERNEL_OK")
</pallas_src>

<mosaic_0001>
module attributes {stable_mosaic.version = 11 : i64} {
  func.func @_contrastive_head_kernel(%arg0: i32, %arg1: memref<16x768xf32, #tpu.memory_space<vmem>>, %arg2: memref<768x768xbf16, #tpu.memory_space<vmem>>, %arg3: memref<1x768xf32, #tpu.memory_space<vmem>>, %arg4: memref<768x768xbf16, #tpu.memory_space<vmem>>, %arg5: memref<1x768xf32, #tpu.memory_space<vmem>>, %arg6: memref<16x768xf32, #tpu.memory_space<vmem>>) attributes {dimension_semantics = [#tpu.dimension_semantics<parallel>], iteration_bounds = array<i64: 1>, scalar_prefetch = 0 : i64, scratch_operands = 0 : i64, tpu.core_type = #tpu.core_type<tc>, window_params = [{transform_indices = @transform_0, window_bounds = array<i64: 16, 768>}, {pipeline_mode = #tpu.pipeline_mode<synchronous>, transform_indices = @transform_1, window_bounds = array<i64: 768, 768>}, {pipeline_mode = #tpu.pipeline_mode<synchronous>, transform_indices = @transform_2, window_bounds = array<i64: 1, 768>}, {pipeline_mode = #tpu.pipeline_mode<synchronous>, transform_indices = @transform_3, window_bounds = array<i64: 768, 768>}, {pipeline_mode = #tpu.pipeline_mode<synchronous>, transform_indices = @transform_4, window_bounds = array<i64: 1, 768>}, {transform_indices = @transform_5, window_bounds = array<i64: 16, 768>}]} {
    %c0 = arith.constant 0 : index
    %c0_0 = arith.constant 0 : index
    %0 = vector.load %arg2[%c0, %c0_0] : memref<768x768xbf16, #tpu.memory_space<vmem>>, vector<768x768xbf16>
    %c0_1 = arith.constant 0 : index
    %c0_2 = arith.constant 0 : index
    %1 = vector.load %arg3[%c0_1, %c0_2] : memref<1x768xf32, #tpu.memory_space<vmem>>, vector<1x768xf32>
    %c0_3 = arith.constant 0 : index
    %c0_4 = arith.constant 0 : index
    %2 = vector.load %arg4[%c0_3, %c0_4] : memref<768x768xbf16, #tpu.memory_space<vmem>>, vector<768x768xbf16>
    %c0_5 = arith.constant 0 : index
    %c0_6 = arith.constant 0 : index
    %3 = vector.load %arg5[%c0_5, %c0_6] : memref<1x768xf32, #tpu.memory_space<vmem>>, vector<1x768xf32>
    %c0_7 = arith.constant 0 : index
    %c0_8 = arith.constant 0 : index
    %4 = vector.load %arg1[%c0_7, %c0_8] : memref<16x768xf32, #tpu.memory_space<vmem>>, vector<16x768xf32>
    %5 = arith.truncf %4 : vector<16x768xf32> to vector<16x768xbf16>
    %cst = arith.constant dense<0.000000e+00> : vector<16x768xf32>
    %6 = tpu.matmul %5, %0, %cst {dimension_numbers = #tpu.dot_dimension_numbers<[1], [0], [0], [1], [0, 0, 1, 1], [], []>} : vector<16x768xbf16>, vector<768x768xbf16>, vector<16x768xf32> -> vector<16x768xf32>
    %7 = vector.broadcast %1 : vector<1x768xf32> to vector<16x768xf32>
    %8 = arith.addf %6, %7 : vector<16x768xf32>
    %9 = math.tanh %8 : vector<16x768xf32>
    %10 = arith.truncf %9 : vector<16x768xf32> to vector<16x768xbf16>
    %cst_9 = arith.constant dense<0.000000e+00> : vector<16x768xf32>
    %11 = tpu.matmul %10, %2, %cst_9 {dimension_numbers = #tpu.dot_dimension_numbers<[1], [0], [0], [1], [0, 0, 1, 1], [], []>} : vector<16x768xbf16>, vector<768x768xbf16>, vector<16x768xf32> -> vector<16x768xf32>
    %12 = vector.broadcast %3 : vector<1x768xf32> to vector<16x768xf32>
    %13 = arith.addf %11, %12 : vector<16x768xf32>
    %c0_10 = arith.constant 0 : index
    %c0_11 = arith.constant 0 : index
    %14 = vector.load %arg6[%c0_10, %c0_11] : memref<16x768xf32, #tpu.memory_space<vmem>>, vector<16x768xf32>
    tpu.vector_store %arg6[%c0_10, %c0_11], %13 {strides = array<i32>} : memref<16x768xf32, #tpu.memory_space<vmem>>, vector<16x768xf32>,
    return
  }
  func.func @transform_0(%arg0: i32) -> (i32, i32) {
    %c0_i32 = arith.constant 0 : i32
    %c0_i32_0 = arith.constant 0 : i32
    return %arg0, %c0_i32 : i32, i32
  }
  func.func @transform_1(%arg0: i32) -> (i32, i32) {
    %c0_i32 = arith.constant 0 : i32
    %c0_i32_0 = arith.constant 0 : i32
    %c0_i32_1 = arith.constant 0 : i32
    return %c0_i32, %c0_i32_0 : i32, i32
  }
  func.func @transform_2(%arg0: i32) -> (i32, i32) {
    %c0_i32 = arith.constant 0 : i32
    %c0_i32_0 = arith.constant 0 : i32
    %c0_i32_1 = arith.constant 0 : i32
    return %c0_i32, %c0_i32_0 : i32, i32
  }
  func.func @transform_3(%arg0: i32) -> (i32, i32) {
    %c0_i32 = arith.constant 0 : i32
    %c0_i32_0 = arith.constant 0 : i32
    %c0_i32_1 = arith.constant 0 : i32
    return %c0_i32, %c0_i32_0 : i32, i32
  }
  func.func @transform_4(%arg0: i32) -> (i32, i32) {
    %c0_i32 = arith.constant 0 : i32
    %c0_i32_0 = arith.constant 0 : i32
    %c0_i32_1 = arith.constant 0 : i32
    return %c0_i32, %c0_i32_0 : i32, i32
  }
  func.func @transform_5(%arg0: i32) -> (i32, i32) {
    %c0_i32 = arith.constant 0 : i32
    %c0_i32_0 = arith.constant 0 : i32
    return %arg0, %c0_i32 : i32, i32
  }
}

</mosaic_0001>

<llo_original>
// kernel: _contrastive_head_2d.1
$region0: #{_contrastive_head_2d.1}
  #allocation0 [shape = 'u32[]', space=smem, size = 0x4, offset = 0x4, fixed_abs, tag = 'smem constant byte address 0x4 - core index']
  #allocation1 [shape = 'u32[72,128]{1,0:T(1,128)}', space=vmem, size = 0x9000, scoped, tag = 'internal scratch']
  %s0 = inlined_call_operand.hbm [shape: f32[16,768], index: 0, kind: input, shape index: {}]
  %s1 = inlined_call_operand.hbm [shape: bf16[768,768], index: 1, kind: input, shape index: {}]
  %s2 = inlined_call_operand.hbm [shape: f32[1,768], index: 2, kind: input, shape index: {}]
  %s3 = inlined_call_operand.hbm [shape: bf16[768,768], index: 3, kind: input, shape index: {}]
  %s4 = inlined_call_operand.hbm [shape: f32[1,768], index: 4, kind: input, shape index: {}]
  %s5 = inlined_call_operand.hbm [shape: f32[16,768], index: 5, kind: output, shape index: {}]
  %s6 = sld [smem:[#allocation0]]
  $region50: #{_contrastive_head_2d.1} parent=0
    _
  %s8 = ssub.s32 1, %s6
  %s9 = scalar_select 0, %s8, %s6
  $region1: #{_contrastive_head_2d.1} parent=0
    #allocation2 [shape = 'u8[49152]{0}', space=vmem, size = 0xc000, scoped, tag = 'input window, operand 0, single buffered']
    #allocation3 [shape = 's32[1]{0}', space=sflag, size = 0x4, scoped, tag = 'scoped memory for _contrastive_head_2d.1']
    #allocation4 [shape = 's32[1]{0}', space=sflag, size = 0x4, scoped, tag = 'scoped memory for _contrastive_head_2d.1']
    #allocation5 [shape = 'u8[1179648]{0}', space=vmem, size = 0x120000, scoped, tag = 'input window, operand 1, single buffered']
    #allocation6 [shape = 's32[1]{0}', space=sflag, size = 0x4, scoped, tag = 'scoped memory for _contrastive_head_2d.1']
    #allocation7 [shape = 'u8[3072]{0}', space=vmem, size = 0xc00, scoped, tag = 'input window, operand 2, single buffered']
    #allocation8 [shape = 'u8[1179648]{0}', space=vmem, size = 0x120000, scoped, tag = 'input window, operand 3, single buffered']
    #allocation9 [shape = 's32[1]{0}', space=sflag, size = 0x4, scoped, tag = 'scoped memory for _contrastive_head_2d.1']
    #allocation10 [shape = 'u8[3072]{0}', space=vmem, size = 0xc00, scoped, tag = 'input window, operand 4, single buffered']
    #allocation11 [shape = 'u8[49152]{0}', space=vmem, size = 0xc000, scoped, tag = 'output window, operand 0, single buffered']
    %10 = vsyncpa [#allocation3], 0
    %11 = vsyncpa [#allocation6], 0
    %12 = vsyncpa [#allocation9], 0
    %13 = vsyncpa [#allocation4], 0
    // Predicated region
    $region2: #{_contrastive_head_2d.1} parent=1 // pred_check
      _
    $region3: #{_contrastive_head_2d.1} parent=1 // pred_check_branch
      %15 = sbr.rel (0) target = $region5
    $region4: #{_contrastive_head_2d.1} parent=1 // pred_region
      %17 = vsyncadd [#allocation3], 0
      %s18 = sshll.u32 %s0, 4
      %s19 = int_to_ptr.hbm [resolvable:$true] %s18
      %s20 = sshll.u32 [#allocation2], 4
      %s21 = int_to_ptr.vmem [resolvable:$true] %s20
      %26 = dma.hbm_to_vmem [thread:$0]  %s19, 1536, %s21, [#allocation3], 768, 768, 48
    $region5: #{_contrastive_head_2d.1} parent=1 // pred_fallthru
      _
    // Predicated region
    $region6: #{_contrastive_head_2d.1} parent=1 // pred_check
      _
    $region7: #{_contrastive_head_2d.1} parent=1 // pred_check_branch
      %28 = sbr.rel (0) target = $region9
    $region8: #{_contrastive_head_2d.1} parent=1 // pred_region
      %30 = vsyncadd [#allocation6], 0
      %s31 = sshll.u32 %s1, 4
      %s32 = int_to_ptr.hbm [resolvable:$true] %s31
      %s33 = sshll.u32 [#allocation5], 4
      %s34 = int_to_ptr.vmem [resolvable:$true] %s33
      %39 = dma.hbm_to_vmem [thread:$0]  %s32, 36864, %s34, [#allocation6], 384, 384, 24
    $region9: #{_contrastive_head_2d.1} parent=1 // pred_fallthru
      _
    // Predicated region
    $region10: #{_contrastive_head_2d.1} parent=1 // pred_check
      _
    $region11: #{_contrastive_head_2d.1} parent=1 // pred_check_branch
      %41 = sbr.rel (0) target = $region13
    $region12: #{_contrastive_head_2d.1} parent=1 // pred_region
      %43 = vsyncadd [#allocation6], 0
      %s45 = sshll.u32 %s2, 4
      %s46 = int_to_ptr.hbm [resolvable:$true] %s45
      %s47 = sshll.u32 [#allocation7], 4
      %s48 = int_to_ptr.vmem [resolvable:$true] %s47
      %50 = dma.hbm_to_vmem [thread:$0]  %s46, 96, %s48, [#allocation6]
    $region13: #{_contrastive_head_2d.1} parent=1 // pred_fallthru
      _
    // Predicated region
    $region14: #{_contrastive_head_2d.1} parent=1 // pred_check
      _
    $region15: #{_contrastive_head_2d.1} parent=1 // pred_check_branch
      %52 = sbr.rel (0) target = $region17
    $region16: #{_contrastive_head_2d.1} parent=1 // pred_region
      %54 = vsyncadd [#allocation9], 0
      %s55 = sshll.u32 %s3, 4
      %s56 = int_to_ptr.hbm [resolvable:$true] %s55
      %s57 = sshll.u32 [#allocation8], 4
      %s58 = int_to_ptr.vmem [resolvable:$true] %s57
      %63 = dma.hbm_to_vmem [thread:$0]  %s56, 36864, %s58, [#allocation9], 384, 384, 24
    $region17: #{_contrastive_head_2d.1} parent=1 // pred_fallthru
      _
    // Predicated region
    $region18: #{_contrastive_head_2d.1} parent=1 // pred_check
      _
    $region19: #{_contrastive_head_2d.1} parent=1 // pred_check_branch
      %65 = sbr.rel (0) target = $region21
    $region20: #{_contrastive_head_2d.1} parent=1 // pred_region
      %67 = vsyncadd [#allocation9], 0
      %s69 = sshll.u32 %s4, 4
      %s70 = int_to_ptr.hbm [resolvable:$true] %s69
      %s71 = sshll.u32 [#allocation10], 4
      %s72 = int_to_ptr.vmem [resolvable:$true] %s71
      %74 = dma.hbm_to_vmem [thread:$0]  %s70, 96, %s72, [#allocation9]
    $region21: #{_contrastive_head_2d.1} parent=1 // pred_fallthru
      _
    // Predicated region
    $region22: #{_contrastive_head_2d.1} parent=1 // pred_check
      _
    $region23: #{_contrastive_head_2d.1} parent=1 // pred_check_branch
      %76 = sbr.rel (0) target = $region25
    $region24: #{_contrastive_head_2d.1} parent=1 // pred_region
      %78 = dma.done [#allocation3], 1536
    $region25: #{_contrastive_head_2d.1} parent=1 // pred_fallthru
      _
    // Predicated region
    $region26: #{_contrastive_head_2d.1} parent=1 // pred_check
      _
    $region27: #{_contrastive_head_2d.1} parent=1 // pred_check_branch
      %80 = sbr.rel (0) target = $region29
    $region28: #{_contrastive_head_2d.1} parent=1 // pred_region
      %82 = dma.done [#allocation6], 36864
    $region29: #{_contrastive_head_2d.1} parent=1 // pred_fallthru
      _
    // Predicated region
    $region30: #{_contrastive_head_2d.1} parent=1 // pred_check
      _
    $region31: #{_contrastive_head_2d.1} parent=1 // pred_check_branch
      %84 = sbr.rel (0) target = $region33
    $region32: #{_contrastive_head_2d.1} parent=1 // pred_region
      %86 = dma.done [#allocation6], 96
    $region33: #{_contrastive_head_2d.1} parent=1 // pred_fallthru
      _
    // Predicated region
    $region34: #{_contrastive_head_2d.1} parent=1 // pred_check
      _
    $region35: #{_contrastive_head_2d.1} parent=1 // pred_check_branch
      %88 = sbr.rel (0) target = $region37
    $region36: #{_contrastive_head_2d.1} parent=1 // pred_region
      %90 = dma.done [#allocation9], 36864
    $region37: #{_contrastive_head_2d.1} parent=1 // pred_fallthru
      _
    // Predicated region
    $region38: #{_contrastive_head_2d.1} parent=1 // pred_check
      _
    $region39: #{_contrastive_head_2d.1} parent=1 // pred_check_branch
      %92 = sbr.rel (0) target = $region41
    $region40: #{_contrastive_head_2d.1} parent=1 // pred_region
      %94 = dma.done [#allocation9], 96
    $region41: #{_contrastive_head_2d.1} parent=1 // pred_fallthru
      _
    %v95 = vld [vmem:[#allocation5] sm:$0xff]
    %v96 = vld [vmem:[#allocation5 + $0x8] sm:$0xff]
    %v97 = vld [vmem:[#allocation5 + $0x10] sm:$0xff]
    %v98 = vld [vmem:[#allocation5 + $0x18] sm:$0xff]
    %v99 = vld [vmem:[#allocation5 + $0x20] sm:$0xff]
    %v100 = vld [vmem:[#allocation5 + $0x28] sm:$0xff]
    %v101 = vld [vmem:[#allocation5 + $0x30] sm:$0xff]
    %v102 = vld [vmem:[#allocation5 + $0x38] sm:$0xff]
    %v103 = vld [vmem:[#allocation5 + $0x40] sm:$0xff]
    %v104 = vld [vmem:[#allocation5 + $0x48] sm:$0xff]
    %v105 = vld [vmem:[#allocation5 + $0x50] sm:$0xff]
    %v106 = vld [vmem:[#allocation5 + $0x58] sm:$0xff]
    %v107 = vld [vmem:[#allocation5 + $0x60] sm:$0xff]
    %v108 = vld [vmem:[#allocation5 + $0x68] sm:$0xff]
    %v109 = vld [vmem:[#allocation5 + $0x70] sm:$0xff]
    %v110 = vld [vmem:[#allocation5 + $0x78] sm:$0xff]
    %v111 = vld [vmem:[#allocation5 + $0x80] sm:$0xff]
    %v112 = vld [vmem:[#allocation5 + $0x88] sm:$0xff]
    %v113 = vld [vmem:[#allocation5 + $0x90] sm:$0xff]
    %v114 = vld [vmem:[#allocation5 + $0x98] sm:$0xff]
    %v115 = vld [vmem:[#allocation5 + $0xa0] sm:$0xff]
    %v116 = vld [vmem:[#allocation5 + $0xa8] sm:$0xff]
    %v117 = vld [vmem:[#allocation5 + $0xb0] sm:$0xff]
    %v118 = vld [vmem:[#allocation5 + $0xb8] sm:$0xff]
    %v119 = vld [vmem:[#allocation5 + $0xc0] sm:$0xff]
    %v120 = vld [vmem:[#allocation5 + $0xc8] sm:$0xff]
    %v121 = vld [vmem:[#allocation5 + $0xd0] sm:$0xff]
    %v122 = vld [vmem:[#allocation5 + $0xd8] sm:$0xff]
    %v123 = vld [vmem:[#allocation5 + $0xe0] sm:$0xff]
    %v124 = vld [vmem:[#allocation5 + $0xe8] sm:$0xff]
    %v125 = vld [vmem:[#allocation5 + $0xf0] sm:$0xff]
    %v126 = vld [vmem:[#allocation5 + $0xf8] sm:$0xff]
    %v127 = vld [vmem:[#allocation5 + $0x100] sm:$0xff]
    %v128 = vld [vmem:[#allocation5 + $0x108] sm:$0xff]
    %v129 = vld [vmem:[#allocation5 + $0x110] sm:$0xff]
    %v130 = vld [vmem:[#allocation5 + $0x118] sm:$0xff]
    %v131 = vld [vmem:[#allocation5 + $0x120] sm:$0xff]
    %v132 = vld [vmem:[#allocation5 + $0x128] sm:$0xff]
    %v133 = vld [vmem:[#allocation5 + $0x130] sm:$0xff]
    %v134 = vld [vmem:[#allocation5 + $0x138] sm:$0xff]
    %v135 = vld [vmem:[#allocation5 + $0x140] sm:$0xff]
    %v136 = vld [vmem:[#allocation5 + $0x148] sm:$0xff]
    %v137 = vld [vmem:[#allocation5 + $0x150] sm:$0xff]
    %v138 = vld [vmem:[#allocation5 + $0x158] sm:$0xff]
    %v139 = vld [vmem:[#allocation5 + $0x160] sm:$0xff]
    %v140 = vld [vmem:[#allocation5 + $0x168] sm:$0xff]
    %v141 = vld [vmem:[#allocation5 + $0x170] sm:$0xff]
    %v142 = vld [vmem:[#allocation5 + $0x178] sm:$0xff]
    %v143 = vld [vmem:[#allocation5 + $0x180] sm:$0xff]
    %v144 = vld [vmem:[#allocation5 + $0x188] sm:$0xff]
    %v145 = vld [vmem:[#allocation5 + $0x190] sm:$0xff]
    %v146 = vld [vmem:[#allocation5 + $0x198] sm:$0xff]
    %v147 = vld [vmem:[#allocation5 + $0x1a0] sm:$0xff]
    %v148 = vld [vmem:[#allocation5 + $0x1a8] sm:$0xff]
    %v149 = vld [vmem:[#allocation5 + $0x1b0] sm:$0xff]
    %v150 = vld [vmem:[#allocation5 + $0x1b8] sm:$0xff]
    %v151 = vld [vmem:[#allocation5 + $0x1c0] sm:$0xff]
    %v152 = vld [vmem:[#allocation5 + $0x1c8] sm:$0xff]
    %v153 = vld [vmem:[#allocation5 + $0x1d0] sm:$0xff]
    %v154 = vld [vmem:[#allocation5 + $0x1d8] sm:$0xff]
    %v155 = vld [vmem:[#allocation5 + $0x1e0] sm:$0xff]
    %v156 = vld [vmem:[#allocation5 + $0x1e8] sm:$0xff]
    %v157 = vld [vmem:[#allocation5 + $0x1f0] sm:$0xff]
    %v158 = vld [vmem:[#allocation5 + $0x1f8] sm:$0xff]
    %v159 = vld [vmem:[#allocation5 + $0x200] sm:$0xff]
    %v160 = vld [vmem:[#allocation5 + $0x208] sm:$0xff]
    %v161 = vld [vmem:[#allocation5 + $0x210] sm:$0xff]
    %v162 = vld [vmem:[#allocation5 + $0x218] sm:$0xff]
    %v163 = vld [vmem:[#allocation5 + $0x220] sm:$0xff]
    %v164 = vld [vmem:[#allocation5 + $0x228] sm:$0xff]
    %v165 = vld [vmem:[#allocation5 + $0x230] sm:$0xff]
    %v166 = vld [vmem:[#allocation5 + $0x238] sm:$0xff]
    %v167 = vld [vmem:[#allocation5 + $0x240] sm:$0xff]
    %v168 = vld [vmem:[#allocation5 + $0x248] sm:$0xff]
    %v169 = vld [vmem:[#allocation5 + $0x250] sm:$0xff]
    %v170 = vld [vmem:[#allocation5 + $0x258] sm:$0xff]
    %v171 = vld [vmem:[#allocation5 + $0x260] sm:$0xff]
    %v172 = vld [vmem:[#allocation5 + $0x268] sm:$0xff]
    %v173 = vld [vmem:[#allocation5 + $0x270] sm:$0xff]
    %v174 = vld [vmem:[#allocation5 + $0x278] sm:$0xff]
    %v175 = vld [vmem:[#allocation5 + $0x280] sm:$0xff]
    %v176 = vld [vmem:[#allocation5 + $0x288] sm:$0xff]
    %v177 = vld [vmem:[#allocation5 + $0x290] sm:$0xff]
    %v178 = vld [vmem:[#allocation5 + $0x298] sm:$0xff]
    %v179 = vld [vmem:[#allocation5 + $0x2a0] sm:$0xff]
    %v180 = vld [vmem:[#allocation5 + $0x2a8] sm:$0xff]
    %v181 = vld [vmem:[#allocation5 + $0x2b0] sm:$0xff]
    %v182 = vld [vmem:[#allocation5 + $0x2b8] sm:$0xff]
    %v183 = vld [vmem:[#allocation5 + $0x2c0] sm:$0xff]
    %v184 = vld [vmem:[#allocation5 + $0x2c8] sm:$0xff]
    %v185 = vld [vmem:[#allocation5 + $0x2d0] sm:$0xff]
    %v186 = vld [vmem:[#allocation5 + $0x2d8] sm:$0xff]
    %v187 = vld [vmem:[#allocation5 + $0x2e0] sm:$0xff]
    %v188 = vld [vmem:[#allocation5 + $0x2e8] sm:$0xff]
    %v189 = vld [vmem:[#allocation5 + $0x2f0] sm:$0xff]
    %v190 = vld [vmem:[#allocation5 + $0x2f8] sm:$0xff]
    %v191 = vld [vmem:[#allocation5 + $0x300] sm:$0xff]
    %v192 = vld [vmem:[#allocation5 + $0x308] sm:$0xff]
    %v193 = vld [vmem:[#allocation5 + $0x310] sm:$0xff]
    %v194 = vld [vmem:[#allocation5 + $0x318] sm:$0xff]
    %v195 = vld [vmem:[#allocation5 + $0x320] sm:$0xff]
    %v196 = vld [vmem:[#allocation5 + $0x328] sm:$0xff]
    %v197 = vld [vmem:[#allocation5 + $0x330] sm:$0xff]
    %v198 = vld [vmem:[#allocation5 + $0x338] sm:$0xff]
    %v199 = vld [vmem:[#allocation5 + $0x340] sm:$0xff]
    %v200 = vld [vmem:[#allocation5 + $0x348] sm:$0xff]
    %v201 = vld [vmem:[#allocation5 + $0x350] sm:$0xff]
    %v202 = vld [vmem:[#allocation5 + $0x358] sm:$0xff]
    %v203 = vld [vmem:[#allocation5 + $0x360] sm:$0xff]
    %v204 = vld [vmem:[#allocation5 + $0x368] sm:$0xff]
    %v205 = vld [vmem:[#allocation5 + $0x370] sm:$0xff]
    %v206 = vld [vmem:[#allocation5 + $0x378] sm:$0xff]
    %v207 = vld [vmem:[#allocation5 + $0x380] sm:$0xff]
    %v208 = vld [vmem:[#allocation5 + $0x388] sm:$0xff]
    %v209 = vld [vmem:[#allocation5 + $0x390] sm:$0xff]
    %v210 = vld [vmem:[#allocation5 + $0x398] sm:$0xff]
    %v211 = vld [vmem:[#allocation5 + $0x3a0] sm:$0xff]
    %v212 = vld [vmem:[#allocation5 + $0x3a8] sm:$0xff]
    %v213 = vld [vmem:[#allocation5 + $0x3b0] sm:$0xff]
    %v214 = vld [vmem:[#allocation5 + $0x3b8] sm:$0xff]
    %v215 = vld [vmem:[#allocation5 + $0x3c0] sm:$0xff]
    %v216 = vld [vmem:[#allocation5 + $0x3c8] sm:$0xff]
    %v217 = vld [vmem:[#allocation5 + $0x3d0] sm:$0xff]
    %v218 = vld [vmem:[#allocation5 + $0x3d8] sm:$0xff]
    %v219 = vld [vmem:[#allocation5 + $0x3e0] sm:$0xff]
    %v220 = vld [vmem:[#allocation5 + $0x3e8] sm:$0xff]
    %v221 = vld [vmem:[#allocation5 + $0x3f0] sm:$0xff]
    %v222 = vld [vmem:[#allocation5 + $0x3f8] sm:$0xff]
    %v223 = vld [vmem:[#allocation5 + $0x400] sm:$0xff]
    %v224 = vld [vmem:[#allocation5 + $0x408] sm:$0xff]
    %v225 = vld [vmem:[#allocation5 + $0x410] sm:$0xff]
    %v226 = vld [vmem:[#allocation5 + $0x418] sm:$0xff]
    %v227 = vld [vmem:[#allocation5 + $0x420] sm:$0xff]
    %v228 = vld [vmem:[#allocation5 + $0x428] sm:$0xff]
    %v229 = vld [vmem:[#allocation5 + $0x430] sm:$0xff]
    %v230 = vld [vmem:[#allocation5 + $0x438] sm:$0xff]
    %v231 = vld [vmem:[#allocation5 + $0x440] sm:$0xff]
    %v232 = vld [vmem:[#allocation5 + $0x448] sm:$0xff]
    %v233 = vld [vmem:[#allocation5 + $0x450] sm:$0xff]
    %v234 = vld [vmem:[#allocation5 + $0x458] sm:$0xff]
    %v235 = vld [vmem:[#allocation5 + $0x460] sm:$0xff]
    %v236 = vld [vmem:[#allocation5 + $0x468] sm:$0xff]
    %v237 = vld [vmem:[#allocation5 + $0x470] sm:$0xff]
    %v238 = vld [vmem:[#allocation5 + $0x478] sm:$0xff]
    %v239 = vld [vmem:[#allocation5 + $0x480] sm:$0xff]
    %v240 = vld [vmem:[#allocation5 + $0x488] sm:$0xff]
    %v241 = vld [vmem:[#allocation5 + $0x490] sm:$0xff]
    %v242 = vld [vmem:[#allocation5 + $0x498] sm:$0xff]
    %v243 = vld [vmem:[#allocation5 + $0x4a0] sm:$0xff]
    %v244 = vld [vmem:[#allocation5 + $0x4a8] sm:$0xff]
    %v245 = vld [vmem:[#allocation5 + $0x4b0] sm:$0xff]
    %v246 = vld [vmem:[#allocation5 + $0x4b8] sm:$0xff]
    %v247 = vld [vmem:[#allocation5 + $0x4c0] sm:$0xff]
    %v248 = vld [vmem:[#allocation5 + $0x4c8] sm:$0xff]
    %v249 = vld [vmem:[#allocation5 + $0x4d0] sm:$0xff]
    %v250 = vld [vmem:[#allocation5 + $0x4d8] sm:$0xff]
    %v251 = vld [vmem:[#allocation5 + $0x4e0] sm:$0xff]
    %v252 = vld [vmem:[#allocation5 + $0x4e8] sm:$0xff]
    %v253 = vld [vmem:[#allocation5 + $0x4f0] sm:$0xff]
    %v254 = vld [vmem:[#allocation5 + $0x4f8] sm:$0xff]
    %v255 = vld [vmem:[#allocation5 + $0x500] sm:$0xff]
    %v256 = vld [vmem:[#allocation5 + $0x508] sm:$0xff]
    %v257 = vld [vmem:[#allocation5 + $0x510] sm:$0xff]
    %v258 = vld [vmem:[#allocation5 + $0x518] sm:$0xff]
    %v259 = vld [vmem:[#allocation5 + $0x520] sm:$0xff]
    %v260 = vld [vmem:[#allocation5 + $0x528] sm:$0xff]
    %v261 = vld [vmem:[#allocation5 + $0x530] sm:$0xff]
    %v262 = vld [vmem:[#allocation5 + $0x538] sm:$0xff]
    %v263 = vld [vmem:[#allocation5 + $0x540] sm:$0xff]
    %v264 = vld [vmem:[#allocation5 + $0x548] sm:$0xff]
    %v265 = vld [vmem:[#allocation5 + $0x550] sm:$0xff]
    %v266 = vld [vmem:[#allocation5 + $0x558] sm:$0xff]
    %v267 = vld [vmem:[#allocation5 + $0x560] sm:$0xff]
    %v268 = vld [vmem:[#allocation5 + $0x568] sm:$0xff]
    %v269 = vld [vmem:[#allocation5 + $0x570] sm:$0xff]
    %v270 = vld [vmem:[#allocation5 + $0x578] sm:$0xff]
    %v271 = vld [vmem:[#allocation5 + $0x580] sm:$0xff]
    %v272 = vld [vmem:[#allocation5 + $0x588] sm:$0xff]
    %v273 = vld [vmem:[#allocation5 + $0x590] sm:$0xff]
    %v274 = vld [vmem:[#allocation5 + $0x598] sm:$0xff]
    %v275 = vld [vmem:[#allocation5 + $0x5a0] sm:$0xff]
    %v276 = vld [vmem:[#allocation5 + $0x5a8] sm:$0xff]
    %v277 = vld [vmem:[#allocation5 + $0x5b0] sm:$0xff]
    %v278 = vld [vmem:[#allocation5 + $0x5b8] sm:$0xff]
    %v279 = vld [vmem:[#allocation5 + $0x5c0] sm:$0xff]
    %v280 = vld [vmem:[#allocation5 + $0x5c8] sm:$0xff]
    %v281 = vld [vmem:[#allocation5 + $0x5d0] sm:$0xff]
    %v282 = vld [vmem:[#allocation5 + $0x5d8] sm:$0xff]
    %v283 = vld [vmem:[#allocation5 + $0x5e0] sm:$0xff]
    %v284 = vld [vmem:[#allocation5 + $0x5e8] sm:$0xff]
    %v285 = vld [vmem:[#allocation5 + $0x5f0] sm:$0xff]
    %v286 = vld [vmem:[#allocation5 + $0x5f8] sm:$0xff]
    %v287 = vld [vmem:[#allocation5 + $0x600] sm:$0xff]
    %v288 = vld [vmem:[#allocation5 + $0x608] sm:$0xff]
    %v289 = vld [vmem:[#allocation5 + $0x610] sm:$0xff]
    %v290 = vld [vmem:[#allocation5 + $0x618] sm:$0xff]
    %v291 = vld [vmem:[#allocation5 + $0x620] sm:$0xff]
    %v292 = vld [vmem:[#allocation5 + $0x628] sm:$0xff]
    %v293 = vld [vmem:[#allocation5 + $0x630] sm:$0xff]
    %v294 = vld [vmem:[#allocation5 + $0x638] sm:$0xff]
    %v295 = vld [vmem:[#allocation5 + $0x640] sm:$0xff]
    %v296 = vld [vmem:[#allocation5 + $0x648] sm:$0xff]
    %v297 = vld [vmem:[#allocation5 + $0x650] sm:$0xff]
    %v298 = vld [vmem:[#allocation5 + $0x658] sm:$0xff]
    %v299 = vld [vmem:[#allocation5 + $0x660] sm:$0xff]
    %v300 = vld [vmem:[#allocation5 + $0x668] sm:$0xff]
    %v301 = vld [vmem:[#allocation5 + $0x670] sm:$0xff]
    %v302 = vld [vmem:[#allocation5 + $0x678] sm:$0xff]
    %v303 = vld [vmem:[#allocation5 + $0x680] sm:$0xff]
    %v304 = vld [vmem:[#allocation5 + $0x688] sm:$0xff]
    %v305 = vld [vmem:[#allocation5 + $0x690] sm:$0xff]
    %v306 = vld [vmem:[#allocation5 + $0x698] sm:$0xff]
    %v307 = vld [vmem:[#allocation5 + $0x6a0] sm:$0xff]
    %v308 = vld [vmem:[#allocation5 + $0x6a8] sm:$0xff]
    %v309 = vld [vmem:[#allocation5 + $0x6b0] sm:$0xff]
    %v310 = vld [vmem:[#allocation5 + $0x6b8] sm:$0xff]
    %v311 = vld [vmem:[#allocation5 + $0x6c0] sm:$0xff]
    %v312 = vld [vmem:[#allocation5 + $0x6c8] sm:$0xff]
    %v313 = vld [vmem:[#allocation5 + $0x6d0] sm:$0xff]
    %v314 = vld [vmem:[#allocation5 + $0x6d8] sm:$0xff]
    %v315 = vld [vmem:[#allocation5 + $0x6e0] sm:$0xff]
    %v316 = vld [vmem:[#allocation5 + $0x6e8] sm:$0xff]
    %v317 = vld [vmem:[#allocation5 + $0x6f0] sm:$0xff]
    %v318 = vld [vmem:[#allocation5 + $0x6f8] sm:$0xff]
    %v319 = vld [vmem:[#allocation5 + $0x700] sm:$0xff]
    %v320 = vld [vmem:[#allocation5 + $0x708] sm:$0xff]
    %v321 = vld [vmem:[#allocation5 + $0x710] sm:$0xff]
    %v322 = vld [vmem:[#allocation5 + $0x718] sm:$0xff]
    %v323 = vld [vmem:[#allocation5 + $0x720] sm:$0xff]
    %v324 = vld [vmem:[#allocation5 + $0x728] sm:$0xff]
    %v325 = vld [vmem:[#allocation5 + $0x730] sm:$0xff]
    %v326 = vld [vmem:[#allocation5 + $0x738] sm:$0xff]
    %v327 = vld [vmem:[#allocation5 + $0x740] sm:$0xff]
    %v328 = vld [vmem:[#allocation5 + $0x748] sm:$0xff]
    %v329 = vld [vmem:[#allocation5 + $0x750] sm:$0xff]
    %v330 = vld [vmem:[#allocation5 + $0x758] sm:$0xff]
    %v331 = vld [vmem:[#allocation5 + $0x760] sm:$0xff]
    %v332 = vld [vmem:[#allocation5 + $0x768] sm:$0xff]
    %v333 = vld [vmem:[#allocation5 + $0x770] sm:$0xff]
    %v334 = vld [vmem:[#allocation5 + $0x778] sm:$0xff]
    %v335 = vld [vmem:[#allocation5 + $0x780] sm:$0xff]
    %v336 = vld [vmem:[#allocation5 + $0x788] sm:$0xff]
    %v337 = vld [vmem:[#allocation5 + $0x790] sm:$0xff]
    %v338 = vld [vmem:[#allocation5 + $0x798] sm:$0xff]
    %v339 = vld [vmem:[#allocation5 + $0x7a0] sm:$0xff]
    %v340 = vld [vmem:[#allocation5 + $0x7a8] sm:$0xff]
    %v341 = vld [vmem:[#allocation5 + $0x7b0] sm:$0xff]
    %v342 = vld [vmem:[#allocation5 + $0x7b8] sm:$0xff]
    %v343 = vld [vmem:[#allocation5 + $0x7c0] sm:$0xff]
    %v344 = vld [vmem:[#allocation5 + $0x7c8] sm:$0xff]
    %v345 = vld [vmem:[#allocation5 + $0x7d0] sm:$0xff]
    %v346 = vld [vmem:[#allocation5 + $0x7d8] sm:$0xff]
    %v347 = vld [vmem:[#allocation5 + $0x7e0] sm:$0xff]
    %v348 = vld [vmem:[#allocation5 + $0x7e8] sm:$0xff]
    %v349 = vld [vmem:[#allocation5 + $0x7f0] sm:$0xff]
    %v350 = vld [vmem:[#allocation5 + $0x7f8] sm:$0xff]
    %v351 = vld [vmem:[#allocation5 + $0x800] sm:$0xff]
    %v352 = vld [vmem:[#allocation5 + $0x808] sm:$0xff]
    %v353 = vld [vmem:[#allocation5 + $0x810] sm:$0xff]
    %v354 = vld [vmem:[#allocation5 + $0x818] sm:$0xff]
    %v355 = vld [vmem:[#allocation5 + $0x820] sm:$0xff]
    %v356 = vld [vmem:[#allocation5 + $0x828] sm:$0xff]
    %v357 = vld [vmem:[#allocation5 + $0x830] sm:$0xff]
    %v358 = vld [vmem:[#allocation5 + $0x838] sm:$0xff]
    %v359 = vld [vmem:[#allocation5 + $0x840] sm:$0xff]
    %v360 = vld [vmem:[#allocation5 + $0x848] sm:$0xff]
    %v361 = vld [vmem:[#allocation5 + $0x850] sm:$0xff]
    %v362 = vld [vmem:[#allocation5 + $0x858] sm:$0xff]
    %v363 = vld [vmem:[#allocation5 + $0x860] sm:$0xff]
    %v364 = vld [vmem:[#allocation5 + $0x868] sm:$0xff]
    %v365 = vld [vmem:[#allocation5 + $0x870] sm:$0xff]
    %v366 = vld [vmem:[#allocation5 + $0x878] sm:$0xff]
    %v367 = vld [vmem:[#allocation5 + $0x880] sm:$0xff]
    %v368 = vld [vmem:[#allocation5 + $0x888] sm:$0xff]
    %v369 = vld [vmem:[#allocation5 + $0x890] sm:$0xff]
    %v370 = vld [vmem:[#allocation5 + $0x898] sm:$0xff]
    %v371 = vld [vmem:[#allocation5 + $0x8a0] sm:$0xff]
    %v372 = vld [vmem:[#allocation5 + $0x8a8] sm:$0xff]
    %v373 = vld [vmem:[#allocation5 + $0x8b0] sm:$0xff]
    %v374 = vld [vmem:[#allocation5 + $0x8b8] sm:$0xff]
    %v375 = vld [vmem:[#allocation5 + $0x8c0] sm:$0xff]
    %v376 = vld [vmem:[#allocation5 + $0x8c8] sm:$0xff]
    %v377 = vld [vmem:[#allocation5 + $0x8d0] sm:$0xff]
    %v378 = vld [vmem:[#allocation5 + $0x8d8] sm:$0xff]
    %v379 = vld [vmem:[#allocation5 + $0x8e0] sm:$0xff]
    %v380 = vld [vmem:[#allocation5 + $0x8e8] sm:$0xff]
    %v381 = vld [vmem:[#allocation5 + $0x8f0] sm:$0xff]
    %v382 = vld [vmem:[#allocation5 + $0x8f8] sm:$0xff]
    %v383 = vld [vmem:[#allocation7] sm:$0x3f]
    %v384 = vld [vmem:[#allocation8] sm:$0xff]
    %v385 = vld [vmem:[#allocation8 + $0x8] sm:$0xff]
    %v386 = vld [vmem:[#allocation8 + $0x10] sm:$0xff]
    %v387 = vld [vmem:[#allocation8 + $0x18] sm:$0xff]
    %v388 = vld [vmem:[#allocation8 + $0x20] sm:$0xff]
    %v389 = vld [vmem:[#allocation8 + $0x28] sm:$0xff]
    %v390 = vld [vmem:[#allocation8 + $0x30] sm:$0xff]
    %v391 = vld [vmem:[#allocation8 + $0x38] sm:$0xff]
    %v392 = vld [vmem:[#allocation8 + $0x40] sm:$0xff]
    %v393 = vld [vmem:[#allocation8 + $0x48] sm:$0xff]
    %v394 = vld [vmem:[#allocation8 + $0x50] sm:$0xff]
    %v395 = vld [vmem:[#allocation8 + $0x58] sm:$0xff]
    %v396 = vld [vmem:[#allocation8 + $0x60] sm:$0xff]
    %v397 = vld [vmem:[#allocation8 + $0x68] sm:$0xff]
    %v398 = vld [vmem:[#allocation8 + $0x70] sm:$0xff]
    %v399 = vld [vmem:[#allocation8 + $0x78] sm:$0xff]
    %v400 = vld [vmem:[#allocation8 + $0x80] sm:$0xff]
    %v401 = vld [vmem:[#allocation8 + $0x88] sm:$0xff]
    %v402 = vld [vmem:[#allocation8 + $0x90] sm:$0xff]
    %v403 = vld [vmem:[#allocation8 + $0x98] sm:$0xff]
    %v404 = vld [vmem:[#allocation8 + $0xa0] sm:$0xff]
    %v405 = vld [vmem:[#allocation8 + $0xa8] sm:$0xff]
    %v406 = vld [vmem:[#allocation8 + $0xb0] sm:$0xff]
    %v407 = vld [vmem:[#allocation8 + $0xb8] sm:$0xff]
    %v408 = vld [vmem:[#allocation8 + $0xc0] sm:$0xff]
    %v409 = vld [vmem:[#allocation8 + $0xc8] sm:$0xff]
    %v410 = vld [vmem:[#allocation8 + $0xd0] sm:$0xff]
    %v411 = vld [vmem:[#allocation8 + $0xd8] sm:$0xff]
    %v412 = vld [vmem:[#allocation8 + $0xe0] sm:$0xff]
    %v413 = vld [vmem:[#allocation8 + $0xe8] sm:$0xff]
    %v414 = vld [vmem:[#allocation8 + $0xf0] sm:$0xff]
    %v415 = vld [vmem:[#allocation8 + $0xf8] sm:$0xff]
    %v416 = vld [vmem:[#allocation8 + $0x100] sm:$0xff]
    %v417 = vld [vmem:[#allocation8 + $0x108] sm:$0xff]
    %v418 = vld [vmem:[#allocation8 + $0x110] sm:$0xff]
    %v419 = vld [vmem:[#allocation8 + $0x118] sm:$0xff]
    %v420 = vld [vmem:[#allocation8 + $0x120] sm:$0xff]
    %v421 = vld [vmem:[#allocation8 + $0x128] sm:$0xff]
    %v422 = vld [vmem:[#allocation8 + $0x130] sm:$0xff]
    %v423 = vld [vmem:[#allocation8 + $0x138] sm:$0xff]
    %v424 = vld [vmem:[#allocation8 + $0x140] sm:$0xff]
    %v425 = vld [vmem:[#allocation8 + $0x148] sm:$0xff]
    %v426 = vld [vmem:[#allocation8 + $0x150] sm:$0xff]
    %v427 = vld [vmem:[#allocation8 + $0x158] sm:$0xff]
    %v428 = vld [vmem:[#allocation8 + $0x160] sm:$0xff]
    %v429 = vld [vmem:[#allocation8 + $0x168] sm:$0xff]
    %v430 = vld [vmem:[#allocation8 + $0x170] sm:$0xff]
    %v431 = vld [vmem:[#allocation8 + $0x178] sm:$0xff]
    %v432 = vld [vmem:[#allocation8 + $0x180] sm:$0xff]
    %v433 = vld [vmem:[#allocation8 + $0x188] sm:$0xff]
    %v434 = vld [vmem:[#allocation8 + $0x190] sm:$0xff]
    %v435 = vld [vmem:[#allocation8 + $0x198] sm:$0xff]
    %v436 = vld [vmem:[#allocation8 + $0x1a0] sm:$0xff]
    %v437 = vld [vmem:[#allocation8 + $0x1a8] sm:$0xff]
    %v438 = vld [vmem:[#allocation8 + $0x1b0] sm:$0xff]
    %v439 = vld [vmem:[#allocation8 + $0x1b8] sm:$0xff]
    %v440 = vld [vmem:[#allocation8 + $0x1c0] sm:$0xff]
    %v441 = vld [vmem:[#allocation8 + $0x1c8] sm:$0xff]
    %v442 = vld [vmem:[#allocation8 + $0x1d0] sm:$0xff]
    %v443 = vld [vmem:[#allocation8 + $0x1d8] sm:$0xff]
    %v444 = vld [vmem:[#allocation8 + $0x1e0] sm:$0xff]
    %v445 = vld [vmem:[#allocation8 + $0x1e8] sm:$0xff]
    %v446 = vld [vmem:[#allocation8 + $0x1f0] sm:$0xff]
    %v447 = vld [vmem:[#allocation8 + $0x1f8] sm:$0xff]
    %v448 = vld [vmem:[#allocation8 + $0x200] sm:$0xff]
    %v449 = vld [vmem:[#allocation8 + $0x208] sm:$0xff]
    %v450 = vld [vmem:[#allocation8 + $0x210] sm:$0xff]
    %v451 = vld [vmem:[#allocation8 + $0x218] sm:$0xff]
    %v452 = vld [vmem:[#allocation8 + $0x220] sm:$0xff]
    %v453 = vld [vmem:[#allocation8 + $0x228] sm:$0xff]
    %v454 = vld [vmem:[#allocation8 + $0x230] sm:$0xff]
    %v455 = vld [vmem:[#allocation8 + $0x238] sm:$0xff]
    %v456 = vld [vmem:[#allocation8 + $0x240] sm:$0xff]
    %v457 = vld [vmem:[#allocation8 + $0x248] sm:$0xff]
    %v458 = vld [vmem:[#allocation8 + $0x250] sm:$0xff]
    %v459 = vld [vmem:[#allocation8 + $0x258] sm:$0xff]
    %v460 = vld [vmem:[#allocation8 + $0x260] sm:$0xff]
    %v461 = vld [vmem:[#allocation8 + $0x268] sm:$0xff]
    %v462 = vld [vmem:[#allocation8 + $0x270] sm:$0xff]
    %v463 = vld [vmem:[#allocation8 + $0x278] sm:$0xff]
    %v464 = vld [vmem:[#allocation8 + $0x280] sm:$0xff]
    %v465 = vld [vmem:[#allocation8 + $0x288] sm:$0xff]
    %v466 = vld [vmem:[#allocation8 + $0x290] sm:$0xff]
    %v467 = vld [vmem:[#allocation8 + $0x298] sm:$0xff]
    %v468 = vld [vmem:[#allocation8 + $0x2a0] sm:$0xff]
    %v469 = vld [vmem:[#allocation8 + $0x2a8] sm:$0xff]
    %v470 = vld [vmem:[#allocation8 + $0x2b0] sm:$0xff]
    %v471 = vld [vmem:[#allocation8 + $0x2b8] sm:$0xff]
    %v472 = vld [vmem:[#allocation8 + $0x2c0] sm:$0xff]
    %v473 = vld [vmem:[#allocation8 + $0x2c8] sm:$0xff]
    %v474 = vld [vmem:[#allocation8 + $0x2d0] sm:$0xff]
    %v475 = vld [vmem:[#allocation8 + $0x2d8] sm:$0xff]
    %v476 = vld [vmem:[#allocation8 + $0x2e0] sm:$0xff]
    %v477 = vld [vmem:[#allocation8 + $0x2e8] sm:$0xff]
    %v478 = vld [vmem:[#allocation8 + $0x2f0] sm:$0xff]
    %v479 = vld [vmem:[#allocation8 + $0x2f8] sm:$0xff]
    %v480 = vld [vmem:[#allocation8 + $0x300] sm:$0xff]
    %v481 = vld [vmem:[#allocation8 + $0x308] sm:$0xff]
    %v482 = vld [vmem:[#allocation8 + $0x310] sm:$0xff]
    %v483 = vld [vmem:[#allocation8 + $0x318] sm:$0xff]
    %v484 = vld [vmem:[#allocation8 + $0x320] sm:$0xff]
    %v485 = vld [vmem:[#allocation8 + $0x328] sm:$0xff]
    %v486 = vld [vmem:[#allocation8 + $0x330] sm:$0xff]
    %v487 = vld [vmem:[#allocation8 + $0x338] sm:$0xff]
    %v488 = vld [vmem:[#allocation8 + $0x340] sm:$0xff]
    %v489 = vld [vmem:[#allocation8 + $0x348] sm:$0xff]
    %v490 = vld [vmem:[#allocation8 + $0x350] sm:$0xff]
    %v491 = vld [vmem:[#allocation8 + $0x358] sm:$0xff]
    %v492 = vld [vmem:[#allocation8 + $0x360] sm:$0xff]
    %v493 = vld [vmem:[#allocation8 + $0x368] sm:$0xff]
    %v494 = vld [vmem:[#allocation8 + $0x370] sm:$0xff]
    %v495 = vld [vmem:[#allocation8 + $0x378] sm:$0xff]
    %v496 = vld [vmem:[#allocation8 + $0x380] sm:$0xff]
    %v497 = vld [vmem:[#allocation8 + $0x388] sm:$0xff]
    %v498 = vld [vmem:[#allocation8 + $0x390] sm:$0xff]
    %v499 = vld [vmem:[#allocation8 + $0x398] sm:$0xff]
    %v500 = vld [vmem:[#allocation8 + $0x3a0] sm:$0xff]
    %v501 = vld [vmem:[#allocation8 + $0x3a8] sm:$0xff]
    %v502 = vld [vmem:[#allocation8 + $0x3b0] sm:$0xff]
    %v503 = vld [vmem:[#allocation8 + $0x3b8] sm:$0xff]
    %v504 = vld [vmem:[#allocation8 + $0x3c0] sm:$0xff]
    %v505 = vld [vmem:[#allocation8 + $0x3c8] sm:$0xff]
    %v506 = vld [vmem:[#allocation8 + $0x3d0] sm:$0xff]
    %v507 = vld [vmem:[#allocation8 + $0x3d8] sm:$0xff]
    %v508 = vld [vmem:[#allocation8 + $0x3e0] sm:$0xff]
    %v509 = vld [vmem:[#allocation8 + $0x3e8] sm:$0xff]
    %v510 = vld [vmem:[#allocation8 + $0x3f0] sm:$0xff]
    %v511 = vld [vmem:[#allocation8 + $0x3f8] sm:$0xff]
    %v512 = vld [vmem:[#allocation8 + $0x400] sm:$0xff]
    %v513 = vld [vmem:[#allocation8 + $0x408] sm:$0xff]
    %v514 = vld [vmem:[#allocation8 + $0x410] sm:$0xff]
    %v515 = vld [vmem:[#allocation8 + $0x418] sm:$0xff]
    %v516 = vld [vmem:[#allocation8 + $0x420] sm:$0xff]
    %v517 = vld [vmem:[#allocation8 + $0x428] sm:$0xff]
    %v518 = vld [vmem:[#allocation8 + $0x430] sm:$0xff]
    %v519 = vld [vmem:[#allocation8 + $0x438] sm:$0xff]
    %v520 = vld [vmem:[#allocation8 + $0x440] sm:$0xff]
    %v521 = vld [vmem:[#allocation8 + $0x448] sm:$0xff]
    %v522 = vld [vmem:[#allocation8 + $0x450] sm:$0xff]
    %v523 = vld [vmem:[#allocation8 + $0x458] sm:$0xff]
    %v524 = vld [vmem:[#allocation8 + $0x460] sm:$0xff]
    %v525 = vld [vmem:[#allocation8 + $0x468] sm:$0xff]
    %v526 = vld [vmem:[#allocation8 + $0x470] sm:$0xff]
    %v527 = vld [vmem:[#allocation8 + $0x478] sm:$0xff]
    %v528 = vld [vmem:[#allocation8 + $0x480] sm:$0xff]
    %v529 = vld [vmem:[#allocation8 + $0x488] sm:$0xff]
    %v530 = vld [vmem:[#allocation8 + $0x490] sm:$0xff]
    %v531 = vld [vmem:[#allocation8 + $0x498] sm:$0xff]
    %v532 = vld [vmem:[#allocation8 + $0x4a0] sm:$0xff]
    %v533 = vld [vmem:[#allocation8 + $0x4a8] sm:$0xff]
    %v534 = vld [vmem:[#allocation8 + $0x4b0] sm:$0xff]
    %v535 = vld [vmem:[#allocation8 + $0x4b8] sm:$0xff]
    %v536 = vld [vmem:[#allocation8 + $0x4c0] sm:$0xff]
    %v537 = vld [vmem:[#allocation8 + $0x4c8] sm:$0xff]
    %v538 = vld [vmem:[#allocation8 + $0x4d0] sm:$0xff]
    %v539 = vld [vmem:[#allocation8 + $0x4d8] sm:$0xff]
    %v540 = vld [vmem:[#allocation8 + $0x4e0] sm:$0xff]
    %v541 = vld [vmem:[#allocation8 + $0x4e8] sm:$0xff]
    %v542 = vld [vmem:[#allocation8 + $0x4f0] sm:$0xff]
    %v543 = vld [vmem:[#allocation8 + $0x4f8] sm:$0xff]
    %v544 = vld [vmem:[#allocation8 + $0x500] sm:$0xff]
    %v545 = vld [vmem:[#allocation8 + $0x508] sm:$0xff]
    %v546 = vld [vmem:[#allocation8 + $0x510] sm:$0xff]
    %v547 = vld [vmem:[#allocation8 + $0x518] sm:$0xff]
    %v548 = vld [vmem:[#allocation8 + $0x520] sm:$0xff]
    %v549 = vld [vmem:[#allocation8 + $0x528] sm:$0xff]
    %v550 = vld [vmem:[#allocation8 + $0x530] sm:$0xff]
    %v551 = vld [vmem:[#allocation8 + $0x538] sm:$0xff]
    %v552 = vld [vmem:[#allocation8 + $0x540] sm:$0xff]
    %v553 = vld [vmem:[#allocation8 + $0x548] sm:$0xff]
    %v554 = vld [vmem:[#allocation8 + $0x550] sm:$0xff]
    %v555 = vld [vmem:[#allocation8 + $0x558] sm:$0xff]
    %v556 = vld [vmem:[#allocation8 + $0x560] sm:$0xff]
    %v557 = vld [vmem:[#allocation8 + $0x568] sm:$0xff]
    %v558 = vld [vmem:[#allocation8 + $0x570] sm:$0xff]
    %v559 = vld [vmem:[#allocation8 + $0x578] sm:$0xff]
    %v560 = vld [vmem:[#allocation8 + $0x580] sm:$0xff]
    %v561 = vld [vmem:[#allocation8 + $0x588] sm:$0xff]
    %v562 = vld [vmem:[#allocation8 + $0x590] sm:$0xff]
    %v563 = vld [vmem:[#allocation8 + $0x598] sm:$0xff]
    %v564 = vld [vmem:[#allocation8 + $0x5a0] sm:$0xff]
    %v565 = vld [vmem:[#allocation8 + $0x5a8] sm:$0xff]
    %v566 = vld [vmem:[#allocation8 + $0x5b0] sm:$0xff]
    %v567 = vld [vmem:[#allocation8 + $0x5b8] sm:$0xff]
    %v568 = vld [vmem:[#allocation8 + $0x5c0] sm:$0xff]
    %v569 = vld [vmem:[#allocation8 + $0x5c8] sm:$0xff]
    %v570 = vld [vmem:[#allocation8 + $0x5d0] sm:$0xff]
    %v571 = vld [vmem:[#allocation8 + $0x5d8] sm:$0xff]
    %v572 = vld [vmem:[#allocation8 + $0x5e0] sm:$0xff]
    %v573 = vld [vmem:[#allocation8 + $0x5e8] sm:$0xff]
    %v574 = vld [vmem:[#allocation8 + $0x5f0] sm:$0xff]
    %v575 = vld [vmem:[#allocation8 + $0x5f8] sm:$0xff]
    %v576 = vld [vmem:[#allocation8 + $0x600] sm:$0xff]
    %v577 = vld [vmem:[#allocation8 + $0x608] sm:$0xff]
    %v578 = vld [vmem:[#allocation8 + $0x610] sm:$0xff]
    %v579 = vld [vmem:[#allocation8 + $0x618] sm:$0xff]
    %v580 = vld [vmem:[#allocation8 + $0x620] sm:$0xff]
    %v581 = vld [vmem:[#allocation8 + $0x628] sm:$0xff]
    %v582 = vld [vmem:[#allocation8 + $0x630] sm:$0xff]
    %v583 = vld [vmem:[#allocation8 + $0x638] sm:$0xff]
    %v584 = vld [vmem:[#allocation8 + $0x640] sm:$0xff]
    %v585 = vld [vmem:[#allocation8 + $0x648] sm:$0xff]
    %v586 = vld [vmem:[#allocation8 + $0x650] sm:$0xff]
    %v587 = vld [vmem:[#allocation8 + $0x658] sm:$0xff]
    %v588 = vld [vmem:[#allocation8 + $0x660] sm:$0xff]
    %v589 = vld [vmem:[#allocation8 + $0x668] sm:$0xff]
    %v590 = vld [vmem:[#allocation8 + $0x670] sm:$0xff]
    %v591 = vld [vmem:[#allocation8 + $0x678] sm:$0xff]
    %v592 = vld [vmem:[#allocation8 + $0x680] sm:$0xff]
    %v593 = vld [vmem:[#allocation8 + $0x688] sm:$0xff]
    %v594 = vld [vmem:[#allocation8 + $0x690] sm:$0xff]
    %v595 = vld [vmem:[#allocation8 + $0x698] sm:$0xff]
    %v596 = vld [vmem:[#allocation8 + $0x6a0] sm:$0xff]
    %v597 = vld [vmem:[#allocation8 + $0x6a8] sm:$0xff]
    %v598 = vld [vmem:[#allocation8 + $0x6b0] sm:$0xff]
    %v599 = vld [vmem:[#allocation8 + $0x6b8] sm:$0xff]
    %v600 = vld [vmem:[#allocation8 + $0x6c0] sm:$0xff]
    %v601 = vld [vmem:[#allocation8 + $0x6c8] sm:$0xff]
    %v602 = vld [vmem:[#allocation8 + $0x6d0] sm:$0xff]
    %v603 = vld [vmem:[#allocation8 + $0x6d8] sm:$0xff]
    %v604 = vld [vmem:[#allocation8 + $0x6e0] sm:$0xff]
    %v605 = vld [vmem:[#allocation8 + $0x6e8] sm:$0xff]
    %v606 = vld [vmem:[#allocation8 + $0x6f0] sm:$0xff]
    %v607 = vld [vmem:[#allocation8 + $0x6f8] sm:$0xff]
    %v608 = vld [vmem:[#allocation8 + $0x700] sm:$0xff]
    %v609 = vld [vmem:[#allocation8 + $0x708] sm:$0xff]
    %v610 = vld [vmem:[#allocation8 + $0x710] sm:$0xff]
    %v611 = vld [vmem:[#allocation8 + $0x718] sm:$0xff]
    %v612 = vld [vmem:[#allocation8 + $0x720] sm:$0xff]
    %v613 = vld [vmem:[#allocation8 + $0x728] sm:$0xff]
    %v614 = vld [vmem:[#allocation8 + $0x730] sm:$0xff]
    %v615 = vld [vmem:[#allocation8 + $0x738] sm:$0xff]
    %v616 = vld [vmem:[#allocation8 + $0x740] sm:$0xff]
    %v617 = vld [vmem:[#allocation8 + $0x748] sm:$0xff]
    %v618 = vld [vmem:[#allocation8 + $0x750] sm:$0xff]
    %v619 = vld [vmem:[#allocation8 + $0x758] sm:$0xff]
    %v620 = vld [vmem:[#allocation8 + $0x760] sm:$0xff]
    %v621 = vld [vmem:[#allocation8 + $0x768] sm:$0xff]
    %v622 = vld [vmem:[#allocation8 + $0x770] sm:$0xff]
    %v623 = vld [vmem:[#allocation8 + $0x778] sm:$0xff]
    %v624 = vld [vmem:[#allocation8 + $0x780] sm:$0xff]
    %v625 = vld [vmem:[#allocation8 + $0x788] sm:$0xff]
    %v626 = vld [vmem:[#allocation8 + $0x790] sm:$0xff]
    %v627 = vld [vmem:[#allocation8 + $0x798] sm:$0xff]
    %v628 = vld [vmem:[#allocation8 + $0x7a0] sm:$0xff]
    %v629 = vld [vmem:[#allocation8 + $0x7a8] sm:$0xff]
    %v630 = vld [vmem:[#allocation8 + $0x7b0] sm:$0xff]
    %v631 = vld [vmem:[#allocation8 + $0x7b8] sm:$0xff]
    %v632 = vld [vmem:[#allocation8 + $0x7c0] sm:$0xff]
    %v633 = vld [vmem:[#allocation8 + $0x7c8] sm:$0xff]
    %v634 = vld [vmem:[#allocation8 + $0x7d0] sm:$0xff]
    %v635 = vld [vmem:[#allocation8 + $0x7d8] sm:$0xff]
    %v636 = vld [vmem:[#allocation8 + $0x7e0] sm:$0xff]
    %v637 = vld [vmem:[#allocation8 + $0x7e8] sm:$0xff]
    %v638 = vld [vmem:[#allocation8 + $0x7f0] sm:$0xff]
    %v639 = vld [vmem:[#allocation8 + $0x7f8] sm:$0xff]
    %v640 = vld [vmem:[#allocation8 + $0x800] sm:$0xff]
    %v641 = vld [vmem:[#allocation8 + $0x808] sm:$0xff]
    %v642 = vld [vmem:[#allocation8 + $0x810] sm:$0xff]
    %v643 = vld [vmem:[#allocation8 + $0x818] sm:$0xff]
    %v644 = vld [vmem:[#allocation8 + $0x820] sm:$0xff]
    %v645 = vld [vmem:[#allocation8 + $0x828] sm:$0xff]
    %v646 = vld [vmem:[#allocation8 + $0x830] sm:$0xff]
    %v647 = vld [vmem:[#allocation8 + $0x838] sm:$0xff]
    %v648 = vld [vmem:[#allocation8 + $0x840] sm:$0xff]
    %v649 = vld [vmem:[#allocation8 + $0x848] sm:$0xff]
    %v650 = vld [vmem:[#allocation8 + $0x850] sm:$0xff]
    %v651 = vld [vmem:[#allocation8 + $0x858] sm:$0xff]
    %v652 = vld [vmem:[#allocation8 + $0x860] sm:$0xff]
    %v653 = vld [vmem:[#allocation8 + $0x868] sm:$0xff]
    %v654 = vld [vmem:[#allocation8 + $0x870] sm:$0xff]
    %v655 = vld [vmem:[#allocation8 + $0x878] sm:$0xff]
    %v656 = vld [vmem:[#allocation8 + $0x880] sm:$0xff]
    %v657 = vld [vmem:[#allocation8 + $0x888] sm:$0xff]
    %v658 = vld [vmem:[#allocation8 + $0x890] sm:$0xff]
    %v659 = vld [vmem:[#allocation8 + $0x898] sm:$0xff]
    %v660 = vld [vmem:[#allocation8 + $0x8a0] sm:$0xff]
    %v661 = vld [vmem:[#allocation8 + $0x8a8] sm:$0xff]
    %v662 = vld [vmem:[#allocation8 + $0x8b0] sm:$0xff]
    %v663 = vld [vmem:[#allocation8 + $0x8b8] sm:$0xff]
    %v664 = vld [vmem:[#allocation8 + $0x8c0] sm:$0xff]
    %v665 = vld [vmem:[#allocation8 + $0x8c8] sm:$0xff]
    %v666 = vld [vmem:[#allocation8 + $0x8d0] sm:$0xff]
    %v667 = vld [vmem:[#allocation8 + $0x8d8] sm:$0xff]
    %v668 = vld [vmem:[#allocation8 + $0x8e0] sm:$0xff]
    %v669 = vld [vmem:[#allocation8 + $0x8e8] sm:$0xff]
    %v670 = vld [vmem:[#allocation8 + $0x8f0] sm:$0xff]
    %v671 = vld [vmem:[#allocation8 + $0x8f8] sm:$0xff]
    %v672 = vld [vmem:[#allocation10] sm:$0x3f]
    %v673 = vld [vmem:[#allocation2] sm:$0xff]
    %v674 = vld [vmem:[#allocation2 + $0x8] sm:$0xff]
    %v675 = vld [vmem:[#allocation2 + $0x10] sm:$0xff]
    %v676 = vld [vmem:[#allocation2 + $0x18] sm:$0xff]
    %v677 = vld [vmem:[#allocation2 + $0x20] sm:$0xff]
    %v678 = vld [vmem:[#allocation2 + $0x28] sm:$0xff]
    %v679 = vld [vmem:[#allocation2 + $0x30] sm:$0xff]
    %v680 = vld [vmem:[#allocation2 + $0x38] sm:$0xff]
    %v681 = vld [vmem:[#allocation2 + $0x40] sm:$0xff]
    %v682 = vld [vmem:[#allocation2 + $0x48] sm:$0xff]
    %v683 = vld [vmem:[#allocation2 + $0x50] sm:$0xff]
    %v684 = vld [vmem:[#allocation2 + $0x58] sm:$0xff]
    %v685 = vpack.c.bf16 %v679, %v673
    %v686 = vpack.c.bf16 %v680, %v674
    %v687 = vpack.c.bf16 %v681, %v675
    %v688 = vpack.c.bf16 %v682, %v676
    %v689 = vpack.c.bf16 %v683, %v677
    %v690 = vpack.c.bf16 %v684, %v678
    %v692 = vperm.slane %v383, 0
    %v693 = vperm.slane %v383, 1
    %v694 = vperm.slane %v383, 2
    %v695 = vperm.slane %v383, 3
    %v696 = vperm.slane %v383, 4
    %v697 = vperm.slane %v383, 5
    %v992 = vunpack.c.l.b16 %v95
    %v993 = vunpack.c.h.b16 %v95
    %v994 = vunpack.c.l.b16 %v96
    %v995 = vunpack.c.h.b16 %v96
    %v996 = vunpack.c.l.b16 %v97
    %v997 = vunpack.c.h.b16 %v97
    %v998 = vunpack.c.l.b16 %v98
    %v999 = vunpack.c.h.b16 %v98
    %v1000 = vunpack.c.l.b16 %v99
    %v1001 = vunpack.c.h.b16 %v99
    %v1002 = vunpack.c.l.b16 %v100
    %v1003 = vunpack.c.h.b16 %v100
    %v1004 = vunpack.c.l.b16 %v101
    %v1005 = vunpack.c.h.b16 %v101
    %v1006 = vunpack.c.l.b16 %v102
    %v1007 = vunpack.c.h.b16 %v102
    %v1008 = vunpack.c.l.b16 %v103
    %v1009 = vunpack.c.h.b16 %v103
    %v1010 = vunpack.c.l.b16 %v104
    %v1011 = vunpack.c.h.b16 %v104
    %v1012 = vunpack.c.l.b16 %v105
    %v1013 = vunpack.c.h.b16 %v105
    %v1014 = vunpack.c.l.b16 %v106
    %v1015 = vunpack.c.h.b16 %v106
    %v1016 = vunpack.c.l.b16 %v107
    %v1017 = vunpack.c.h.b16 %v107
    %v1018 = vunpack.c.l.b16 %v108
    %v1019 = vunpack.c.h.b16 %v108
    %v1020 = vunpack.c.l.b16 %v109
    %v1021 = vunpack.c.h.b16 %v109
    %v1022 = vunpack.c.l.b16 %v110
    %v1023 = vunpack.c.h.b16 %v110
    %v1024 = vunpack.c.l.b16 %v111
    %v1025 = vunpack.c.h.b16 %v111
    %v1026 = vunpack.c.l.b16 %v112
    %v1027 = vunpack.c.h.b16 %v112
    %v1028 = vunpack.c.l.b16 %v113
    %v1029 = vunpack.c.h.b16 %v113
    %v1030 = vunpack.c.l.b16 %v114
    %v1031 = vunpack.c.h.b16 %v114
    %v1032 = vunpack.c.l.b16 %v115
    %v1033 = vunpack.c.h.b16 %v115
    %v1034 = vunpack.c.l.b16 %v116
    %v1035 = vunpack.c.h.b16 %v116
    %v1036 = vunpack.c.l.b16 %v117
    %v1037 = vunpack.c.h.b16 %v117
    %v1038 = vunpack.c.l.b16 %v118
    %v1039 = vunpack.c.h.b16 %v118
    %v1040 = vunpack.c.l.b16 %v119
    %v1041 = vunpack.c.h.b16 %v119
    %v1042 = vunpack.c.l.b16 %v120
    %v1043 = vunpack.c.h.b16 %v120
    %v1044 = vunpack.c.l.b16 %v121
    %v1045 = vunpack.c.h.b16 %v121
    %v1046 = vunpack.c.l.b16 %v122
    %v1047 = vunpack.c.h.b16 %v122
    %v1048 = vunpack.c.l.b16 %v123
    %v1049 = vunpack.c.h.b16 %v123
    %v1050 = vunpack.c.l.b16 %v124
    %v1051 = vunpack.c.h.b16 %v124
    %v1052 = vunpack.c.l.b16 %v125
    %v1053 = vunpack.c.h.b16 %v125
    %v1054 = vunpack.c.l.b16 %v126
    %v1055 = vunpack.c.h.b16 %v126
    %v1056 = vunpack.c.l.b16 %v127
    %v1057 = vunpack.c.h.b16 %v127
    %v1058 = vunpack.c.l.b16 %v128
    %v1059 = vunpack.c.h.b16 %v128
    %v1060 = vunpack.c.l.b16 %v129
    %v1061 = vunpack.c.h.b16 %v129
    %v1062 = vunpack.c.l.b16 %v130
    %v1063 = vunpack.c.h.b16 %v130
    %v1064 = vunpack.c.l.b16 %v131
    %v1065 = vunpack.c.h.b16 %v131
    %v1066 = vunpack.c.l.b16 %v132
    %v1067 = vunpack.c.h.b16 %v132
    %v1068 = vunpack.c.l.b16 %v133
    %v1069 = vunpack.c.h.b16 %v133
    %v1070 = vunpack.c.l.b16 %v134
    %v1071 = vunpack.c.h.b16 %v134
    %v1072 = vunpack.c.l.b16 %v135
    %v1073 = vunpack.c.h.b16 %v135
    %v1074 = vunpack.c.l.b16 %v136
    %v1075 = vunpack.c.h.b16 %v136
    %v1076 = vunpack.c.l.b16 %v137
    %v1077 = vunpack.c.h.b16 %v137
    %v1078 = vunpack.c.l.b16 %v138
    %v1079 = vunpack.c.h.b16 %v138
    %v1080 = vunpack.c.l.b16 %v139
    %v1081 = vunpack.c.h.b16 %v139
    %v1082 = vunpack.c.l.b16 %v140
    %v1083 = vunpack.c.h.b16 %v140
    %v1084 = vunpack.c.l.b16 %v141
    %v1085 = vunpack.c.h.b16 %v141
    %v1086 = vunpack.c.l.b16 %v142
    %v1087 = vunpack.c.h.b16 %v142
    %v1088 = vunpack.c.l.b16 %v143
    %v1089 = vunpack.c.h.b16 %v143
    %v1090 = vunpack.c.l.b16 %v144
    %v1091 = vunpack.c.h.b16 %v144
    %v1092 = vunpack.c.l.b16 %v145
    %v1093 = vunpack.c.h.b16 %v145
    %v1094 = vunpack.c.l.b16 %v146
    %v1095 = vunpack.c.h.b16 %v146
    %v1096 = vunpack.c.l.b16 %v147
    %v1097 = vunpack.c.h.b16 %v147
    %v1098 = vunpack.c.l.b16 %v148
    %v1099 = vunpack.c.h.b16 %v148
    %v1100 = vunpack.c.l.b16 %v149
    %v1101 = vunpack.c.h.b16 %v149
    %v1102 = vunpack.c.l.b16 %v150
    %v1103 = vunpack.c.h.b16 %v150
    %v1104 = vunpack.c.l.b16 %v151
    %v1105 = vunpack.c.h.b16 %v151
    %v1106 = vunpack.c.l.b16 %v152
    %v1107 = vunpack.c.h.b16 %v152
    %v1108 = vunpack.c.l.b16 %v153
    %v1109 = vunpack.c.h.b16 %v153
    %v1110 = vunpack.c.l.b16 %v154
    %v1111 = vunpack.c.h.b16 %v154
    %v1112 = vunpack.c.l.b16 %v155
    %v1113 = vunpack.c.h.b16 %v155
    %v1114 = vunpack.c.l.b16 %v156
    %v1115 = vunpack.c.h.b16 %v156
    %v1116 = vunpack.c.l.b16 %v157
    %v1117 = vunpack.c.h.b16 %v157
    %v1118 = vunpack.c.l.b16 %v158
    %v1119 = vunpack.c.h.b16 %v158
    %v1120 = vunpack.c.l.b16 %v159
    %v1121 = vunpack.c.h.b16 %v159
    %v1122 = vunpack.c.l.b16 %v160
    %v1123 = vunpack.c.h.b16 %v160
    %v1124 = vunpack.c.l.b16 %v161
    %v1125 = vunpack.c.h.b16 %v161
    %v1126 = vunpack.c.l.b16 %v162
    %v1127 = vunpack.c.h.b16 %v162
    %v1128 = vunpack.c.l.b16 %v163
    %v1129 = vunpack.c.h.b16 %v163
    %v1130 = vunpack.c.l.b16 %v164
    %v1131 = vunpack.c.h.b16 %v164
    %v1132 = vunpack.c.l.b16 %v165
    %v1133 = vunpack.c.h.b16 %v165
    %v1134 = vunpack.c.l.b16 %v166
    %v1135 = vunpack.c.h.b16 %v166
    %v1136 = vunpack.c.l.b16 %v167
    %v1137 = vunpack.c.h.b16 %v167
    %v1138 = vunpack.c.l.b16 %v168
    %v1139 = vunpack.c.h.b16 %v168
    %v1140 = vunpack.c.l.b16 %v169
    %v1141 = vunpack.c.h.b16 %v169
    %v1142 = vunpack.c.l.b16 %v170
    %v1143 = vunpack.c.h.b16 %v170
    %v1144 = vunpack.c.l.b16 %v171
    %v1145 = vunpack.c.h.b16 %v171
    %v1146 = vunpack.c.l.b16 %v172
    %v1147 = vunpack.c.h.b16 %v172
    %v1148 = vunpack.c.l.b16 %v173
    %v1149 = vunpack.c.h.b16 %v173
    %v1150 = vunpack.c.l.b16 %v174
    %v1151 = vunpack.c.h.b16 %v174
    %v1152 = vunpack.c.l.b16 %v175
    %v1153 = vunpack.c.h.b16 %v175
    %v1154 = vunpack.c.l.b16 %v176
    %v1155 = vunpack.c.h.b16 %v176
    %v1156 = vunpack.c.l.b16 %v177
    %v1157 = vunpack.c.h.b16 %v177
    %v1158 = vunpack.c.l.b16 %v178
    %v1159 = vunpack.c.h.b16 %v178
    %v1160 = vunpack.c.l.b16 %v179
    %v1161 = vunpack.c.h.b16 %v179
    %v1162 = vunpack.c.l.b16 %v180
    %v1163 = vunpack.c.h.b16 %v180
    %v1164 = vunpack.c.l.b16 %v181
    %v1165 = vunpack.c.h.b16 %v181
    %v1166 = vunpack.c.l.b16 %v182
    %v1167 = vunpack.c.h.b16 %v182
    %v1168 = vunpack.c.l.b16 %v183
    %v1169 = vunpack.c.h.b16 %v183
    %v1170 = vunpack.c.l.b16 %v184
    %v1171 = vunpack.c.h.b16 %v184
    %v1172 = vunpack.c.l.b16 %v185
    %v1173 = vunpack.c.h.b16 %v185
    %v1174 = vunpack.c.l.b16 %v186
    %v1175 = vunpack.c.h.b16 %v186
    %v1176 = vunpack.c.l.b16 %v187
    %v1177 = vunpack.c.h.b16 %v187
    %v1178 = vunpack.c.l.b16 %v188
    %v1179 = vunpack.c.h.b16 %v188
    %v1180 = vunpack.c.l.b16 %v189
    %v1181 = vunpack.c.h.b16 %v189
    %v1182 = vunpack.c.l.b16 %v190
    %v1183 = vunpack.c.h.b16 %v190
    %v1184 = vunpack.c.l.b16 %v191
    %v1185 = vunpack.c.h.b16 %v191
    %v1186 = vunpack.c.l.b16 %v192
    %v1187 = vunpack.c.h.b16 %v192
    %v1188 = vunpack.c.l.b16 %v193
    %v1189 = vunpack.c.h.b16 %v193
    %v1190 = vunpack.c.l.b16 %v194
    %v1191 = vunpack.c.h.b16 %v194
    %v1192 = vunpack.c.l.b16 %v195
    %v1193 = vunpack.c.h.b16 %v195
    %v1194 = vunpack.c.l.b16 %v196
    %v1195 = vunpack.c.h.b16 %v196
    %v1196 = vunpack.c.l.b16 %v197
    %v1197 = vunpack.c.h.b16 %v197
    %v1198 = vunpack.c.l.b16 %v198
    %v1199 = vunpack.c.h.b16 %v198
    %v1200 = vunpack.c.l.b16 %v199
    %v1201 = vunpack.c.h.b16 %v199
    %v1202 = vunpack.c.l.b16 %v200
    %v1203 = vunpack.c.h.b16 %v200
    %v1204 = vunpack.c.l.b16 %v201
    %v1205 = vunpack.c.h.b16 %v201
    %v1206 = vunpack.c.l.b16 %v202
    %v1207 = vunpack.c.h.b16 %v202
    %v1208 = vunpack.c.l.b16 %v203
    %v1209 = vunpack.c.h.b16 %v203
    %v1210 = vunpack.c.l.b16 %v204
    %v1211 = vunpack.c.h.b16 %v204
    %v1212 = vunpack.c.l.b16 %v205
    %v1213 = vunpack.c.h.b16 %v205
    %v1214 = vunpack.c.l.b16 %v206
    %v1215 = vunpack.c.h.b16 %v206
    %v1216 = vunpack.c.l.b16 %v207
    %v1217 = vunpack.c.h.b16 %v207
    %v1218 = vunpack.c.l.b16 %v208
    %v1219 = vunpack.c.h.b16 %v208
    %v1220 = vunpack.c.l.b16 %v209
    %v1221 = vunpack.c.h.b16 %v209
    %v1222 = vunpack.c.l.b16 %v210
    %v1223 = vunpack.c.h.b16 %v210
    %v1224 = vunpack.c.l.b16 %v211
    %v1225 = vunpack.c.h.b16 %v211
    %v1226 = vunpack.c.l.b16 %v212
    %v1227 = vunpack.c.h.b16 %v212
    %v1228 = vunpack.c.l.b16 %v213
    %v1229 = vunpack.c.h.b16 %v213
    %v1230 = vunpack.c.l.b16 %v214
    %v1231 = vunpack.c.h.b16 %v214
    %v1232 = vunpack.c.l.b16 %v215
    %v1233 = vunpack.c.h.b16 %v215
    %v1234 = vunpack.c.l.b16 %v216
    %v1235 = vunpack.c.h.b16 %v216
    %v1236 = vunpack.c.l.b16 %v217
    %v1237 = vunpack.c.h.b16 %v217
    %v1238 = vunpack.c.l.b16 %v218
    %v1239 = vunpack.c.h.b16 %v218
    %v1240 = vunpack.c.l.b16 %v219
    %v1241 = vunpack.c.h.b16 %v219
    %v1242 = vunpack.c.l.b16 %v220
    %v1243 = vunpack.c.h.b16 %v220
    %v1244 = vunpack.c.l.b16 %v221
    %v1245 = vunpack.c.h.b16 %v221
    %v1246 = vunpack.c.l.b16 %v222
    %v1247 = vunpack.c.h.b16 %v222
    %v1248 = vunpack.c.l.b16 %v223
    %v1249 = vunpack.c.h.b16 %v223
    %v1250 = vunpack.c.l.b16 %v224
    %v1251 = vunpack.c.h.b16 %v224
    %v1252 = vunpack.c.l.b16 %v225
    %v1253 = vunpack.c.h.b16 %v225
    %v1254 = vunpack.c.l.b16 %v226
    %v1255 = vunpack.c.h.b16 %v226
    %v1256 = vunpack.c.l.b16 %v227
    %v1257 = vunpack.c.h.b16 %v227
    %v1258 = vunpack.c.l.b16 %v228
    %v1259 = vunpack.c.h.b16 %v228
    %v1260 = vunpack.c.l.b16 %v229
    %v1261 = vunpack.c.h.b16 %v229
    %v1262 = vunpack.c.l.b16 %v230
    %v1263 = vunpack.c.h.b16 %v230
    %v1264 = vunpack.c.l.b16 %v231
    %v1265 = vunpack.c.h.b16 %v231
    %v1266 = vunpack.c.l.b16 %v232
    %v1267 = vunpack.c.h.b16 %v232
    %v1268 = vunpack.c.l.b16 %v233
    %v1269 = vunpack.c.h.b16 %v233
    %v1270 = vunpack.c.l.b16 %v234
    %v1271 = vunpack.c.h.b16 %v234
    %v1272 = vunpack.c.l.b16 %v235
    %v1273 = vunpack.c.h.b16 %v235
    %v1274 = vunpack.c.l.b16 %v236
    %v1275 = vunpack.c.h.b16 %v236
    %v1276 = vunpack.c.l.b16 %v237
    %v1277 = vunpack.c.h.b16 %v237
    %v1278 = vunpack.c.l.b16 %v238
    %v1279 = vunpack.c.h.b16 %v238
    %v1280 = vunpack.c.l.b16 %v239
    %v1281 = vunpack.c.h.b16 %v239
    %v1282 = vunpack.c.l.b16 %v240
    %v1283 = vunpack.c.h.b16 %v240
    %v1284 = vunpack.c.l.b16 %v241
    %v1285 = vunpack.c.h.b16 %v241
    %v1286 = vunpack.c.l.b16 %v242
    %v1287 = vunpack.c.h.b16 %v242
    %v1288 = vunpack.c.l.b16 %v243
    %v1289 = vunpack.c.h.b16 %v243
    %v1290 = vunpack.c.l.b16 %v244
    %v1291 = vunpack.c.h.b16 %v244
    %v1292 = vunpack.c.l.b16 %v245
    %v1293 = vunpack.c.h.b16 %v245
    %v1294 = vunpack.c.l.b16 %v246
    %v1295 = vunpack.c.h.b16 %v246
    %v1296 = vunpack.c.l.b16 %v247
    %v1297 = vunpack.c.h.b16 %v247
    %v1298 = vunpack.c.l.b16 %v248
    %v1299 = vunpack.c.h.b16 %v248
    %v1300 = vunpack.c.l.b16 %v249
    %v1301 = vunpack.c.h.b16 %v249
    %v1302 = vunpack.c.l.b16 %v250
    %v1303 = vunpack.c.h.b16 %v250
    %v1304 = vunpack.c.l.b16 %v251
    %v1305 = vunpack.c.h.b16 %v251
    %v1306 = vunpack.c.l.b16 %v252
    %v1307 = vunpack.c.h.b16 %v252
    %v1308 = vunpack.c.l.b16 %v253
    %v1309 = vunpack.c.h.b16 %v253
    %v1310 = vunpack.c.l.b16 %v254
    %v1311 = vunpack.c.h.b16 %v254
    %v1312 = vunpack.c.l.b16 %v255
    %v1313 = vunpack.c.h.b16 %v255
    %v1314 = vunpack.c.l.b16 %v256
    %v1315 = vunpack.c.h.b16 %v256
    %v1316 = vunpack.c.l.b16 %v257
    %v1317 = vunpack.c.h.b16 %v257
    %v1318 = vunpack.c.l.b16 %v258
    %v1319 = vunpack.c.h.b16 %v258
    %v1320 = vunpack.c.l.b16 %v259
    %v1321 = vunpack.c.h.b16 %v259
    %v1322 = vunpack.c.l.b16 %v260
    %v1323 = vunpack.c.h.b16 %v260
    %v1324 = vunpack.c.l.b16 %v261
    %v1325 = vunpack.c.h.b16 %v261
    %v1326 = vunpack.c.l.b16 %v262
    %v1327 = vunpack.c.h.b16 %v262
    %v1328 = vunpack.c.l.b16 %v263
    %v1329 = vunpack.c.h.b16 %v263
    %v1330 = vunpack.c.l.b16 %v264
    %v1331 = vunpack.c.h.b16 %v264
    %v1332 = vunpack.c.l.b16 %v265
    %v1333 = vunpack.c.h.b16 %v265
    %v1334 = vunpack.c.l.b16 %v266
    %v1335 = vunpack.c.h.b16 %v266
    %v1336 = vunpack.c.l.b16 %v267
    %v1337 = vunpack.c.h.b16 %v267
    %v1338 = vunpack.c.l.b16 %v268
    %v1339 = vunpack.c.h.b16 %v268
    %v1340 = vunpack.c.l.b16 %v269
    %v1341 = vunpack.c.h.b16 %v269
    %v1342 = vunpack.c.l.b16 %v270
    %v1343 = vunpack.c.h.b16 %v270
    %v1344 = vunpack.c.l.b16 %v271
    %v1345 = vunpack.c.h.b16 %v271
    %v1346 = vunpack.c.l.b16 %v272
    %v1347 = vunpack.c.h.b16 %v272
    %v1348 = vunpack.c.l.b16 %v273
    %v1349 = vunpack.c.h.b16 %v273
    %v1350 = vunpack.c.l.b16 %v274
    %v1351 = vunpack.c.h.b16 %v274
    %v1352 = vunpack.c.l.b16 %v275
    %v1353 = vunpack.c.h.b16 %v275
    %v1354 = vunpack.c.l.b16 %v276
    %v1355 = vunpack.c.h.b16 %v276
    %v1356 = vunpack.c.l.b16 %v277
    %v1357 = vunpack.c.h.b16 %v277
    %v1358 = vunpack.c.l.b16 %v278
    %v1359 = vunpack.c.h.b16 %v278
    %v1360 = vunpack.c.l.b16 %v279
    %v1361 = vunpack.c.h.b16 %v279
    %v1362 = vunpack.c.l.b16 %v280
    %v1363 = vunpack.c.h.b16 %v280
    %v1364 = vunpack.c.l.b16 %v281
    %v1365 = vunpack.c.h.b16 %v281
    %v1366 = vunpack.c.l.b16 %v282
    %v1367 = vunpack.c.h.b16 %v282
    %v1368 = vunpack.c.l.b16 %v283
    %v1369 = vunpack.c.h.b16 %v283
    %v1370 = vunpack.c.l.b16 %v284
    %v1371 = vunpack.c.h.b16 %v284
    %v1372 = vunpack.c.l.b16 %v285
    %v1373 = vunpack.c.h.b16 %v285
    %v1374 = vunpack.c.l.b16 %v286
    %v1375 = vunpack.c.h.b16 %v286
    %v1376 = vunpack.c.l.b16 %v287
    %v1377 = vunpack.c.h.b16 %v287
    %v1378 = vunpack.c.l.b16 %v288
    %v1379 = vunpack.c.h.b16 %v288
    %v1380 = vunpack.c.l.b16 %v289
    %v1381 = vunpack.c.h.b16 %v289
    %v1382 = vunpack.c.l.b16 %v290
    %v1383 = vunpack.c.h.b16 %v290
    %v1384 = vunpack.c.l.b16 %v291
    %v1385 = vunpack.c.h.b16 %v291
    %v1386 = vunpack.c.l.b16 %v292
    %v1387 = vunpack.c.h.b16 %v292
    %v1388 = vunpack.c.l.b16 %v293
    %v1389 = vunpack.c.h.b16 %v293
    %v1390 = vunpack.c.l.b16 %v294
    %v1391 = vunpack.c.h.b16 %v294
    %v1392 = vunpack.c.l.b16 %v295
    %v1393 = vunpack.c.h.b16 %v295
    %v1394 = vunpack.c.l.b16 %v296
    %v1395 = vunpack.c.h.b16 %v296
    %v1396 = vunpack.c.l.b16 %v297
    %v1397 = vunpack.c.h.b16 %v297
    %v1398 = vunpack.c.l.b16 %v298
    %v1399 = vunpack.c.h.b16 %v298
    %v1400 = vunpack.c.l.b16 %v299
    %v1401 = vunpack.c.h.b16 %v299
    %v1402 = vunpack.c.l.b16 %v300
    %v1403 = vunpack.c.h.b16 %v300
    %v1404 = vunpack.c.l.b16 %v301
    %v1405 = vunpack.c.h.b16 %v301
    %v1406 = vunpack.c.l.b16 %v302
    %v1407 = vunpack.c.h.b16 %v302
    %v1408 = vunpack.c.l.b16 %v303
    %v1409 = vunpack.c.h.b16 %v303
    %v1410 = vunpack.c.l.b16 %v304
    %v1411 = vunpack.c.h.b16 %v304
    %v1412 = vunpack.c.l.b16 %v305
    %v1413 = vunpack.c.h.b16 %v305
    %v1414 = vunpack.c.l.b16 %v306
    %v1415 = vunpack.c.h.b16 %v306
    %v1416 = vunpack.c.l.b16 %v307
    %v1417 = vunpack.c.h.b16 %v307
    %v1418 = vunpack.c.l.b16 %v308
    %v1419 = vunpack.c.h.b16 %v308
    %v1420 = vunpack.c.l.b16 %v309
    %v1421 = vunpack.c.h.b16 %v309
    %v1422 = vunpack.c.l.b16 %v310
    %v1423 = vunpack.c.h.b16 %v310
    %v1424 = vunpack.c.l.b16 %v311
    %v1425 = vunpack.c.h.b16 %v311
    %v1426 = vunpack.c.l.b16 %v312
    %v1427 = vunpack.c.h.b16 %v312
    %v1428 = vunpack.c.l.b16 %v313
    %v1429 = vunpack.c.h.b16 %v313
    %v1430 = vunpack.c.l.b16 %v314
    %v1431 = vunpack.c.h.b16 %v314
    %v1432 = vunpack.c.l.b16 %v315
    %v1433 = vunpack.c.h.b16 %v315
    %v1434 = vunpack.c.l.b16 %v316
    %v1435 = vunpack.c.h.b16 %v316
    %v1436 = vunpack.c.l.b16 %v317
    %v1437 = vunpack.c.h.b16 %v317
    %v1438 = vunpack.c.l.b16 %v318
    %v1439 = vunpack.c.h.b16 %v318
    %v1440 = vunpack.c.l.b16 %v319
    %v1441 = vunpack.c.h.b16 %v319
    %v1442 = vunpack.c.l.b16 %v320
    %v1443 = vunpack.c.h.b16 %v320
    %v1444 = vunpack.c.l.b16 %v321
    %v1445 = vunpack.c.h.b16 %v321
    %v1446 = vunpack.c.l.b16 %v322
    %v1447 = vunpack.c.h.b16 %v322
    %v1448 = vunpack.c.l.b16 %v323
    %v1449 = vunpack.c.h.b16 %v323
    %v1450 = vunpack.c.l.b16 %v324
    %v1451 = vunpack.c.h.b16 %v324
    %v1452 = vunpack.c.l.b16 %v325
    %v1453 = vunpack.c.h.b16 %v325
    %v1454 = vunpack.c.l.b16 %v326
    %v1455 = vunpack.c.h.b16 %v326
    %v1456 = vunpack.c.l.b16 %v327
    %v1457 = vunpack.c.h.b16 %v327
    %v1458 = vunpack.c.l.b16 %v328
    %v1459 = vunpack.c.h.b16 %v328
    %v1460 = vunpack.c.l.b16 %v329
    %v1461 = vunpack.c.h.b16 %v329
    %v1462 = vunpack.c.l.b16 %v330
    %v1463 = vunpack.c.h.b16 %v330
    %v1464 = vunpack.c.l.b16 %v331
    %v1465 = vunpack.c.h.b16 %v331
    %v1466 = vunpack.c.l.b16 %v332
    %v1467 = vunpack.c.h.b16 %v332
    %v1468 = vunpack.c.l.b16 %v333
    %v1469 = vunpack.c.h.b16 %v333
    %v1470 = vunpack.c.l.b16 %v334
    %v1471 = vunpack.c.h.b16 %v334
    %v1472 = vunpack.c.l.b16 %v335
    %v1473 = vunpack.c.h.b16 %v335
    %v1474 = vunpack.c.l.b16 %v336
    %v1475 = vunpack.c.h.b16 %v336
    %v1476 = vunpack.c.l.b16 %v337
    %v1477 = vunpack.c.h.b16 %v337
    %v1478 = vunpack.c.l.b16 %v338
    %v1479 = vunpack.c.h.b16 %v338
    %v1480 = vunpack.c.l.b16 %v339
    %v1481 = vunpack.c.h.b16 %v339
    %v1482 = vunpack.c.l.b16 %v340
    %v1483 = vunpack.c.h.b16 %v340
    %v1484 = vunpack.c.l.b16 %v341
    %v1485 = vunpack.c.h.b16 %v341
    %v1486 = vunpack.c.l.b16 %v342
    %v1487 = vunpack.c.h.b16 %v342
    %v1488 = vunpack.c.l.b16 %v343
    %v1489 = vunpack.c.h.b16 %v343
    %v1490 = vunpack.c.l.b16 %v344
    %v1491 = vunpack.c.h.b16 %v344
    %v1492 = vunpack.c.l.b16 %v345
    %v1493 = vunpack.c.h.b16 %v345
    %v1494 = vunpack.c.l.b16 %v346
    %v1495 = vunpack.c.h.b16 %v346
    %v1496 = vunpack.c.l.b16 %v347
    %v1497 = vunpack.c.h.b16 %v347
    %v1498 = vunpack.c.l.b16 %v348
    %v1499 = vunpack.c.h.b16 %v348
    %v1500 = vunpack.c.l.b16 %v349
    %v1501 = vunpack.c.h.b16 %v349
    %v1502 = vunpack.c.l.b16 %v350
    %v1503 = vunpack.c.h.b16 %v350
    %v1504 = vunpack.c.l.b16 %v351
    %v1505 = vunpack.c.h.b16 %v351
    %v1506 = vunpack.c.l.b16 %v352
    %v1507 = vunpack.c.h.b16 %v352
    %v1508 = vunpack.c.l.b16 %v353
    %v1509 = vunpack.c.h.b16 %v353
    %v1510 = vunpack.c.l.b16 %v354
    %v1511 = vunpack.c.h.b16 %v354
    %v1512 = vunpack.c.l.b16 %v355
    %v1513 = vunpack.c.h.b16 %v355
    %v1514 = vunpack.c.l.b16 %v356
    %v1515 = vunpack.c.h.b16 %v356
    %v1516 = vunpack.c.l.b16 %v357
    %v1517 = vunpack.c.h.b16 %v357
    %v1518 = vunpack.c.l.b16 %v358
    %v1519 = vunpack.c.h.b16 %v358
    %v1520 = vunpack.c.l.b16 %v359
    %v1521 = vunpack.c.h.b16 %v359
    %v1522 = vunpack.c.l.b16 %v360
    %v1523 = vunpack.c.h.b16 %v360
    %v1524 = vunpack.c.l.b16 %v361
    %v1525 = vunpack.c.h.b16 %v361
    %v1526 = vunpack.c.l.b16 %v362
    %v1527 = vunpack.c.h.b16 %v362
    %v1528 = vunpack.c.l.b16 %v363
    %v1529 = vunpack.c.h.b16 %v363
    %v1530 = vunpack.c.l.b16 %v364
    %v1531 = vunpack.c.h.b16 %v364
    %v1532 = vunpack.c.l.b16 %v365
    %v1533 = vunpack.c.h.b16 %v365
    %v1534 = vunpack.c.l.b16 %v366
    %v1535 = vunpack.c.h.b16 %v366
    %v1536 = vunpack.c.l.b16 %v367
    %v1537 = vunpack.c.h.b16 %v367
    %v1538 = vunpack.c.l.b16 %v368
    %v1539 = vunpack.c.h.b16 %v368
    %v1540 = vunpack.c.l.b16 %v369
    %v1541 = vunpack.c.h.b16 %v369
    %v1542 = vunpack.c.l.b16 %v370
    %v1543 = vunpack.c.h.b16 %v370
    %v1544 = vunpack.c.l.b16 %v371
    %v1545 = vunpack.c.h.b16 %v371
    %v1546 = vunpack.c.l.b16 %v372
    %v1547 = vunpack.c.h.b16 %v372
    %v1548 = vunpack.c.l.b16 %v373
    %v1549 = vunpack.c.h.b16 %v373
    %v1550 = vunpack.c.l.b16 %v374
    %v1551 = vunpack.c.h.b16 %v374
    %v1552 = vunpack.c.l.b16 %v375
    %v1553 = vunpack.c.h.b16 %v375
    %v1554 = vunpack.c.l.b16 %v376
    %v1555 = vunpack.c.h.b16 %v376
    %v1556 = vunpack.c.l.b16 %v377
    %v1557 = vunpack.c.h.b16 %v377
    %v1558 = vunpack.c.l.b16 %v378
    %v1559 = vunpack.c.h.b16 %v378
    %v1560 = vunpack.c.l.b16 %v379
    %v1561 = vunpack.c.h.b16 %v379
    %v1562 = vunpack.c.l.b16 %v380
    %v1563 = vunpack.c.h.b16 %v380
    %v1564 = vunpack.c.l.b16 %v381
    %v1565 = vunpack.c.h.b16 %v381
    %v1566 = vunpack.c.l.b16 %v382
    %v1567 = vunpack.c.h.b16 %v382
    %v1568 = vpack.c.b16 %v998, %v992
    %v1569 = vpack.c.b16 %v999, %v993
    %v1570 = vpack.c.b16 %v1000, %v994
    %v1571 = vpack.c.b16 %v1001, %v995
    %v1572 = vpack.c.b16 %v1002, %v996
    %v1573 = vpack.c.b16 %v1003, %v997
    %v1574 = vpack.c.b16 %v1010, %v1004
    %v1575 = vpack.c.b16 %v1011, %v1005
    %v1576 = vpack.c.b16 %v1012, %v1006
    %v1577 = vpack.c.b16 %v1013, %v1007
    %v1578 = vpack.c.b16 %v1014, %v1008
    %v1579 = vpack.c.b16 %v1015, %v1009
    %v1580 = vpack.c.b16 %v1022, %v1016
    %v1581 = vpack.c.b16 %v1023, %v1017
    %v1582 = vpack.c.b16 %v1024, %v1018
    %v1583 = vpack.c.b16 %v1025, %v1019
    %v1584 = vpack.c.b16 %v1026, %v1020
    %v1585 = vpack.c.b16 %v1027, %v1021
    %v1586 = vpack.c.b16 %v1034, %v1028
    %v1587 = vpack.c.b16 %v1035, %v1029
    %v1588 = vpack.c.b16 %v1036, %v1030
    %v1589 = vpack.c.b16 %v1037, %v1031
    %v1590 = vpack.c.b16 %v1038, %v1032
    %v1591 = vpack.c.b16 %v1039, %v1033
    %v1592 = vpack.c.b16 %v1046, %v1040
    %v1593 = vpack.c.b16 %v1047, %v1041
    %v1594 = vpack.c.b16 %v1048, %v1042
    %v1595 = vpack.c.b16 %v1049, %v1043
    %v1596 = vpack.c.b16 %v1050, %v1044
    %v1597 = vpack.c.b16 %v1051, %v1045
    %v1598 = vpack.c.b16 %v1058, %v1052
    %v1599 = vpack.c.b16 %v1059, %v1053
    %v1600 = vpack.c.b16 %v1060, %v1054
    %v1601 = vpack.c.b16 %v1061, %v1055
    %v1602 = vpack.c.b16 %v1062, %v1056
    %v1603 = vpack.c.b16 %v1063, %v1057
    %v1604 = vpack.c.b16 %v1070, %v1064
    %v1605 = vpack.c.b16 %v1071, %v1065
    %v1606 = vpack.c.b16 %v1072, %v1066
    %v1607 = vpack.c.b16 %v1073, %v1067
    %v1608 = vpack.c.b16 %v1074, %v1068
    %v1609 = vpack.c.b16 %v1075, %v1069
    %v1610 = vpack.c.b16 %v1082, %v1076
    %v1611 = vpack.c.b16 %v1083, %v1077
    %v1612 = vpack.c.b16 %v1084, %v1078
    %v1613 = vpack.c.b16 %v1085, %v1079
    %v1614 = vpack.c.b16 %v1086, %v1080
    %v1615 = vpack.c.b16 %v1087, %v1081
    %v1616 = vpack.c.b16 %v1094, %v1088
    %v1617 = vpack.c.b16 %v1095, %v1089
    %v1618 = vpack.c.b16 %v1096, %v1090
    %v1619 = vpack.c.b16 %v1097, %v1091
    %v1620 = vpack.c.b16 %v1098, %v1092
    %v1621 = vpack.c.b16 %v1099, %v1093
    %v1622 = vpack.c.b16 %v1106, %v1100
    %v1623 = vpack.c.b16 %v1107, %v1101
    %v1624 = vpack.c.b16 %v1108, %v1102
    %v1625 = vpack.c.b16 %v1109, %v1103
    %v1626 = vpack.c.b16 %v1110, %v1104
    %v1627 = vpack.c.b16 %v1111, %v1105
    %v1628 = vpack.c.b16 %v1118, %v1112
    %v1629 = vpack.c.b16 %v1119, %v1113
    %v1630 = vpack.c.b16 %v1120, %v1114
    %v1631 = vpack.c.b16 %v1121, %v1115
    %v1632 = vpack.c.b16 %v1122, %v1116
    %v1633 = vpack.c.b16 %v1123, %v1117
    %v1634 = vpack.c.b16 %v1130, %v1124
    %v1635 = vpack.c.b16 %v1131, %v1125
    %v1636 = vpack.c.b16 %v1132, %v1126
    %v1637 = vpack.c.b16 %v1133, %v1127
    %v1638 = vpack.c.b16 %v1134, %v1128
    %v1639 = vpack.c.b16 %v1135, %v1129
    %v1640 = vpack.c.b16 %v1142, %v1136
    %v1641 = vpack.c.b16 %v1143, %v1137
    %v1642 = vpack.c.b16 %v1144, %v1138
    %v1643 = vpack.c.b16 %v1145, %v1139
    %v1644 = vpack.c.b16 %v1146, %v1140
    %v1645 = vpack.c.b16 %v1147, %v1141
    %v1646 = vpack.c.b16 %v1154, %v1148
    %v1647 = vpack.c.b16 %v1155, %v1149
    %v1648 = vpack.c.b16 %v1156, %v1150
    %v1649 = vpack.c.b16 %v1157, %v1151
    %v1650 = vpack.c.b16 %v1158, %v1152
    %v1651 = vpack.c.b16 %v1159, %v1153
    %v1652 = vpack.c.b16 %v1166, %v1160
    %v1653 = vpack.c.b16 %v1167, %v1161
    %v1654 = vpack.c.b16 %v1168, %v1162
    %v1655 = vpack.c.b16 %v1169, %v1163
    %v1656 = vpack.c.b16 %v1170, %v1164
    %v1657 = vpack.c.b16 %v1171, %v1165
    %v1658 = vpack.c.b16 %v1178, %v1172
    %v1659 = vpack.c.b16 %v1179, %v1173
    %v1660 = vpack.c.b16 %v1180, %v1174
    %v1661 = vpack.c.b16 %v1181, %v1175
    %v1662 = vpack.c.b16 %v1182, %v1176
    %v1663 = vpack.c.b16 %v1183, %v1177
    %v1664 = vpack.c.b16 %v1190, %v1184
    %v1665 = vpack.c.b16 %v1191, %v1185
    %v1666 = vpack.c.b16 %v1192, %v1186
    %v1667 = vpack.c.b16 %v1193, %v1187
    %v1668 = vpack.c.b16 %v1194, %v1188
    %v1669 = vpack.c.b16 %v1195, %v1189
    %v1670 = vpack.c.b16 %v1202, %v1196
    %v1671 = vpack.c.b16 %v1203, %v1197
    %v1672 = vpack.c.b16 %v1204, %v1198
    %v1673 = vpack.c.b16 %v1205, %v1199
    %v1674 = vpack.c.b16 %v1206, %v1200
    %v1675 = vpack.c.b16 %v1207, %v1201
    %v1676 = vpack.c.b16 %v1214, %v1208
    %v1677 = vpack.c.b16 %v1215, %v1209
    %v1678 = vpack.c.b16 %v1216, %v1210
    %v1679 = vpack.c.b16 %v1217, %v1211
    %v1680 = vpack.c.b16 %v1218, %v1212
    %v1681 = vpack.c.b16 %v1219, %v1213
    %v1682 = vpack.c.b16 %v1226, %v1220
    %v1683 = vpack.c.b16 %v1227, %v1221
    %v1684 = vpack.c.b16 %v1228, %v1222
    %v1685 = vpack.c.b16 %v1229, %v1223
    %v1686 = vpack.c.b16 %v1230, %v1224
    %v1687 = vpack.c.b16 %v1231, %v1225
    %v1688 = vpack.c.b16 %v1238, %v1232
    %v1689 = vpack.c.b16 %v1239, %v1233
    %v1690 = vpack.c.b16 %v1240, %v1234
    %v1691 = vpack.c.b16 %v1241, %v1235
    %v1692 = vpack.c.b16 %v1242, %v1236
    %v1693 = vpack.c.b16 %v1243, %v1237
    %v1694 = vpack.c.b16 %v1250, %v1244
    %v1695 = vpack.c.b16 %v1251, %v1245
    %v1696 = vpack.c.b16 %v1252, %v1246
    %v1697 = vpack.c.b16 %v1253, %v1247
    %v1698 = vpack.c.b16 %v1254, %v1248
    %v1699 = vpack.c.b16 %v1255, %v1249
    %v1700 = vpack.c.b16 %v1262, %v1256
    %v1701 = vpack.c.b16 %v1263, %v1257
    %v1702 = vpack.c.b16 %v1264, %v1258
    %v1703 = vpack.c.b16 %v1265, %v1259
    %v1704 = vpack.c.b16 %v1266, %v1260
    %v1705 = vpack.c.b16 %v1267, %v1261
    %v1706 = vpack.c.b16 %v1274, %v1268
    %v1707 = vpack.c.b16 %v1275, %v1269
    %v1708 = vpack.c.b16 %v1276, %v1270
    %v1709 = vpack.c.b16 %v1277, %v1271
    %v1710 = vpack.c.b16 %v1278, %v1272
    %v1711 = vpack.c.b16 %v1279, %v1273
    %v1712 = vpack.c.b16 %v1286, %v1280
    %v1713 = vpack.c.b16 %v1287, %v1281
    %v1714 = vpack.c.b16 %v1288, %v1282
    %v1715 = vpack.c.b16 %v1289, %v1283
    %v1716 = vpack.c.b16 %v1290, %v1284
    %v1717 = vpack.c.b16 %v1291, %v1285
    %v1718 = vpack.c.b16 %v1298, %v1292
    %v1719 = vpack.c.b16 %v1299, %v1293
    %v1720 = vpack.c.b16 %v1300, %v1294
    %v1721 = vpack.c.b16 %v1301, %v1295
    %v1722 = vpack.c.b16 %v1302, %v1296
    %v1723 = vpack.c.b16 %v1303, %v1297
    %v1724 = vpack.c.b16 %v1310, %v1304
    %v1725 = vpack.c.b16 %v1311, %v1305
    %v1726 = vpack.c.b16 %v1312, %v1306
    %v1727 = vpack.c.b16 %v1313, %v1307
    %v1728 = vpack.c.b16 %v1314, %v1308
    %v1729 = vpack.c.b16 %v1315, %v1309
    %v1730 = vpack.c.b16 %v1322, %v1316
    %v1731 = vpack.c.b16 %v1323, %v1317
    %v1732 = vpack.c.b16 %v1324, %v1318
    %v1733 = vpack.c.b16 %v1325, %v1319
    %v1734 = vpack.c.b16 %v1326, %v1320
    %v1735 = vpack.c.b16 %v1327, %v1321
    %v1736 = vpack.c.b16 %v1334, %v1328
    %v1737 = vpack.c.b16 %v1335, %v1329
    %v1738 = vpack.c.b16 %v1336, %v1330
    %v1739 = vpack.c.b16 %v1337, %v1331
    %v1740 = vpack.c.b16 %v1338, %v1332
    %v1741 = vpack.c.b16 %v1339, %v1333
    %v1742 = vpack.c.b16 %v1346, %v1340
    %v1743 = vpack.c.b16 %v1347, %v1341
    %v1744 = vpack.c.b16 %v1348, %v1342
    %v1745 = vpack.c.b16 %v1349, %v1343
    %v1746 = vpack.c.b16 %v1350, %v1344
    %v1747 = vpack.c.b16 %v1351, %v1345
    %v1748 = vpack.c.b16 %v1358, %v1352
    %v1749 = vpack.c.b16 %v1359, %v1353
    %v1750 = vpack.c.b16 %v1360, %v1354
    %v1751 = vpack.c.b16 %v1361, %v1355
    %v1752 = vpack.c.b16 %v1362, %v1356
    %v1753 = vpack.c.b16 %v1363, %v1357
    %v1754 = vpack.c.b16 %v1370, %v1364
    %v1755 = vpack.c.b16 %v1371, %v1365
    %v1756 = vpack.c.b16 %v1372, %v1366
    %v1757 = vpack.c.b16 %v1373, %v1367
    %v1758 = vpack.c.b16 %v1374, %v1368
    %v1759 = vpack.c.b16 %v1375, %v1369
    %v1760 = vpack.c.b16 %v1382, %v1376
    %v1761 = vpack.c.b16 %v1383, %v1377
    %v1762 = vpack.c.b16 %v1384, %v1378
    %v1763 = vpack.c.b16 %v1385, %v1379
    %v1764 = vpack.c.b16 %v1386, %v1380
    %v1765 = vpack.c.b16 %v1387, %v1381
    %v1766 = vpack.c.b16 %v1394, %v1388
    %v1767 = vpack.c.b16 %v1395, %v1389
    %v1768 = vpack.c.b16 %v1396, %v1390
    %v1769 = vpack.c.b16 %v1397, %v1391
    %v1770 = vpack.c.b16 %v1398, %v1392
    %v1771 = vpack.c.b16 %v1399, %v1393
    %v1772 = vpack.c.b16 %v1406, %v1400
    %v1773 = vpack.c.b16 %v1407, %v1401
    %v1774 = vpack.c.b16 %v1408, %v1402
    %v1775 = vpack.c.b16 %v1409, %v1403
    %v1776 = vpack.c.b16 %v1410, %v1404
    %v1777 = vpack.c.b16 %v1411, %v1405
    %v1778 = vpack.c.b16 %v1418, %v1412
    %v1779 = vpack.c.b16 %v1419, %v1413
    %v1780 = vpack.c.b16 %v1420, %v1414
    %v1781 = vpack.c.b16 %v1421, %v1415
    %v1782 = vpack.c.b16 %v1422, %v1416
    %v1783 = vpack.c.b16 %v1423, %v1417
    %v1784 = vpack.c.b16 %v1430, %v1424
    %v1785 = vpack.c.b16 %v1431, %v1425
    %v1786 = vpack.c.b16 %v1432, %v1426
    %v1787 = vpack.c.b16 %v1433, %v1427
    %v1788 = vpack.c.b16 %v1434, %v1428
    %v1789 = vpack.c.b16 %v1435, %v1429
    %v1790 = vpack.c.b16 %v1442, %v1436
    %v1791 = vpack.c.b16 %v1443, %v1437
    %v1792 = vpack.c.b16 %v1444, %v1438
    %v1793 = vpack.c.b16 %v1445, %v1439
    %v1794 = vpack.c.b16 %v1446, %v1440
    %v1795 = vpack.c.b16 %v1447, %v1441
    %v1796 = vpack.c.b16 %v1454, %v1448
    %v1797 = vpack.c.b16 %v1455, %v1449
    %v1798 = vpack.c.b16 %v1456, %v1450
    %v1799 = vpack.c.b16 %v1457, %v1451
    %v1800 = vpack.c.b16 %v1458, %v1452
    %v1801 = vpack.c.b16 %v1459, %v1453
    %v1802 = vpack.c.b16 %v1466, %v1460
    %v1803 = vpack.c.b16 %v1467, %v1461
    %v1804 = vpack.c.b16 %v1468, %v1462
    %v1805 = vpack.c.b16 %v1469, %v1463
    %v1806 = vpack.c.b16 %v1470, %v1464
    %v1807 = vpack.c.b16 %v1471, %v1465
    %v1808 = vpack.c.b16 %v1478, %v1472
    %v1809 = vpack.c.b16 %v1479, %v1473
    %v1810 = vpack.c.b16 %v1480, %v1474
    %v1811 = vpack.c.b16 %v1481, %v1475
    %v1812 = vpack.c.b16 %v1482, %v1476
    %v1813 = vpack.c.b16 %v1483, %v1477
    %v1814 = vpack.c.b16 %v1490, %v1484
    %v1815 = vpack.c.b16 %v1491, %v1485
    %v1816 = vpack.c.b16 %v1492, %v1486
    %v1817 = vpack.c.b16 %v1493, %v1487
    %v1818 = vpack.c.b16 %v1494, %v1488
    %v1819 = vpack.c.b16 %v1495, %v1489
    %v1820 = vpack.c.b16 %v1502, %v1496
    %v1821 = vpack.c.b16 %v1503, %v1497
    %v1822 = vpack.c.b16 %v1504, %v1498
    %v1823 = vpack.c.b16 %v1505, %v1499
    %v1824 = vpack.c.b16 %v1506, %v1500
    %v1825 = vpack.c.b16 %v1507, %v1501
    %v1826 = vpack.c.b16 %v1514, %v1508
    %v1827 = vpack.c.b16 %v1515, %v1509
    %v1828 = vpack.c.b16 %v1516, %v1510
    %v1829 = vpack.c.b16 %v1517, %v1511
    %v1830 = vpack.c.b16 %v1518, %v1512
    %v1831 = vpack.c.b16 %v1519, %v1513
    %v1832 = vpack.c.b16 %v1526, %v1520
    %v1833 = vpack.c.b16 %v1527, %v1521
    %v1834 = vpack.c.b16 %v1528, %v1522
    %v1835 = vpack.c.b16 %v1529, %v1523
    %v1836 = vpack.c.b16 %v1530, %v1524
    %v1837 = vpack.c.b16 %v1531, %v1525
    %v1838 = vpack.c.b16 %v1538, %v1532
    %v1839 = vpack.c.b16 %v1539, %v1533
    %v1840 = vpack.c.b16 %v1540, %v1534
    %v1841 = vpack.c.b16 %v1541, %v1535
    %v1842 = vpack.c.b16 %v1542, %v1536
    %v1843 = vpack.c.b16 %v1543, %v1537
    %v1844 = vpack.c.b16 %v1550, %v1544
    %v1845 = vpack.c.b16 %v1551, %v1545
    %v1846 = vpack.c.b16 %v1552, %v1546
    %v1847 = vpack.c.b16 %v1553, %v1547
    %v1848 = vpack.c.b16 %v1554, %v1548
    %v1849 = vpack.c.b16 %v1555, %v1549
    %v1850 = vpack.c.b16 %v1562, %v1556
    %v1851 = vpack.c.b16 %v1563, %v1557
    %v1852 = vpack.c.b16 %v1564, %v1558
    %v1853 = vpack.c.b16 %v1565, %v1559
    %v1854 = vpack.c.b16 %v1566, %v1560
    %v1855 = vpack.c.b16 %v1567, %v1561
    %2144 = vmatpush.bf16.msra.mxu0 %v1610
    %2145 = vmatpush.bf16.msra.mxu0 %v1604
    %2146 = vmatpush.bf16.msra.mxu0 %v1598
    %2147 = vmatpush.bf16.msra.mxu0 %v1592
    %2148 = vmatpush.bf16.msra.mxu0 %v1586
    %2149 = vmatpush.bf16.msra.mxu0 %v1580
    %2150 = vmatpush.bf16.msra.mxu0 %v1574
    %2151 = vmatpush.bf16.msra.mxu0 %v1568
    %2152 = vmatmul.bf16.gmra.mxu0 %v685
    %v2153 = vpop.f32.mrf.mxu0
    %v2154 = vadd.f32 %v692, %v2153
    %v2155 = vpop.f32.mrf.mxu0
    %v2156 = vadd.f32 %v692, %v2155
    %2157 = vdwg.mxu0
    %2158 = vmatpush.bf16.msra.mxu0 %v1658
    %2159 = vmatpush.bf16.msra.mxu0 %v1652
    %2160 = vmatpush.bf16.msra.mxu0 %v1646
    %2161 = vmatpush.bf16.msra.mxu0 %v1640
    %2162 = vmatpush.bf16.msra.mxu0 %v1634
    %2163 = vmatpush.bf16.msra.mxu0 %v1628
    %2164 = vmatpush.bf16.msra.mxu0 %v1622
    %2165 = vmatpush.bf16.msra.mxu0 %v1616
    %2166 = vmatmul.bf16.gmra.mxu0 %v686
    %v2167 = vpop.f32.mrf.mxu0
    %v2168 = vadd.f32 %v2154, %v2167
    %v2169 = vpop.f32.mrf.mxu0
    %v2170 = vadd.f32 %v2156, %v2169
    %2171 = vdwg.mxu0
    %2172 = vmatpush.bf16.msra.mxu0 %v1706
    %2173 = vmatpush.bf16.msra.mxu0 %v1700
    %2174 = vmatpush.bf16.msra.mxu0 %v1694
    %2175 = vmatpush.bf16.msra.mxu0 %v1688
    %2176 = vmatpush.bf16.msra.mxu0 %v1682
    %2177 = vmatpush.bf16.msra.mxu0 %v1676
    %2178 = vmatpush.bf16.msra.mxu0 %v1670
    %2179 = vmatpush.bf16.msra.mxu0 %v1664
    %2180 = vmatmul.bf16.gmra.mxu0 %v687
    %v2181 = vpop.f32.mrf.mxu0
    %v2182 = vadd.f32 %v2168, %v2181
    %v2183 = vpop.f32.mrf.mxu0
    %v2184 = vadd.f32 %v2170, %v2183
    %2185 = vdwg.mxu0
    %2186 = vmatpush.bf16.msra.mxu0 %v1754
    %2187 = vmatpush.bf16.msra.mxu0 %v1748
    %2188 = vmatpush.bf16.msra.mxu0 %v1742
    %2189 = vmatpush.bf16.msra.mxu0 %v1736
    %2190 = vmatpush.bf16.msra.mxu0 %v1730
    %2191 = vmatpush.bf16.msra.mxu0 %v1724
    %2192 = vmatpush.bf16.msra.mxu0 %v1718
    %2193 = vmatpush.bf16.msra.mxu0 %v1712
    %2194 = vmatmul.bf16.gmra.mxu0 %v688
    %v2195 = vpop.f32.mrf.mxu0
    %v2196 = vadd.f32 %v2182, %v2195
    %v2197 = vpop.f32.mrf.mxu0
    %v2198 = vadd.f32 %v2184, %v2197
    %2199 = vdwg.mxu0
    %2200 = vmatpush.bf16.msra.mxu0 %v1802
    %2201 = vmatpush.bf16.msra.mxu0 %v1796
    %2202 = vmatpush.bf16.msra.mxu0 %v1790
    %2203 = vmatpush.bf16.msra.mxu0 %v1784
    %2204 = vmatpush.bf16.msra.mxu0 %v1778
    %2205 = vmatpush.bf16.msra.mxu0 %v1772
    %2206 = vmatpush.bf16.msra.mxu0 %v1766
    %2207 = vmatpush.bf16.msra.mxu0 %v1760
    %2208 = vmatmul.bf16.gmra.mxu0 %v689
    %v2209 = vpop.f32.mrf.mxu0
    %v2210 = vadd.f32 %v2196, %v2209
    %v2211 = vpop.f32.mrf.mxu0
    %v2212 = vadd.f32 %v2198, %v2211
    %2213 = vdwg.mxu0
    %2214 = vmatpush.bf16.msra.mxu0 %v1850
    %2215 = vmatpush.bf16.msra.mxu0 %v1844
    %2216 = vmatpush.bf16.msra.mxu0 %v1838
    %2217 = vmatpush.bf16.msra.mxu0 %v1832
    %2218 = vmatpush.bf16.msra.mxu0 %v1826
    %2219 = vmatpush.bf16.msra.mxu0 %v1820
    %2220 = vmatpush.bf16.msra.mxu0 %v1814
    %2221 = vmatpush.bf16.msra.mxu0 %v1808
    %2222 = vmatmul.bf16.gmra.mxu0 %v690
    %v2223 = vpop.f32.mrf.mxu0
    %v2224 = vadd.f32 %v2210, %v2223
    %v2225 = vpop.f32.mrf.mxu0
    %v2226 = vadd.f32 %v2212, %v2225
    %2227 = vdwg.mxu0
    %2228 = vmatpush.bf16.msra.mxu0 %v1611
    %2229 = vmatpush.bf16.msra.mxu0 %v1605
    %2230 = vmatpush.bf16.msra.mxu0 %v1599
    %2231 = vmatpush.bf16.msra.mxu0 %v1593
    %2232 = vmatpush.bf16.msra.mxu0 %v1587
    %2233 = vmatpush.bf16.msra.mxu0 %v1581
    %2234 = vmatpush.bf16.msra.mxu0 %v1575
    %2235 = vmatpush.bf16.msra.mxu0 %v1569
    %2236 = vmatmul.bf16.gmra.mxu0 %v685
    %v2237 = vpop.f32.mrf.mxu0
    %v2238 = vadd.f32 %v693, %v2237
    %v2239 = vpop.f32.mrf.mxu0
    %v2240 = vadd.f32 %v693, %v2239
    %2241 = vdwg.mxu0
    %2242 = vmatpush.bf16.msra.mxu0 %v1659
    %2243 = vmatpush.bf16.msra.mxu0 %v1653
    %2244 = vmatpush.bf16.msra.mxu0 %v1647
    %2245 = vmatpush.bf16.msra.mxu0 %v1641
    %2246 = vmatpush.bf16.msra.mxu0 %v1635
    %2247 = vmatpush.bf16.msra.mxu0 %v1629
    %2248 = vmatpush.bf16.msra.mxu0 %v1623
    %2249 = vmatpush.bf16.msra.mxu0 %v1617
    %2250 = vmatmul.bf16.gmra.mxu0 %v686
    %v2251 = vpop.f32.mrf.mxu0
    %v2252 = vadd.f32 %v2238, %v2251
    %v2253 = vpop.f32.mrf.mxu0
    %v2254 = vadd.f32 %v2240, %v2253
    %2255 = vdwg.mxu0
    %2256 = vmatpush.bf16.msra.mxu0 %v1707
    %2257 = vmatpush.bf16.msra.mxu0 %v1701
    %2258 = vmatpush.bf16.msra.mxu0 %v1695
    %2259 = vmatpush.bf16.msra.mxu0 %v1689
    %2260 = vmatpush.bf16.msra.mxu0 %v1683
    %2261 = vmatpush.bf16.msra.mxu0 %v1677
    %2262 = vmatpush.bf16.msra.mxu0 %v1671
    %2263 = vmatpush.bf16.msra.mxu0 %v1665
    %2264 = vmatmul.bf16.gmra.mxu0 %v687
    %v2265 = vpop.f32.mrf.mxu0
    %v2266 = vadd.f32 %v2252, %v2265
    %v2267 = vpop.f32.mrf.mxu0
    %v2268 = vadd.f32 %v2254, %v2267
    %2269 = vdwg.mxu0
    %2270 = vmatpush.bf16.msra.mxu0 %v1755
    %2271 = vmatpush.bf16.msra.mxu0 %v1749
    %2272 = vmatpush.bf16.msra.mxu0 %v1743
    %2273 = vmatpush.bf16.msra.mxu0 %v1737
    %2274 = vmatpush.bf16.msra.mxu0 %v1731
    %2275 = vmatpush.bf16.msra.mxu0 %v1725
    %2276 = vmatpush.bf16.msra.mxu0 %v1719
    %2277 = vmatpush.bf16.msra.mxu0 %v1713
    %2278 = vmatmul.bf16.gmra.mxu0 %v688
    %v2279 = vpop.f32.mrf.mxu0
    %v2280 = vadd.f32 %v2266, %v2279
    %v2281 = vpop.f32.mrf.mxu0
    %v2282 = vadd.f32 %v2268, %v2281
    %2283 = vdwg.mxu0
    %2284 = vmatpush.bf16.msra.mxu0 %v1803
    %2285 = vmatpush.bf16.msra.mxu0 %v1797
    %2286 = vmatpush.bf16.msra.mxu0 %v1791
    %2287 = vmatpush.bf16.msra.mxu0 %v1785
    %2288 = vmatpush.bf16.msra.mxu0 %v1779
    %2289 = vmatpush.bf16.msra.mxu0 %v1773
    %2290 = vmatpush.bf16.msra.mxu0 %v1767
    %2291 = vmatpush.bf16.msra.mxu0 %v1761
    %2292 = vmatmul.bf16.gmra.mxu0 %v689
    %v2293 = vpop.f32.mrf.mxu0
    %v2294 = vadd.f32 %v2280, %v2293
    %v2295 = vpop.f32.mrf.mxu0
    %v2296 = vadd.f32 %v2282, %v2295
    %2297 = vdwg.mxu0
    %2298 = vmatpush.bf16.msra.mxu0 %v1851
    %2299 = vmatpush.bf16.msra.mxu0 %v1845
    %2300 = vmatpush.bf16.msra.mxu0 %v1839
    %2301 = vmatpush.bf16.msra.mxu0 %v1833
    %2302 = vmatpush.bf16.msra.mxu0 %v1827
    %2303 = vmatpush.bf16.msra.mxu0 %v1821
    %2304 = vmatpush.bf16.msra.mxu0 %v1815
    %2305 = vmatpush.bf16.msra.mxu0 %v1809
    %2306 = vmatmul.bf16.gmra.mxu0 %v690
    %v2307 = vpop.f32.mrf.mxu0
    %v2308 = vadd.f32 %v2294, %v2307
    %v2309 = vpop.f32.mrf.mxu0
    %v2310 = vadd.f32 %v2296, %v2309
    %2311 = vdwg.mxu0
    %2312 = vmatpush.bf16.msra.mxu0 %v1612
    %2313 = vmatpush.bf16.msra.mxu0 %v1606
    %2314 = vmatpush.bf16.msra.mxu0 %v1600
    %2315 = vmatpush.bf16.msra.mxu0 %v1594
    %2316 = vmatpush.bf16.msra.mxu0 %v1588
    %2317 = vmatpush.bf16.msra.mxu0 %v1582
    %2318 = vmatpush.bf16.msra.mxu0 %v1576
    %2319 = vmatpush.bf16.msra.mxu0 %v1570
    %2320 = vmatmul.bf16.gmra.mxu0 %v685
    %v2321 = vpop.f32.mrf.mxu0
    %v2322 = vadd.f32 %v694, %v2321
    %v2323 = vpop.f32.mrf.mxu0
    %v2324 = vadd.f32 %v694, %v2323
    %2325 = vdwg.mxu0
    %2326 = vmatpush.bf16.msra.mxu0 %v1660
    %2327 = vmatpush.bf16.msra.mxu0 %v1654
    %2328 = vmatpush.bf16.msra.mxu0 %v1648
    %2329 = vmatpush.bf16.msra.mxu0 %v1642
    %2330 = vmatpush.bf16.msra.mxu0 %v1636
    %2331 = vmatpush.bf16.msra.mxu0 %v1630
    %2332 = vmatpush.bf16.msra.mxu0 %v1624
    %2333 = vmatpush.bf16.msra.mxu0 %v1618
    %2334 = vmatmul.bf16.gmra.mxu0 %v686
    %v2335 = vpop.f32.mrf.mxu0
    %v2336 = vadd.f32 %v2322, %v2335
    %v2337 = vpop.f32.mrf.mxu0
    %v2338 = vadd.f32 %v2324, %v2337
    %2339 = vdwg.mxu0
    %2340 = vmatpush.bf16.msra.mxu0 %v1708
    %2341 = vmatpush.bf16.msra.mxu0 %v1702
    %2342 = vmatpush.bf16.msra.mxu0 %v1696
    %2343 = vmatpush.bf16.msra.mxu0 %v1690
    %2344 = vmatpush.bf16.msra.mxu0 %v1684
    %2345 = vmatpush.bf16.msra.mxu0 %v1678
    %2346 = vmatpush.bf16.msra.mxu0 %v1672
    %2347 = vmatpush.bf16.msra.mxu0 %v1666
    %2348 = vmatmul.bf16.gmra.mxu0 %v687
    %v2349 = vpop.f32.mrf.mxu0
    %v2350 = vadd.f32 %v2336, %v2349
    %v2351 = vpop.f32.mrf.mxu0
    %v2352 = vadd.f32 %v2338, %v2351
    %2353 = vdwg.mxu0
    %2354 = vmatpush.bf16.msra.mxu0 %v1756
    %2355 = vmatpush.bf16.msra.mxu0 %v1750
    %2356 = vmatpush.bf16.msra.mxu0 %v1744
    %2357 = vmatpush.bf16.msra.mxu0 %v1738
    %2358 = vmatpush.bf16.msra.mxu0 %v1732
    %2359 = vmatpush.bf16.msra.mxu0 %v1726
    %2360 = vmatpush.bf16.msra.mxu0 %v1720
    %2361 = vmatpush.bf16.msra.mxu0 %v1714
    %2362 = vmatmul.bf16.gmra.mxu0 %v688
    %v2363 = vpop.f32.mrf.mxu0
    %v2364 = vadd.f32 %v2350, %v2363
    %v2365 = vpop.f32.mrf.mxu0
    %v2366 = vadd.f32 %v2352, %v2365
    %2367 = vdwg.mxu0
    %2368 = vmatpush.bf16.msra.mxu0 %v1804
    %2369 = vmatpush.bf16.msra.mxu0 %v1798
    %2370 = vmatpush.bf16.msra.mxu0 %v1792
    %2371 = vmatpush.bf16.msra.mxu0 %v1786
    %2372 = vmatpush.bf16.msra.mxu0 %v1780
    %2373 = vmatpush.bf16.msra.mxu0 %v1774
    %2374 = vmatpush.bf16.msra.mxu0 %v1768
    %2375 = vmatpush.bf16.msra.mxu0 %v1762
    %2376 = vmatmul.bf16.gmra.mxu0 %v689
    %v2377 = vpop.f32.mrf.mxu0
    %v2378 = vadd.f32 %v2364, %v2377
    %v2379 = vpop.f32.mrf.mxu0
    %v2380 = vadd.f32 %v2366, %v2379
    %2381 = vdwg.mxu0
    %2382 = vmatpush.bf16.msra.mxu0 %v1852
    %2383 = vmatpush.bf16.msra.mxu0 %v1846
    %2384 = vmatpush.bf16.msra.mxu0 %v1840
    %2385 = vmatpush.bf16.msra.mxu0 %v1834
    %2386 = vmatpush.bf16.msra.mxu0 %v1828
    %2387 = vmatpush.bf16.msra.mxu0 %v1822
    %2388 = vmatpush.bf16.msra.mxu0 %v1816
    %2389 = vmatpush.bf16.msra.mxu0 %v1810
    %2390 = vmatmul.bf16.gmra.mxu0 %v690
    %v2391 = vpop.f32.mrf.mxu0
    %v2392 = vadd.f32 %v2378, %v2391
    %v2393 = vpop.f32.mrf.mxu0
    %v2394 = vadd.f32 %v2380, %v2393
    %2395 = vdwg.mxu0
    %2396 = vmatpush.bf16.msra.mxu0 %v1613
    %2397 = vmatpush.bf16.msra.mxu0 %v1607
    %2398 = vmatpush.bf16.msra.mxu0 %v1601
    %2399 = vmatpush.bf16.msra.mxu0 %v1595
    %2400 = vmatpush.bf16.msra.mxu0 %v1589
    %2401 = vmatpush.bf16.msra.mxu0 %v1583
    %2402 = vmatpush.bf16.msra.mxu0 %v1577
    %2403 = vmatpush.bf16.msra.mxu0 %v1571
    %2404 = vmatmul.bf16.gmra.mxu0 %v685
    %v2405 = vpop.f32.mrf.mxu0
    %v2406 = vadd.f32 %v695, %v2405
    %v2407 = vpop.f32.mrf.mxu0
    %v2408 = vadd.f32 %v695, %v2407
    %2409 = vdwg.mxu0
    %2410 = vmatpush.bf16.msra.mxu0 %v1661
    %2411 = vmatpush.bf16.msra.mxu0 %v1655
    %2412 = vmatpush.bf16.msra.mxu0 %v1649
    %2413 = vmatpush.bf16.msra.mxu0 %v1643
    %2414 = vmatpush.bf16.msra.mxu0 %v1637
    %2415 = vmatpush.bf16.msra.mxu0 %v1631
    %2416 = vmatpush.bf16.msra.mxu0 %v1625
    %2417 = vmatpush.bf16.msra.mxu0 %v1619
    %2418 = vmatmul.bf16.gmra.mxu0 %v686
    %v2419 = vpop.f32.mrf.mxu0
    %v2420 = vadd.f32 %v2406, %v2419
    %v2421 = vpop.f32.mrf.mxu0
    %v2422 = vadd.f32 %v2408, %v2421
    %2423 = vdwg.mxu0
    %2424 = vmatpush.bf16.msra.mxu0 %v1709
    %2425 = vmatpush.bf16.msra.mxu0 %v1703
    %2426 = vmatpush.bf16.msra.mxu0 %v1697
    %2427 = vmatpush.bf16.msra.mxu0 %v1691
    %2428 = vmatpush.bf16.msra.mxu0 %v1685
    %2429 = vmatpush.bf16.msra.mxu0 %v1679
    %2430 = vmatpush.bf16.msra.mxu0 %v1673
    %2431 = vmatpush.bf16.msra.mxu0 %v1667
    %2432 = vmatmul.bf16.gmra.mxu0 %v687
    %v2433 = vpop.f32.mrf.mxu0
    %v2434 = vadd.f32 %v2420, %v2433
    %v2435 = vpop.f32.mrf.mxu0
    %v2436 = vadd.f32 %v2422, %v2435
    %2437 = vdwg.mxu0
    %2438 = vmatpush.bf16.msra.mxu0 %v1757
    %2439 = vmatpush.bf16.msra.mxu0 %v1751
    %2440 = vmatpush.bf16.msra.mxu0 %v1745
    %2441 = vmatpush.bf16.msra.mxu0 %v1739
    %2442 = vmatpush.bf16.msra.mxu0 %v1733
    %2443 = vmatpush.bf16.msra.mxu0 %v1727
    %2444 = vmatpush.bf16.msra.mxu0 %v1721
    %2445 = vmatpush.bf16.msra.mxu0 %v1715
    %2446 = vmatmul.bf16.gmra.mxu0 %v688
    %v2447 = vpop.f32.mrf.mxu0
    %v2448 = vadd.f32 %v2434, %v2447
    %v2449 = vpop.f32.mrf.mxu0
    %v2450 = vadd.f32 %v2436, %v2449
    %2451 = vdwg.mxu0
    %2452 = vmatpush.bf16.msra.mxu0 %v1805
    %2453 = vmatpush.bf16.msra.mxu0 %v1799
    %2454 = vmatpush.bf16.msra.mxu0 %v1793
    %2455 = vmatpush.bf16.msra.mxu0 %v1787
    %2456 = vmatpush.bf16.msra.mxu0 %v1781
    %2457 = vmatpush.bf16.msra.mxu0 %v1775
    %2458 = vmatpush.bf16.msra.mxu0 %v1769
    %2459 = vmatpush.bf16.msra.mxu0 %v1763
    %2460 = vmatmul.bf16.gmra.mxu0 %v689
    %v2461 = vpop.f32.mrf.mxu0
    %v2462 = vadd.f32 %v2448, %v2461
    %v2463 = vpop.f32.mrf.mxu0
    %v2464 = vadd.f32 %v2450, %v2463
    %2465 = vdwg.mxu0
    %2466 = vmatpush.bf16.msra.mxu0 %v1853
    %2467 = vmatpush.bf16.msra.mxu0 %v1847
    %2468 = vmatpush.bf16.msra.mxu0 %v1841
    %2469 = vmatpush.bf16.msra.mxu0 %v1835
    %2470 = vmatpush.bf16.msra.mxu0 %v1829
    %2471 = vmatpush.bf16.msra.mxu0 %v1823
    %2472 = vmatpush.bf16.msra.mxu0 %v1817
    %2473 = vmatpush.bf16.msra.mxu0 %v1811
    %2474 = vmatmul.bf16.gmra.mxu0 %v690
    %v2475 = vpop.f32.mrf.mxu0
    %v2476 = vadd.f32 %v2462, %v2475
    %v2477 = vpop.f32.mrf.mxu0
    %v2478 = vadd.f32 %v2464, %v2477
    %2479 = vdwg.mxu0
    %2480 = vmatpush.bf16.msra.mxu0 %v1614
    %2481 = vmatpush.bf16.msra.mxu0 %v1608
    %2482 = vmatpush.bf16.msra.mxu0 %v1602
    %2483 = vmatpush.bf16.msra.mxu0 %v1596
    %2484 = vmatpush.bf16.msra.mxu0 %v1590
    %2485 = vmatpush.bf16.msra.mxu0 %v1584
    %2486 = vmatpush.bf16.msra.mxu0 %v1578
    %2487 = vmatpush.bf16.msra.mxu0 %v1572
    %2488 = vmatmul.bf16.gmra.mxu0 %v685
    %v2489 = vpop.f32.mrf.mxu0
    %v2490 = vadd.f32 %v696, %v2489
    %v2491 = vpop.f32.mrf.mxu0
    %v2492 = vadd.f32 %v696, %v2491
    %2493 = vdwg.mxu0
    %2494 = vmatpush.bf16.msra.mxu0 %v1662
    %2495 = vmatpush.bf16.msra.mxu0 %v1656
    %2496 = vmatpush.bf16.msra.mxu0 %v1650
    %2497 = vmatpush.bf16.msra.mxu0 %v1644
    %2498 = vmatpush.bf16.msra.mxu0 %v1638
    %2499 = vmatpush.bf16.msra.mxu0 %v1632
    %2500 = vmatpush.bf16.msra.mxu0 %v1626
    %2501 = vmatpush.bf16.msra.mxu0 %v1620
    %2502 = vmatmul.bf16.gmra.mxu0 %v686
    %v2503 = vpop.f32.mrf.mxu0
    %v2504 = vadd.f32 %v2490, %v2503
    %v2505 = vpop.f32.mrf.mxu0
    %v2506 = vadd.f32 %v2492, %v2505
    %2507 = vdwg.mxu0
    %2508 = vmatpush.bf16.msra.mxu0 %v1710
    %2509 = vmatpush.bf16.msra.mxu0 %v1704
    %2510 = vmatpush.bf16.msra.mxu0 %v1698
    %2511 = vmatpush.bf16.msra.mxu0 %v1692
    %2512 = vmatpush.bf16.msra.mxu0 %v1686
    %2513 = vmatpush.bf16.msra.mxu0 %v1680
    %2514 = vmatpush.bf16.msra.mxu0 %v1674
    %2515 = vmatpush.bf16.msra.mxu0 %v1668
    %2516 = vmatmul.bf16.gmra.mxu0 %v687
    %v2517 = vpop.f32.mrf.mxu0
    %v2518 = vadd.f32 %v2504, %v2517
    %v2519 = vpop.f32.mrf.mxu0
    %v2520 = vadd.f32 %v2506, %v2519
    %2521 = vdwg.mxu0
    %2522 = vmatpush.bf16.msra.mxu0 %v1758
    %2523 = vmatpush.bf16.msra.mxu0 %v1752
    %2524 = vmatpush.bf16.msra.mxu0 %v1746
    %2525 = vmatpush.bf16.msra.mxu0 %v1740
    %2526 = vmatpush.bf16.msra.mxu0 %v1734
    %2527 = vmatpush.bf16.msra.mxu0 %v1728
    %2528 = vmatpush.bf16.msra.mxu0 %v1722
    %2529 = vmatpush.bf16.msra.mxu0 %v1716
    %2530 = vmatmul.bf16.gmra.mxu0 %v688
    %v2531 = vpop.f32.mrf.mxu0
    %v2532 = vadd.f32 %v2518, %v2531
    %v2533 = vpop.f32.mrf.mxu0
    %v2534 = vadd.f32 %v2520, %v2533
    %2535 = vdwg.mxu0
    %2536 = vmatpush.bf16.msra.mxu0 %v1806
    %2537 = vmatpush.bf16.msra.mxu0 %v1800
    %2538 = vmatpush.bf16.msra.mxu0 %v1794
    %2539 = vmatpush.bf16.msra.mxu0 %v1788
    %2540 = vmatpush.bf16.msra.mxu0 %v1782
    %2541 = vmatpush.bf16.msra.mxu0 %v1776
    %2542 = vmatpush.bf16.msra.mxu0 %v1770
    %2543 = vmatpush.bf16.msra.mxu0 %v1764
    %2544 = vmatmul.bf16.gmra.mxu0 %v689
    %v2545 = vpop.f32.mrf.mxu0
    %v2546 = vadd.f32 %v2532, %v2545
    %v2547 = vpop.f32.mrf.mxu0
    %v2548 = vadd.f32 %v2534, %v2547
    %2549 = vdwg.mxu0
    %2550 = vmatpush.bf16.msra.mxu0 %v1854
    %2551 = vmatpush.bf16.msra.mxu0 %v1848
    %2552 = vmatpush.bf16.msra.mxu0 %v1842
    %2553 = vmatpush.bf16.msra.mxu0 %v1836
    %2554 = vmatpush.bf16.msra.mxu0 %v1830
    %2555 = vmatpush.bf16.msra.mxu0 %v1824
    %2556 = vmatpush.bf16.msra.mxu0 %v1818
    %2557 = vmatpush.bf16.msra.mxu0 %v1812
    %2558 = vmatmul.bf16.gmra.mxu0 %v690
    %v2559 = vpop.f32.mrf.mxu0
    %v2560 = vadd.f32 %v2546, %v2559
    %v2561 = vpop.f32.mrf.mxu0
    %v2562 = vadd.f32 %v2548, %v2561
    %2563 = vdwg.mxu0
    %2564 = vmatpush.bf16.msra.mxu0 %v1615
    %2565 = vmatpush.bf16.msra.mxu0 %v1609
    %2566 = vmatpush.bf16.msra.mxu0 %v1603
    %2567 = vmatpush.bf16.msra.mxu0 %v1597
    %2568 = vmatpush.bf16.msra.mxu0 %v1591
    %2569 = vmatpush.bf16.msra.mxu0 %v1585
    %2570 = vmatpush.bf16.msra.mxu0 %v1579
    %2571 = vmatpush.bf16.msra.mxu0 %v1573
    %2572 = vmatmul.bf16.gmra.mxu0 %v685
    %v2573 = vpop.f32.mrf.mxu0
    %v2574 = vadd.f32 %v697, %v2573
    %v2575 = vpop.f32.mrf.mxu0
    %v2576 = vadd.f32 %v697, %v2575
    %2577 = vdwg.mxu0
    %2578 = vmatpush.bf16.msra.mxu0 %v1663
    %2579 = vmatpush.bf16.msra.mxu0 %v1657
    %2580 = vmatpush.bf16.msra.mxu0 %v1651
    %2581 = vmatpush.bf16.msra.mxu0 %v1645
    %2582 = vmatpush.bf16.msra.mxu0 %v1639
    %2583 = vmatpush.bf16.msra.mxu0 %v1633
    %2584 = vmatpush.bf16.msra.mxu0 %v1627
    %2585 = vmatpush.bf16.msra.mxu0 %v1621
    %2586 = vmatmul.bf16.gmra.mxu0 %v686
    %v2587 = vpop.f32.mrf.mxu0
    %v2588 = vadd.f32 %v2574, %v2587
    %v2589 = vpop.f32.mrf.mxu0
    %v2590 = vadd.f32 %v2576, %v2589
    %2591 = vdwg.mxu0
    %2592 = vmatpush.bf16.msra.mxu0 %v1711
    %2593 = vmatpush.bf16.msra.mxu0 %v1705
    %2594 = vmatpush.bf16.msra.mxu0 %v1699
    %2595 = vmatpush.bf16.msra.mxu0 %v1693
    %2596 = vmatpush.bf16.msra.mxu0 %v1687
    %2597 = vmatpush.bf16.msra.mxu0 %v1681
    %2598 = vmatpush.bf16.msra.mxu0 %v1675
    %2599 = vmatpush.bf16.msra.mxu0 %v1669
    %2600 = vmatmul.bf16.gmra.mxu0 %v687
    %v2601 = vpop.f32.mrf.mxu0
    %v2602 = vadd.f32 %v2588, %v2601
    %v2603 = vpop.f32.mrf.mxu0
    %v2604 = vadd.f32 %v2590, %v2603
    %2605 = vdwg.mxu0
    %2606 = vmatpush.bf16.msra.mxu0 %v1759
    %2607 = vmatpush.bf16.msra.mxu0 %v1753
    %2608 = vmatpush.bf16.msra.mxu0 %v1747
    %2609 = vmatpush.bf16.msra.mxu0 %v1741
    %2610 = vmatpush.bf16.msra.mxu0 %v1735
    %2611 = vmatpush.bf16.msra.mxu0 %v1729
    %2612 = vmatpush.bf16.msra.mxu0 %v1723
    %2613 = vmatpush.bf16.msra.mxu0 %v1717
    %2614 = vmatmul.bf16.gmra.mxu0 %v688
    %v2615 = vpop.f32.mrf.mxu0
    %v2616 = vadd.f32 %v2602, %v2615
    %v2617 = vpop.f32.mrf.mxu0
    %v2618 = vadd.f32 %v2604, %v2617
    %2619 = vdwg.mxu0
    %2620 = vmatpush.bf16.msra.mxu0 %v1807
    %2621 = vmatpush.bf16.msra.mxu0 %v1801
    %2622 = vmatpush.bf16.msra.mxu0 %v1795
    %2623 = vmatpush.bf16.msra.mxu0 %v1789
    %2624 = vmatpush.bf16.msra.mxu0 %v1783
    %2625 = vmatpush.bf16.msra.mxu0 %v1777
    %2626 = vmatpush.bf16.msra.mxu0 %v1771
    %2627 = vmatpush.bf16.msra.mxu0 %v1765
    %2628 = vmatmul.bf16.gmra.mxu0 %v689
    %v2629 = vpop.f32.mrf.mxu0
    %v2630 = vadd.f32 %v2616, %v2629
    %v2631 = vpop.f32.mrf.mxu0
    %v2632 = vadd.f32 %v2618, %v2631
    %2633 = vdwg.mxu0
    %2634 = vmatpush.bf16.msra.mxu0 %v1855
    %2635 = vmatpush.bf16.msra.mxu0 %v1849
    %2636 = vmatpush.bf16.msra.mxu0 %v1843
    %2637 = vmatpush.bf16.msra.mxu0 %v1837
    %2638 = vmatpush.bf16.msra.mxu0 %v1831
    %2639 = vmatpush.bf16.msra.mxu0 %v1825
    %2640 = vmatpush.bf16.msra.mxu0 %v1819
    %2641 = vmatpush.bf16.msra.mxu0 %v1813
    %2642 = vmatmul.bf16.gmra.mxu0 %v690
    %v2643 = vpop.f32.mrf.mxu0
    %v2644 = vadd.f32 %v2630, %v2643
    %v2645 = vpop.f32.mrf.mxu0
    %v2646 = vadd.f32 %v2632, %v2645
    %2647 = vdwg.mxu0
    %v2648 = vtanh.pop %v2224
    %v2649 = vtanh.pop %v2308
    %v2650 = vtanh.pop %v2392
    %v2651 = vtanh.pop %v2476
    %v2652 = vtanh.pop %v2560
    %v2653 = vtanh.pop %v2644
    %v2654 = vtanh.pop %v2226
    %v2655 = vtanh.pop %v2310
    %v2656 = vtanh.pop %v2394
    %v2657 = vtanh.pop %v2478
    %v2658 = vtanh.pop %v2562
    %v2659 = vtanh.pop %v2646
    %v2660 = vpack.c.bf16 %v2654, %v2648
    %v2661 = vpack.c.bf16 %v2655, %v2649
    %v2662 = vpack.c.bf16 %v2656, %v2650
    %v2663 = vpack.c.bf16 %v2657, %v2651
    %v2664 = vpack.c.bf16 %v2658, %v2652
    %v2665 = vpack.c.bf16 %v2659, %v2653
    %v2667 = vperm.slane %v672, 0
    %v2668 = vperm.slane %v672, 1
    %v2669 = vperm.slane %v672, 2
    %v2670 = vperm.slane %v672, 3
    %v2671 = vperm.slane %v672, 4
    %v2672 = vperm.slane %v672, 5
    %v2967 = vunpack.c.l.b16 %v384
    %v2968 = vunpack.c.h.b16 %v384
    %v2969 = vunpack.c.l.b16 %v385
    %v2970 = vunpack.c.h.b16 %v385
    %v2971 = vunpack.c.l.b16 %v386
    %v2972 = vunpack.c.h.b16 %v386
    %v2973 = vunpack.c.l.b16 %v387
    %v2974 = vunpack.c.h.b16 %v387
    %v2975 = vunpack.c.l.b16 %v388
    %v2976 = vunpack.c.h.b16 %v388
    %v2977 = vunpack.c.l.b16 %v389
    %v2978 = vunpack.c.h.b16 %v389
    %v2979 = vunpack.c.l.b16 %v390
    %v2980 = vunpack.c.h.b16 %v390
    %v2981 = vunpack.c.l.b16 %v391
    %v2982 = vunpack.c.h.b16 %v391
    %v2983 = vunpack.c.l.b16 %v392
    %v2984 = vunpack.c.h.b16 %v392
    %v2985 = vunpack.c.l.b16 %v393
    %v2986 = vunpack.c.h.b16 %v393
    %v2987 = vunpack.c.l.b16 %v394
    %v2988 = vunpack.c.h.b16 %v394
    %v2989 = vunpack.c.l.b16 %v395
    %v2990 = vunpack.c.h.b16 %v395
    %v2991 = vunpack.c.l.b16 %v396
    %v2992 = vunpack.c.h.b16 %v396
    %v2993 = vunpack.c.l.b16 %v397
    %v2994 = vunpack.c.h.b16 %v397
    %v2995 = vunpack.c.l.b16 %v398
    %v2996 = vunpack.c.h.b16 %v398
    %v2997 = vunpack.c.l.b16 %v399
    %v2998 = vunpack.c.h.b16 %v399
    %v2999 = vunpack.c.l.b16 %v400
    %v3000 = vunpack.c.h.b16 %v400
    %v3001 = vunpack.c.l.b16 %v401
    %v3002 = vunpack.c.h.b16 %v401
    %v3003 = vunpack.c.l.b16 %v402
    %v3004 = vunpack.c.h.b16 %v402
    %v3005 = vunpack.c.l.b16 %v403
    %v3006 = vunpack.c.h.b16 %v403
    %v3007 = vunpack.c.l.b16 %v404
    %v3008 = vunpack.c.h.b16 %v404
    %v3009 = vunpack.c.l.b16 %v405
    %v3010 = vunpack.c.h.b16 %v405
    %v3011 = vunpack.c.l.b16 %v406
    %v3012 = vunpack.c.h.b16 %v406
    %v3013 = vunpack.c.l.b16 %v407
    %v3014 = vunpack.c.h.b16 %v407
    %v3015 = vunpack.c.l.b16 %v408
    %v3016 = vunpack.c.h.b16 %v408
    %v3017 = vunpack.c.l.b16 %v409
    %v3018 = vunpack.c.h.b16 %v409
    %v3019 = vunpack.c.l.b16 %v410
    %v3020 = vunpack.c.h.b16 %v410
    %v3021 = vunpack.c.l.b16 %v411
    %v3022 = vunpack.c.h.b16 %v411
    %v3023 = vunpack.c.l.b16 %v412
    %v3024 = vunpack.c.h.b16 %v412
    %v3025 = vunpack.c.l.b16 %v413
    %v3026 = vunpack.c.h.b16 %v413
    %v3027 = vunpack.c.l.b16 %v414
    %v3028 = vunpack.c.h.b16 %v414
    %v3029 = vunpack.c.l.b16 %v415
    %v3030 = vunpack.c.h.b16 %v415
    %v3031 = vunpack.c.l.b16 %v416
    %v3032 = vunpack.c.h.b16 %v416
    %v3033 = vunpack.c.l.b16 %v417
    %v3034 = vunpack.c.h.b16 %v417
    %v3035 = vunpack.c.l.b16 %v418
    %v3036 = vunpack.c.h.b16 %v418
    %v3037 = vunpack.c.l.b16 %v419
    %v3038 = vunpack.c.h.b16 %v419
    %v3039 = vunpack.c.l.b16 %v420
    %v3040 = vunpack.c.h.b16 %v420
    %v3041 = vunpack.c.l.b16 %v421
    %v3042 = vunpack.c.h.b16 %v421
    %v3043 = vunpack.c.l.b16 %v422
    %v3044 = vunpack.c.h.b16 %v422
    %v3045 = vunpack.c.l.b16 %v423
    %v3046 = vunpack.c.h.b16 %v423
    %v3047 = vunpack.c.l.b16 %v424
    %v3048 = vunpack.c.h.b16 %v424
    %v3049 = vunpack.c.l.b16 %v425
    %v3050 = vunpack.c.h.b16 %v425
    %v3051 = vunpack.c.l.b16 %v426
    %v3052 = vunpack.c.h.b16 %v426
    %v3053 = vunpack.c.l.b16 %v427
    %v3054 = vunpack.c.h.b16 %v427
    %v3055 = vunpack.c.l.b16 %v428
    %v3056 = vunpack.c.h.b16 %v428
    %v3057 = vunpack.c.l.b16 %v429
    %v3058 = vunpack.c.h.b16 %v429
    %v3059 = vunpack.c.l.b16 %v430
    %v3060 = vunpack.c.h.b16 %v430
    %v3061 = vunpack.c.l.b16 %v431
    %v3062 = vunpack.c.h.b16 %v431
    %v3063 = vunpack.c.l.b16 %v432
    %v3064 = vunpack.c.h.b16 %v432
    %v3065 = vunpack.c.l.b16 %v433
    %v3066 = vunpack.c.h.b16 %v433
    %v3067 = vunpack.c.l.b16 %v434
    %v3068 = vunpack.c.h.b16 %v434
    %v3069 = vunpack.c.l.b16 %v435
    %v3070 = vunpack.c.h.b16 %v435
    %v3071 = vunpack.c.l.b16 %v436
    %v3072 = vunpack.c.h.b16 %v436
    %v3073 = vunpack.c.l.b16 %v437
    %v3074 = vunpack.c.h.b16 %v437
    %v3075 = vunpack.c.l.b16 %v438
    %v3076 = vunpack.c.h.b16 %v438
    %v3077 = vunpack.c.l.b16 %v439
    %v3078 = vunpack.c.h.b16 %v439
    %v3079 = vunpack.c.l.b16 %v440
    %v3080 = vunpack.c.h.b16 %v440
    %v3081 = vunpack.c.l.b16 %v441
    %v3082 = vunpack.c.h.b16 %v441
    %v3083 = vunpack.c.l.b16 %v442
    %v3084 = vunpack.c.h.b16 %v442
    %v3085 = vunpack.c.l.b16 %v443
    %v3086 = vunpack.c.h.b16 %v443
    %v3087 = vunpack.c.l.b16 %v444
    %v3088 = vunpack.c.h.b16 %v444
    %v3089 = vunpack.c.l.b16 %v445
    %v3090 = vunpack.c.h.b16 %v445
    %v3091 = vunpack.c.l.b16 %v446
    %v3092 = vunpack.c.h.b16 %v446
    %v3093 = vunpack.c.l.b16 %v447
    %v3094 = vunpack.c.h.b16 %v447
    %v3095 = vunpack.c.l.b16 %v448
    %v3096 = vunpack.c.h.b16 %v448
    %v3097 = vunpack.c.l.b16 %v449
    %v3098 = vunpack.c.h.b16 %v449
    %v3099 = vunpack.c.l.b16 %v450
    %v3100 = vunpack.c.h.b16 %v450
    %v3101 = vunpack.c.l.b16 %v451
    %v3102 = vunpack.c.h.b16 %v451
    %v3103 = vunpack.c.l.b16 %v452
    %v3104 = vunpack.c.h.b16 %v452
    %v3105 = vunpack.c.l.b16 %v453
    %v3106 = vunpack.c.h.b16 %v453
    %v3107 = vunpack.c.l.b16 %v454
    %v3108 = vunpack.c.h.b16 %v454
    %v3109 = vunpack.c.l.b16 %v455
    %v3110 = vunpack.c.h.b16 %v455
    %v3111 = vunpack.c.l.b16 %v456
    %v3112 = vunpack.c.h.b16 %v456
    %v3113 = vunpack.c.l.b16 %v457
    %v3114 = vunpack.c.h.b16 %v457
    %v3115 = vunpack.c.l.b16 %v458
    %v3116 = vunpack.c.h.b16 %v458
    %v3117 = vunpack.c.l.b16 %v459
    %v3118 = vunpack.c.h.b16 %v459
    %v3119 = vunpack.c.l.b16 %v460
    %v3120 = vunpack.c.h.b16 %v460
    %v3121 = vunpack.c.l.b16 %v461
    %v3122 = vunpack.c.h.b16 %v461
    %v3123 = vunpack.c.l.b16 %v462
    %v3124 = vunpack.c.h.b16 %v462
    %v3125 = vunpack.c.l.b16 %v463
    %v3126 = vunpack.c.h.b16 %v463
    %v3127 = vunpack.c.l.b16 %v464
    %v3128 = vunpack.c.h.b16 %v464
    %v3129 = vunpack.c.l.b16 %v465
    %v3130 = vunpack.c.h.b16 %v465
    %v3131 = vunpack.c.l.b16 %v466
    %v3132 = vunpack.c.h.b16 %v466
    %v3133 = vunpack.c.l.b16 %v467
    %v3134 = vunpack.c.h.b16 %v467
    %v3135 = vunpack.c.l.b16 %v468
    %v3136 = vunpack.c.h.b16 %v468
    %v3137 = vunpack.c.l.b16 %v469
    %v3138 = vunpack.c.h.b16 %v469
    %v3139 = vunpack.c.l.b16 %v470
    %v3140 = vunpack.c.h.b16 %v470
    %v3141 = vunpack.c.l.b16 %v471
    %v3142 = vunpack.c.h.b16 %v471
    %v3143 = vunpack.c.l.b16 %v472
    %v3144 = vunpack.c.h.b16 %v472
    %v3145 = vunpack.c.l.b16 %v473
    %v3146 = vunpack.c.h.b16 %v473
    %v3147 = vunpack.c.l.b16 %v474
    %v3148 = vunpack.c.h.b16 %v474
    %v3149 = vunpack.c.l.b16 %v475
    %v3150 = vunpack.c.h.b16 %v475
    %v3151 = vunpack.c.l.b16 %v476
    %v3152 = vunpack.c.h.b16 %v476
    %v3153 = vunpack.c.l.b16 %v477
    %v3154 = vunpack.c.h.b16 %v477
    %v3155 = vunpack.c.l.b16 %v478
    %v3156 = vunpack.c.h.b16 %v478
    %v3157 = vunpack.c.l.b16 %v479
    %v3158 = vunpack.c.h.b16 %v479
    %v3159 = vunpack.c.l.b16 %v480
    %v3160 = vunpack.c.h.b16 %v480
    %v3161 = vunpack.c.l.b16 %v481
    %v3162 = vunpack.c.h.b16 %v481
    %v3163 = vunpack.c.l.b16 %v482
    %v3164 = vunpack.c.h.b16 %v482
    %v3165 = vunpack.c.l.b16 %v483
    %v3166 = vunpack.c.h.b16 %v483
    %v3167 = vunpack.c.l.b16 %v484
    %v3168 = vunpack.c.h.b16 %v484
    %v3169 = vunpack.c.l.b16 %v485
    %v3170 = vunpack.c.h.b16 %v485
    %v3171 = vunpack.c.l.b16 %v486
    %v3172 = vunpack.c.h.b16 %v486
    %v3173 = vunpack.c.l.b16 %v487
    %v3174 = vunpack.c.h.b16 %v487
    %v3175 = vunpack.c.l.b16 %v488
    %v3176 = vunpack.c.h.b16 %v488
    %v3177 = vunpack.c.l.b16 %v489
    %v3178 = vunpack.c.h.b16 %v489
    %v3179 = vunpack.c.l.b16 %v490
    %v3180 = vunpack.c.h.b16 %v490
    %v3181 = vunpack.c.l.b16 %v491
    %v3182 = vunpack.c.h.b16 %v491
    %v3183 = vunpack.c.l.b16 %v492
    %v3184 = vunpack.c.h.b16 %v492
    %v3185 = vunpack.c.l.b16 %v493
    %v3186 = vunpack.c.h.b16 %v493
    %v3187 = vunpack.c.l.b16 %v494
    %v3188 = vunpack.c.h.b16 %v494
    %v3189 = vunpack.c.l.b16 %v495
    %v3190 = vunpack.c.h.b16 %v495
    %v3191 = vunpack.c.l.b16 %v496
    %v3192 = vunpack.c.h.b16 %v496
    %v3193 = vunpack.c.l.b16 %v497
    %v3194 = vunpack.c.h.b16 %v497
    %v3195 = vunpack.c.l.b16 %v498
    %v3196 = vunpack.c.h.b16 %v498
    %v3197 = vunpack.c.l.b16 %v499
    %v3198 = vunpack.c.h.b16 %v499
    %v3199 = vunpack.c.l.b16 %v500
    %v3200 = vunpack.c.h.b16 %v500
    %v3201 = vunpack.c.l.b16 %v501
    %v3202 = vunpack.c.h.b16 %v501
    %v3203 = vunpack.c.l.b16 %v502
    %v3204 = vunpack.c.h.b16 %v502
    %v3205 = vunpack.c.l.b16 %v503
    %v3206 = vunpack.c.h.b16 %v503
    %v3207 = vunpack.c.l.b16 %v504
    %v3208 = vunpack.c.h.b16 %v504
    %v3209 = vunpack.c.l.b16 %v505
    %v3210 = vunpack.c.h.b16 %v505
    %v3211 = vunpack.c.l.b16 %v506
    %v3212 = vunpack.c.h.b16 %v506
    %v3213 = vunpack.c.l.b16 %v507
    %v3214 = vunpack.c.h.b16 %v507
    %v3215 = vunpack.c.l.b16 %v508
    %v3216 = vunpack.c.h.b16 %v508
    %v3217 = vunpack.c.l.b16 %v509
    %v3218 = vunpack.c.h.b16 %v509
    %v3219 = vunpack.c.l.b16 %v510
    %v3220 = vunpack.c.h.b16 %v510
    %v3221 = vunpack.c.l.b16 %v511
    %v3222 = vunpack.c.h.b16 %v511
    %v3223 = vunpack.c.l.b16 %v512
    %v3224 = vunpack.c.h.b16 %v512
    %v3225 = vunpack.c.l.b16 %v513
    %v3226 = vunpack.c.h.b16 %v513
    %v3227 = vunpack.c.l.b16 %v514
    %v3228 = vunpack.c.h.b16 %v514
    %v3229 = vunpack.c.l.b16 %v515
    %v3230 = vunpack.c.h.b16 %v515
    %v3231 = vunpack.c.l.b16 %v516
    %v3232 = vunpack.c.h.b16 %v516
    %v3233 = vunpack.c.l.b16 %v517
    %v3234 = vunpack.c.h.b16 %v517
    %v3235 = vunpack.c.l.b16 %v518
    %v3236 = vunpack.c.h.b16 %v518
    %v3237 = vunpack.c.l.b16 %v519
    %v3238 = vunpack.c.h.b16 %v519
    %v3239 = vunpack.c.l.b16 %v520
    %v3240 = vunpack.c.h.b16 %v520
    %v3241 = vunpack.c.l.b16 %v521
    %v3242 = vunpack.c.h.b16 %v521
    %v3243 = vunpack.c.l.b16 %v522
    %v3244 = vunpack.c.h.b16 %v522
    %v3245 = vunpack.c.l.b16 %v523
    %v3246 = vunpack.c.h.b16 %v523
    %v3247 = vunpack.c.l.b16 %v524
    %v3248 = vunpack.c.h.b16 %v524
    %v3249 = vunpack.c.l.b16 %v525
    %v3250 = vunpack.c.h.b16 %v525
    %v3251 = vunpack.c.l.b16 %v526
    %v3252 = vunpack.c.h.b16 %v526
    %v3253 = vunpack.c.l.b16 %v527
    %v3254 = vunpack.c.h.b16 %v527
    %v3255 = vunpack.c.l.b16 %v528
    %v3256 = vunpack.c.h.b16 %v528
    %v3257 = vunpack.c.l.b16 %v529
    %v3258 = vunpack.c.h.b16 %v529
    %v3259 = vunpack.c.l.b16 %v530
    %v3260 = vunpack.c.h.b16 %v530
    %v3261 = vunpack.c.l.b16 %v531
    %v3262 = vunpack.c.h.b16 %v531
    %v3263 = vunpack.c.l.b16 %v532
    %v3264 = vunpack.c.h.b16 %v532
    %v3265 = vunpack.c.l.b16 %v533
    %v3266 = vunpack.c.h.b16 %v533
    %v3267 = vunpack.c.l.b16 %v534
    %v3268 = vunpack.c.h.b16 %v534
    %v3269 = vunpack.c.l.b16 %v535
    %v3270 = vunpack.c.h.b16 %v535
    %v3271 = vunpack.c.l.b16 %v536
    %v3272 = vunpack.c.h.b16 %v536
    %v3273 = vunpack.c.l.b16 %v537
    %v3274 = vunpack.c.h.b16 %v537
    %v3275 = vunpack.c.l.b16 %v538
    %v3276 = vunpack.c.h.b16 %v538
    %v3277 = vunpack.c.l.b16 %v539
    %v3278 = vunpack.c.h.b16 %v539
    %v3279 = vunpack.c.l.b16 %v540
    %v3280 = vunpack.c.h.b16 %v540
    %v3281 = vunpack.c.l.b16 %v541
    %v3282 = vunpack.c.h.b16 %v541
    %v3283 = vunpack.c.l.b16 %v542
    %v3284 = vunpack.c.h.b16 %v542
    %v3285 = vunpack.c.l.b16 %v543
    %v3286 = vunpack.c.h.b16 %v543
    %v3287 = vunpack.c.l.b16 %v544
    %v3288 = vunpack.c.h.b16 %v544
    %v3289 = vunpack.c.l.b16 %v545
    %v3290 = vunpack.c.h.b16 %v545
    %v3291 = vunpack.c.l.b16 %v546
    %v3292 = vunpack.c.h.b16 %v546
    %v3293 = vunpack.c.l.b16 %v547
    %v3294 = vunpack.c.h.b16 %v547
    %v3295 = vunpack.c.l.b16 %v548
    %v3296 = vunpack.c.h.b16 %v548
    %v3297 = vunpack.c.l.b16 %v549
    %v3298 = vunpack.c.h.b16 %v549
    %v3299 = vunpack.c.l.b16 %v550
    %v3300 = vunpack.c.h.b16 %v550
    %v3301 = vunpack.c.l.b16 %v551
    %v3302 = vunpack.c.h.b16 %v551
    %v3303 = vunpack.c.l.b16 %v552
    %v3304 = vunpack.c.h.b16 %v552
    %v3305 = vunpack.c.l.b16 %v553
    %v3306 = vunpack.c.h.b16 %v553
    %v3307 = vunpack.c.l.b16 %v554
    %v3308 = vunpack.c.h.b16 %v554
    %v3309 = vunpack.c.l.b16 %v555
    %v3310 = vunpack.c.h.b16 %v555
    %v3311 = vunpack.c.l.b16 %v556
    %v3312 = vunpack.c.h.b16 %v556
    %v3313 = vunpack.c.l.b16 %v557
    %v3314 = vunpack.c.h.b16 %v557
    %v3315 = vunpack.c.l.b16 %v558
    %v3316 = vunpack.c.h.b16 %v558
    %v3317 = vunpack.c.l.b16 %v559
    %v3318 = vunpack.c.h.b16 %v559
    %v3319 = vunpack.c.l.b16 %v560
    %v3320 = vunpack.c.h.b16 %v560
    %v3321 = vunpack.c.l.b16 %v561
    %v3322 = vunpack.c.h.b16 %v561
    %v3323 = vunpack.c.l.b16 %v562
    %v3324 = vunpack.c.h.b16 %v562
    %v3325 = vunpack.c.l.b16 %v563
    %v3326 = vunpack.c.h.b16 %v563
    %v3327 = vunpack.c.l.b16 %v564
    %v3328 = vunpack.c.h.b16 %v564
    %v3329 = vunpack.c.l.b16 %v565
    %v3330 = vunpack.c.h.b16 %v565
    %v3331 = vunpack.c.l.b16 %v566
    %v3332 = vunpack.c.h.b16 %v566
    %v3333 = vunpack.c.l.b16 %v567
    %v3334 = vunpack.c.h.b16 %v567
    %v3335 = vunpack.c.l.b16 %v568
    %v3336 = vunpack.c.h.b16 %v568
    %v3337 = vunpack.c.l.b16 %v569
    %v3338 = vunpack.c.h.b16 %v569
    %v3339 = vunpack.c.l.b16 %v570
    %v3340 = vunpack.c.h.b16 %v570
    %v3341 = vunpack.c.l.b16 %v571
    %v3342 = vunpack.c.h.b16 %v571
    %v3343 = vunpack.c.l.b16 %v572
    %v3344 = vunpack.c.h.b16 %v572
    %v3345 = vunpack.c.l.b16 %v573
    %v3346 = vunpack.c.h.b16 %v573
    %v3347 = vunpack.c.l.b16 %v574
    %v3348 = vunpack.c.h.b16 %v574
    %v3349 = vunpack.c.l.b16 %v575
    %v3350 = vunpack.c.h.b16 %v575
    %v3351 = vunpack.c.l.b16 %v576
    %v3352 = vunpack.c.h.b16 %v576
    %v3353 = vunpack.c.l.b16 %v577
    %v3354 = vunpack.c.h.b16 %v577
    %v3355 = vunpack.c.l.b16 %v578
    %v3356 = vunpack.c.h.b16 %v578
    %v3357 = vunpack.c.l.b16 %v579
    %v3358 = vunpack.c.h.b16 %v579
    %v3359 = vunpack.c.l.b16 %v580
    %v3360 = vunpack.c.h.b16 %v580
    %v3361 = vunpack.c.l.b16 %v581
    %v3362 = vunpack.c.h.b16 %v581
    %v3363 = vunpack.c.l.b16 %v582
    %v3364 = vunpack.c.h.b16 %v582
    %v3365 = vunpack.c.l.b16 %v583
    %v3366 = vunpack.c.h.b16 %v583
    %v3367 = vunpack.c.l.b16 %v584
    %v3368 = vunpack.c.h.b16 %v584
    %v3369 = vunpack.c.l.b16 %v585
    %v3370 = vunpack.c.h.b16 %v585
    %v3371 = vunpack.c.l.b16 %v586
    %v3372 = vunpack.c.h.b16 %v586
    %v3373 = vunpack.c.l.b16 %v587
    %v3374 = vunpack.c.h.b16 %v587
    %v3375 = vunpack.c.l.b16 %v588
    %v3376 = vunpack.c.h.b16 %v588
    %v3377 = vunpack.c.l.b16 %v589
    %v3378 = vunpack.c.h.b16 %v589
    %v3379 = vunpack.c.l.b16 %v590
    %v3380 = vunpack.c.h.b16 %v590
    %v3381 = vunpack.c.l.b16 %v591
    %v3382 = vunpack.c.h.b16 %v591
    %v3383 = vunpack.c.l.b16 %v592
    %v3384 = vunpack.c.h.b16 %v592
    %v3385 = vunpack.c.l.b16 %v593
    %v3386 = vunpack.c.h.b16 %v593
    %v3387 = vunpack.c.l.b16 %v594
    %v3388 = vunpack.c.h.b16 %v594
    %v3389 = vunpack.c.l.b16 %v595
    %v3390 = vunpack.c.h.b16 %v595
    %v3391 = vunpack.c.l.b16 %v596
    %v3392 = vunpack.c.h.b16 %v596
    %v3393 = vunpack.c.l.b16 %v597
    %v3394 = vunpack.c.h.b16 %v597
    %v3395 = vunpack.c.l.b16 %v598
    %v3396 = vunpack.c.h.b16 %v598
    %v3397 = vunpack.c.l.b16 %v599
    %v3398 = vunpack.c.h.b16 %v599
    %v3399 = vunpack.c.l.b16 %v600
    %v3400 = vunpack.c.h.b16 %v600
    %v3401 = vunpack.c.l.b16 %v601
    %v3402 = vunpack.c.h.b16 %v601
    %v3403 = vunpack.c.l.b16 %v602
    %v3404 = vunpack.c.h.b16 %v602
    %v3405 = vunpack.c.l.b16 %v603
    %v3406 = vunpack.c.h.b16 %v603
    %v3407 = vunpack.c.l.b16 %v604
    %v3408 = vunpack.c.h.b16 %v604
    %v3409 = vunpack.c.l.b16 %v605
    %v3410 = vunpack.c.h.b16 %v605
    %v3411 = vunpack.c.l.b16 %v606
    %v3412 = vunpack.c.h.b16 %v606
    %v3413 = vunpack.c.l.b16 %v607
    %v3414 = vunpack.c.h.b16 %v607
    %v3415 = vunpack.c.l.b16 %v608
    %v3416 = vunpack.c.h.b16 %v608
    %v3417 = vunpack.c.l.b16 %v609
    %v3418 = vunpack.c.h.b16 %v609
    %v3419 = vunpack.c.l.b16 %v610
    %v3420 = vunpack.c.h.b16 %v610
    %v3421 = vunpack.c.l.b16 %v611
    %v3422 = vunpack.c.h.b16 %v611
    %v3423 = vunpack.c.l.b16 %v612
    %v3424 = vunpack.c.h.b16 %v612
    %v3425 = vunpack.c.l.b16 %v613
    %v3426 = vunpack.c.h.b16 %v613
    %v3427 = vunpack.c.l.b16 %v614
    %v3428 = vunpack.c.h.b16 %v614
    %v3429 = vunpack.c.l.b16 %v615
    %v3430 = vunpack.c.h.b16 %v615
    %v3431 = vunpack.c.l.b16 %v616
    %v3432 = vunpack.c.h.b16 %v616
    %v3433 = vunpack.c.l.b16 %v617
    %v3434 = vunpack.c.h.b16 %v617
    %v3435 = vunpack.c.l.b16 %v618
    %v3436 = vunpack.c.h.b16 %v618
    %v3437 = vunpack.c.l.b16 %v619
    %v3438 = vunpack.c.h.b16 %v619
    %v3439 = vunpack.c.l.b16 %v620
    %v3440 = vunpack.c.h.b16 %v620
    %v3441 = vunpack.c.l.b16 %v621
    %v3442 = vunpack.c.h.b16 %v621
    %v3443 = vunpack.c.l.b16 %v622
    %v3444 = vunpack.c.h.b16 %v622
    %v3445 = vunpack.c.l.b16 %v623
    %v3446 = vunpack.c.h.b16 %v623
    %v3447 = vunpack.c.l.b16 %v624
    %v3448 = vunpack.c.h.b16 %v624
    %v3449 = vunpack.c.l.b16 %v625
    %v3450 = vunpack.c.h.b16 %v625
    %v3451 = vunpack.c.l.b16 %v626
    %v3452 = vunpack.c.h.b16 %v626
    %v3453 = vunpack.c.l.b16 %v627
    %v3454 = vunpack.c.h.b16 %v627
    %v3455 = vunpack.c.l.b16 %v628
    %v3456 = vunpack.c.h.b16 %v628
    %v3457 = vunpack.c.l.b16 %v629
    %v3458 = vunpack.c.h.b16 %v629
    %v3459 = vunpack.c.l.b16 %v630
    %v3460 = vunpack.c.h.b16 %v630
    %v3461 = vunpack.c.l.b16 %v631
    %v3462 = vunpack.c.h.b16 %v631
    %v3463 = vunpack.c.l.b16 %v632
    %v3464 = vunpack.c.h.b16 %v632
    %v3465 = vunpack.c.l.b16 %v633
    %v3466 = vunpack.c.h.b16 %v633
    %v3467 = vunpack.c.l.b16 %v634
    %v3468 = vunpack.c.h.b16 %v634
    %v3469 = vunpack.c.l.b16 %v635
    %v3470 = vunpack.c.h.b16 %v635
    %v3471 = vunpack.c.l.b16 %v636
    %v3472 = vunpack.c.h.b16 %v636
    %v3473 = vunpack.c.l.b16 %v637
    %v3474 = vunpack.c.h.b16 %v637
    %v3475 = vunpack.c.l.b16 %v638
    %v3476 = vunpack.c.h.b16 %v638
    %v3477 = vunpack.c.l.b16 %v639
    %v3478 = vunpack.c.h.b16 %v639
    %v3479 = vunpack.c.l.b16 %v640
    %v3480 = vunpack.c.h.b16 %v640
    %v3481 = vunpack.c.l.b16 %v641
    %v3482 = vunpack.c.h.b16 %v641
    %v3483 = vunpack.c.l.b16 %v642
    %v3484 = vunpack.c.h.b16 %v642
    %v3485 = vunpack.c.l.b16 %v643
    %v3486 = vunpack.c.h.b16 %v643
    %v3487 = vunpack.c.l.b16 %v644
    %v3488 = vunpack.c.h.b16 %v644
    %v3489 = vunpack.c.l.b16 %v645
    %v3490 = vunpack.c.h.b16 %v645
    %v3491 = vunpack.c.l.b16 %v646
    %v3492 = vunpack.c.h.b16 %v646
    %v3493 = vunpack.c.l.b16 %v647
    %v3494 = vunpack.c.h.b16 %v647
    %v3495 = vunpack.c.l.b16 %v648
    %v3496 = vunpack.c.h.b16 %v648
    %v3497 = vunpack.c.l.b16 %v649
    %v3498 = vunpack.c.h.b16 %v649
    %v3499 = vunpack.c.l.b16 %v650
    %v3500 = vunpack.c.h.b16 %v650
    %v3501 = vunpack.c.l.b16 %v651
    %v3502 = vunpack.c.h.b16 %v651
    %v3503 = vunpack.c.l.b16 %v652
    %v3504 = vunpack.c.h.b16 %v652
    %v3505 = vunpack.c.l.b16 %v653
    %v3506 = vunpack.c.h.b16 %v653
    %v3507 = vunpack.c.l.b16 %v654
    %v3508 = vunpack.c.h.b16 %v654
    %v3509 = vunpack.c.l.b16 %v655
    %v3510 = vunpack.c.h.b16 %v655
    %v3511 = vunpack.c.l.b16 %v656
    %v3512 = vunpack.c.h.b16 %v656
    %v3513 = vunpack.c.l.b16 %v657
    %v3514 = vunpack.c.h.b16 %v657
    %v3515 = vunpack.c.l.b16 %v658
    %v3516 = vunpack.c.h.b16 %v658
    %v3517 = vunpack.c.l.b16 %v659
    %v3518 = vunpack.c.h.b16 %v659
    %v3519 = vunpack.c.l.b16 %v660
    %v3520 = vunpack.c.h.b16 %v660
    %v3521 = vunpack.c.l.b16 %v661
    %v3522 = vunpack.c.h.b16 %v661
    %v3523 = vunpack.c.l.b16 %v662
    %v3524 = vunpack.c.h.b16 %v662
    %v3525 = vunpack.c.l.b16 %v663
    %v3526 = vunpack.c.h.b16 %v663
    %v3527 = vunpack.c.l.b16 %v664
    %v3528 = vunpack.c.h.b16 %v664
    %v3529 = vunpack.c.l.b16 %v665
    %v3530 = vunpack.c.h.b16 %v665
    %v3531 = vunpack.c.l.b16 %v666
    %v3532 = vunpack.c.h.b16 %v666
    %v3533 = vunpack.c.l.b16 %v667
    %v3534 = vunpack.c.h.b16 %v667
    %v3535 = vunpack.c.l.b16 %v668
    %v3536 = vunpack.c.h.b16 %v668
    %v3537 = vunpack.c.l.b16 %v669
    %v3538 = vunpack.c.h.b16 %v669
    %v3539 = vunpack.c.l.b16 %v670
    %v3540 = vunpack.c.h.b16 %v670
    %v3541 = vunpack.c.l.b16 %v671
    %v3542 = vunpack.c.h.b16 %v671
    %v3543 = vpack.c.b16 %v2973, %v2967
    %v3544 = vpack.c.b16 %v2974, %v2968
    %v3545 = vpack.c.b16 %v2975, %v2969
    %v3546 = vpack.c.b16 %v2976, %v2970
    %v3547 = vpack.c.b16 %v2977, %v2971
    %v3548 = vpack.c.b16 %v2978, %v2972
    %v3549 = vpack.c.b16 %v2985, %v2979
    %v3550 = vpack.c.b16 %v2986, %v2980
    %v3551 = vpack.c.b16 %v2987, %v2981
    %v3552 = vpack.c.b16 %v2988, %v2982
    %v3553 = vpack.c.b16 %v2989, %v2983
    %v3554 = vpack.c.b16 %v2990, %v2984
    %v3555 = vpack.c.b16 %v2997, %v2991
    %v3556 = vpack.c.b16 %v2998, %v2992
    %v3557 = vpack.c.b16 %v2999, %v2993
    %v3558 = vpack.c.b16 %v3000, %v2994
    %v3559 = vpack.c.b16 %v3001, %v2995
    %v3560 = vpack.c.b16 %v3002, %v2996
    %v3561 = vpack.c.b16 %v3009, %v3003
    %v3562 = vpack.c.b16 %v3010, %v3004
    %v3563 = vpack.c.b16 %v3011, %v3005
    %v3564 = vpack.c.b16 %v3012, %v3006
    %v3565 = vpack.c.b16 %v3013, %v3007
    %v3566 = vpack.c.b16 %v3014, %v3008
    %v3567 = vpack.c.b16 %v3021, %v3015
    %v3568 = vpack.c.b16 %v3022, %v3016
    %v3569 = vpack.c.b16 %v3023, %v3017
    %v3570 = vpack.c.b16 %v3024, %v3018
    %v3571 = vpack.c.b16 %v3025, %v3019
    %v3572 = vpack.c.b16 %v3026, %v3020
    %v3573 = vpack.c.b16 %v3033, %v3027
    %v3574 = vpack.c.b16 %v3034, %v3028
    %v3575 = vpack.c.b16 %v3035, %v3029
    %v3576 = vpack.c.b16 %v3036, %v3030
    %v3577 = vpack.c.b16 %v3037, %v3031
    %v3578 = vpack.c.b16 %v3038, %v3032
    %v3579 = vpack.c.b16 %v3045, %v3039
    %v3580 = vpack.c.b16 %v3046, %v3040
    %v3581 = vpack.c.b16 %v3047, %v3041
    %v3582 = vpack.c.b16 %v3048, %v3042
    %v3583 = vpack.c.b16 %v3049, %v3043
    %v3584 = vpack.c.b16 %v3050, %v3044
    %v3585 = vpack.c.b16 %v3057, %v3051
    %v3586 = vpack.c.b16 %v3058, %v3052
    %v3587 = vpack.c.b16 %v3059, %v3053
    %v3588 = vpack.c.b16 %v3060, %v3054
    %v3589 = vpack.c.b16 %v3061, %v3055
    %v3590 = vpack.c.b16 %v3062, %v3056
    %v3591 = vpack.c.b16 %v3069, %v3063
    %v3592 = vpack.c.b16 %v3070, %v3064
    %v3593 = vpack.c.b16 %v3071, %v3065
    %v3594 = vpack.c.b16 %v3072, %v3066
    %v3595 = vpack.c.b16 %v3073, %v3067
    %v3596 = vpack.c.b16 %v3074, %v3068
    %v3597 = vpack.c.b16 %v3081, %v3075
    %v3598 = vpack.c.b16 %v3082, %v3076
    %v3599 = vpack.c.b16 %v3083, %v3077
    %v3600 = vpack.c.b16 %v3084, %v3078
    %v3601 = vpack.c.b16 %v3085, %v3079
    %v3602 = vpack.c.b16 %v3086, %v3080
    %v3603 = vpack.c.b16 %v3093, %v3087
    %v3604 = vpack.c.b16 %v3094, %v3088
    %v3605 = vpack.c.b16 %v3095, %v3089
    %v3606 = vpack.c.b16 %v3096, %v3090
    %v3607 = vpack.c.b16 %v3097, %v3091
    %v3608 = vpack.c.b16 %v3098, %v3092
    %v3609 = vpack.c.b16 %v3105, %v3099
    %v3610 = vpack.c.b16 %v3106, %v3100
    %v3611 = vpack.c.b16 %v3107, %v3101
    %v3612 = vpack.c.b16 %v3108, %v3102
    %v3613 = vpack.c.b16 %v3109, %v3103
    %v3614 = vpack.c.b16 %v3110, %v3104
    %v3615 = vpack.c.b16 %v3117, %v3111
    %v3616 = vpack.c.b16 %v3118, %v3112
    %v3617 = vpack.c.b16 %v3119, %v3113
    %v3618 = vpack.c.b16 %v3120, %v3114
    %v3619 = vpack.c.b16 %v3121, %v3115
    %v3620 = vpack.c.b16 %v3122, %v3116
    %v3621 = vpack.c.b16 %v3129, %v3123
    %v3622 = vpack.c.b16 %v3130, %v3124
    %v3623 = vpack.c.b16 %v3131, %v3125
    %v3624 = vpack.c.b16 %v3132, %v3126
    %v3625 = vpack.c.b16 %v3133, %v3127
    %v3626 = vpack.c.b16 %v3134, %v3128
    %v3627 = vpack.c.b16 %v3141, %v3135
    %v3628 = vpack.c.b16 %v3142, %v3136
    %v3629 = vpack.c.b16 %v3143, %v3137
    %v3630 = vpack.c.b16 %v3144, %v3138
    %v3631 = vpack.c.b16 %v3145, %v3139
    %v3632 = vpack.c.b16 %v3146, %v3140
    %v3633 = vpack.c.b16 %v3153, %v3147
    %v3634 = vpack.c.b16 %v3154, %v3148
    %v3635 = vpack.c.b16 %v3155, %v3149
    %v3636 = vpack.c.b16 %v3156, %v3150
    %v3637 = vpack.c.b16 %v3157, %v3151
    %v3638 = vpack.c.b16 %v3158, %v3152
    %v3639 = vpack.c.b16 %v3165, %v3159
    %v3640 = vpack.c.b16 %v3166, %v3160
    %v3641 = vpack.c.b16 %v3167, %v3161
    %v3642 = vpack.c.b16 %v3168, %v3162
    %v3643 = vpack.c.b16 %v3169, %v3163
    %v3644 = vpack.c.b16 %v3170, %v3164
    %v3645 = vpack.c.b16 %v3177, %v3171
    %v3646 = vpack.c.b16 %v3178, %v3172
    %v3647 = vpack.c.b16 %v3179, %v3173
    %v3648 = vpack.c.b16 %v3180, %v3174
    %v3649 = vpack.c.b16 %v3181, %v3175
    %v3650 = vpack.c.b16 %v3182, %v3176
    %v3651 = vpack.c.b16 %v3189, %v3183
    %v3652 = vpack.c.b16 %v3190, %v3184
    %v3653 = vpack.c.b16 %v3191, %v3185
    %v3654 = vpack.c.b16 %v3192, %v3186
    %v3655 = vpack.c.b16 %v3193, %v3187
    %v3656 = vpack.c.b16 %v3194, %v3188
    %v3657 = vpack.c.b16 %v3201, %v3195
    %v3658 = vpack.c.b16 %v3202, %v3196
    %v3659 = vpack.c.b16 %v3203, %v3197
    %v3660 = vpack.c.b16 %v3204, %v3198
    %v3661 = vpack.c.b16 %v3205, %v3199
    %v3662 = vpack.c.b16 %v3206, %v3200
    %v3663 = vpack.c.b16 %v3213, %v3207
    %v3664 = vpack.c.b16 %v3214, %v3208
    %v3665 = vpack.c.b16 %v3215, %v3209
    %v3666 = vpack.c.b16 %v3216, %v3210
    %v3667 = vpack.c.b16 %v3217, %v3211
    %v3668 = vpack.c.b16 %v3218, %v3212
    %v3669 = vpack.c.b16 %v3225, %v3219
    %v3670 = vpack.c.b16 %v3226, %v3220
    %v3671 = vpack.c.b16 %v3227, %v3221
    %v3672 = vpack.c.b16 %v3228, %v3222
    %v3673 = vpack.c.b16 %v3229, %v3223
    %v3674 = vpack.c.b16 %v3230, %v3224
    %v3675 = vpack.c.b16 %v3237, %v3231
    %v3676 = vpack.c.b16 %v3238, %v3232
    %v3677 = vpack.c.b16 %v3239, %v3233
    %v3678 = vpack.c.b16 %v3240, %v3234
    %v3679 = vpack.c.b16 %v3241, %v3235
    %v3680 = vpack.c.b16 %v3242, %v3236
    %v3681 = vpack.c.b16 %v3249, %v3243
    %v3682 = vpack.c.b16 %v3250, %v3244
    %v3683 = vpack.c.b16 %v3251, %v3245
    %v3684 = vpack.c.b16 %v3252, %v3246
    %v3685 = vpack.c.b16 %v3253, %v3247
    %v3686 = vpack.c.b16 %v3254, %v3248
    %v3687 = vpack.c.b16 %v3261, %v3255
    %v3688 = vpack.c.b16 %v3262, %v3256
    %v3689 = vpack.c.b16 %v3263, %v3257
    %v3690 = vpack.c.b16 %v3264, %v3258
    %v3691 = vpack.c.b16 %v3265, %v3259
    %v3692 = vpack.c.b16 %v3266, %v3260
    %v3693 = vpack.c.b16 %v3273, %v3267
    %v3694 = vpack.c.b16 %v3274, %v3268
    %v3695 = vpack.c.b16 %v3275, %v3269
    %v3696 = vpack.c.b16 %v3276, %v3270
    %v3697 = vpack.c.b16 %v3277, %v3271
    %v3698 = vpack.c.b16 %v3278, %v3272
    %v3699 = vpack.c.b16 %v3285, %v3279
    %v3700 = vpack.c.b16 %v3286, %v3280
    %v3701 = vpack.c.b16 %v3287, %v3281
    %v3702 = vpack.c.b16 %v3288, %v3282
    %v3703 = vpack.c.b16 %v3289, %v3283
    %v3704 = vpack.c.b16 %v3290, %v3284
    %v3705 = vpack.c.b16 %v3297, %v3291
    %v3706 = vpack.c.b16 %v3298, %v3292
    %v3707 = vpack.c.b16 %v3299, %v3293
    %v3708 = vpack.c.b16 %v3300, %v3294
    %v3709 = vpack.c.b16 %v3301, %v3295
    %v3710 = vpack.c.b16 %v3302, %v3296
    %v3711 = vpack.c.b16 %v3309, %v3303
    %v3712 = vpack.c.b16 %v3310, %v3304
    %v3713 = vpack.c.b16 %v3311, %v3305
    %v3714 = vpack.c.b16 %v3312, %v3306
    %v3715 = vpack.c.b16 %v3313, %v3307
    %v3716 = vpack.c.b16 %v3314, %v3308
    %v3717 = vpack.c.b16 %v3321, %v3315
    %v3718 = vpack.c.b16 %v3322, %v3316
    %v3719 = vpack.c.b16 %v3323, %v3317
    %v3720 = vpack.c.b16 %v3324, %v3318
    %v3721 = vpack.c.b16 %v3325, %v3319
    %v3722 = vpack.c.b16 %v3326, %v3320
    %v3723 = vpack.c.b16 %v3333, %v3327
    %v3724 = vpack.c.b16 %v3334, %v3328
    %v3725 = vpack.c.b16 %v3335, %v3329
    %v3726 = vpack.c.b16 %v3336, %v3330
    %v3727 = vpack.c.b16 %v3337, %v3331
    %v3728 = vpack.c.b16 %v3338, %v3332
    %v3729 = vpack.c.b16 %v3345, %v3339
    %v3730 = vpack.c.b16 %v3346, %v3340
    %v3731 = vpack.c.b16 %v3347, %v3341
    %v3732 = vpack.c.b16 %v3348, %v3342
    %v3733 = vpack.c.b16 %v3349, %v3343
    %v3734 = vpack.c.b16 %v3350, %v3344
    %v3735 = vpack.c.b16 %v3357, %v3351
    %v3736 = vpack.c.b16 %v3358, %v3352
    %v3737 = vpack.c.b16 %v3359, %v3353
    %v3738 = vpack.c.b16 %v3360, %v3354
    %v3739 = vpack.c.b16 %v3361, %v3355
    %v3740 = vpack.c.b16 %v3362, %v3356
    %v3741 = vpack.c.b16 %v3369, %v3363
    %v3742 = vpack.c.b16 %v3370, %v3364
    %v3743 = vpack.c.b16 %v3371, %v3365
    %v3744 = vpack.c.b16 %v3372, %v3366
    %v3745 = vpack.c.b16 %v3373, %v3367
    %v3746 = vpack.c.b16 %v3374, %v3368
    %v3747 = vpack.c.b16 %v3381, %v3375
    %v3748 = vpack.c.b16 %v3382, %v3376
    %v3749 = vpack.c.b16 %v3383, %v3377
    %v3750 = vpack.c.b16 %v3384, %v3378
    %v3751 = vpack.c.b16 %v3385, %v3379
    %v3752 = vpack.c.b16 %v3386, %v3380
    %v3753 = vpack.c.b16 %v3393, %v3387
    %v3754 = vpack.c.b16 %v3394, %v3388
    %v3755 = vpack.c.b16 %v3395, %v3389
    %v3756 = vpack.c.b16 %v3396, %v3390
    %v3757 = vpack.c.b16 %v3397, %v3391
    %v3758 = vpack.c.b16 %v3398, %v3392
    %v3759 = vpack.c.b16 %v3405, %v3399
    %v3760 = vpack.c.b16 %v3406, %v3400
    %v3761 = vpack.c.b16 %v3407, %v3401
    %v3762 = vpack.c.b16 %v3408, %v3402
    %v3763 = vpack.c.b16 %v3409, %v3403
    %v3764 = vpack.c.b16 %v3410, %v3404
    %v3765 = vpack.c.b16 %v3417, %v3411
    %v3766 = vpack.c.b16 %v3418, %v3412
    %v3767 = vpack.c.b16 %v3419, %v3413
    %v3768 = vpack.c.b16 %v3420, %v3414
    %v3769 = vpack.c.b16 %v3421, %v3415
    %v3770 = vpack.c.b16 %v3422, %v3416
    %v3771 = vpack.c.b16 %v3429, %v3423
    %v3772 = vpack.c.b16 %v3430, %v3424
    %v3773 = vpack.c.b16 %v3431, %v3425
    %v3774 = vpack.c.b16 %v3432, %v3426
    %v3775 = vpack.c.b16 %v3433, %v3427
    %v3776 = vpack.c.b16 %v3434, %v3428
    %v3777 = vpack.c.b16 %v3441, %v3435
    %v3778 = vpack.c.b16 %v3442, %v3436
    %v3779 = vpack.c.b16 %v3443, %v3437
    %v3780 = vpack.c.b16 %v3444, %v3438
    %v3781 = vpack.c.b16 %v3445, %v3439
    %v3782 = vpack.c.b16 %v3446, %v3440
    %v3783 = vpack.c.b16 %v3453, %v3447
    %v3784 = vpack.c.b16 %v3454, %v3448
    %v3785 = vpack.c.b16 %v3455, %v3449
    %v3786 = vpack.c.b16 %v3456, %v3450
    %v3787 = vpack.c.b16 %v3457, %v3451
    %v3788 = vpack.c.b16 %v3458, %v3452
    %v3789 = vpack.c.b16 %v3465, %v3459
    %v3790 = vpack.c.b16 %v3466, %v3460
    %v3791 = vpack.c.b16 %v3467, %v3461
    %v3792 = vpack.c.b16 %v3468, %v3462
    %v3793 = vpack.c.b16 %v3469, %v3463
    %v3794 = vpack.c.b16 %v3470, %v3464
    %v3795 = vpack.c.b16 %v3477, %v3471
    %v3796 = vpack.c.b16 %v3478, %v3472
    %v3797 = vpack.c.b16 %v3479, %v3473
    %v3798 = vpack.c.b16 %v3480, %v3474
    %v3799 = vpack.c.b16 %v3481, %v3475
    %v3800 = vpack.c.b16 %v3482, %v3476
    %v3801 = vpack.c.b16 %v3489, %v3483
    %v3802 = vpack.c.b16 %v3490, %v3484
    %v3803 = vpack.c.b16 %v3491, %v3485
    %v3804 = vpack.c.b16 %v3492, %v3486
    %v3805 = vpack.c.b16 %v3493, %v3487
    %v3806 = vpack.c.b16 %v3494, %v3488
    %v3807 = vpack.c.b16 %v3501, %v3495
    %v3808 = vpack.c.b16 %v3502, %v3496
    %v3809 = vpack.c.b16 %v3503, %v3497
    %v3810 = vpack.c.b16 %v3504, %v3498
    %v3811 = vpack.c.b16 %v3505, %v3499
    %v3812 = vpack.c.b16 %v3506, %v3500
    %v3813 = vpack.c.b16 %v3513, %v3507
    %v3814 = vpack.c.b16 %v3514, %v3508
    %v3815 = vpack.c.b16 %v3515, %v3509
    %v3816 = vpack.c.b16 %v3516, %v3510
    %v3817 = vpack.c.b16 %v3517, %v3511
    %v3818 = vpack.c.b16 %v3518, %v3512
    %v3819 = vpack.c.b16 %v3525, %v3519
    %v3820 = vpack.c.b16 %v3526, %v3520
    %v3821 = vpack.c.b16 %v3527, %v3521
    %v3822 = vpack.c.b16 %v3528, %v3522
    %v3823 = vpack.c.b16 %v3529, %v3523
    %v3824 = vpack.c.b16 %v3530, %v3524
    %v3825 = vpack.c.b16 %v3537, %v3531
    %v3826 = vpack.c.b16 %v3538, %v3532
    %v3827 = vpack.c.b16 %v3539, %v3533
    %v3828 = vpack.c.b16 %v3540, %v3534
    %v3829 = vpack.c.b16 %v3541, %v3535
    %v3830 = vpack.c.b16 %v3542, %v3536
    %4119 = vmatpush.bf16.msra.mxu0 %v3585
    %4120 = vmatpush.bf16.msra.mxu0 %v3579
    %4121 = vmatpush.bf16.msra.mxu0 %v3573
    %4122 = vmatpush.bf16.msra.mxu0 %v3567
    %4123 = vmatpush.bf16.msra.mxu0 %v3561
    %4124 = vmatpush.bf16.msra.mxu0 %v3555
    %4125 = vmatpush.bf16.msra.mxu0 %v3549
    %4126 = vmatpush.bf16.msra.mxu0 %v3543
    %4127 = vmatmul.bf16.gmra.mxu0 %v2660
    %v4128 = vpop.f32.mrf.mxu0
    %v4129 = vadd.f32 %v2667, %v4128
    %v4130 = vpop.f32.mrf.mxu0
    %v4131 = vadd.f32 %v2667, %v4130
    %4132 = vdwg.mxu0
    %4133 = vmatpush.bf16.msra.mxu0 %v3633
    %4134 = vmatpush.bf16.msra.mxu0 %v3627
    %4135 = vmatpush.bf16.msra.mxu0 %v3621
    %4136 = vmatpush.bf16.msra.mxu0 %v3615
    %4137 = vmatpush.bf16.msra.mxu0 %v3609
    %4138 = vmatpush.bf16.msra.mxu0 %v3603
    %4139 = vmatpush.bf16.msra.mxu0 %v3597
    %4140 = vmatpush.bf16.msra.mxu0 %v3591
    %4141 = vmatmul.bf16.gmra.mxu0 %v2661
    %v4142 = vpop.f32.mrf.mxu0
    %v4143 = vadd.f32 %v4129, %v4142
    %v4144 = vpop.f32.mrf.mxu0
    %v4145 = vadd.f32 %v4131, %v4144
    %4146 = vdwg.mxu0
    %4147 = vmatpush.bf16.msra.mxu0 %v3681
    %4148 = vmatpush.bf16.msra.mxu0 %v3675
    %4149 = vmatpush.bf16.msra.mxu0 %v3669
    %4150 = vmatpush.bf16.msra.mxu0 %v3663
    %4151 = vmatpush.bf16.msra.mxu0 %v3657
    %4152 = vmatpush.bf16.msra.mxu0 %v3651
    %4153 = vmatpush.bf16.msra.mxu0 %v3645
    %4154 = vmatpush.bf16.msra.mxu0 %v3639
    %4155 = vmatmul.bf16.gmra.mxu0 %v2662
    %v4156 = vpop.f32.mrf.mxu0
    %v4157 = vadd.f32 %v4143, %v4156
    %v4158 = vpop.f32.mrf.mxu0
    %v4159 = vadd.f32 %v4145, %v4158
    %4160 = vdwg.mxu0
    %4161 = vmatpush.bf16.msra.mxu0 %v3729
    %4162 = vmatpush.bf16.msra.mxu0 %v3723
    %4163 = vmatpush.bf16.msra.mxu0 %v3717
    %4164 = vmatpush.bf16.msra.mxu0 %v3711
    %4165 = vmatpush.bf16.msra.mxu0 %v3705
    %4166 = vmatpush.bf16.msra.mxu0 %v3699
    %4167 = vmatpush.bf16.msra.mxu0 %v3693
    %4168 = vmatpush.bf16.msra.mxu0 %v3687
    %4169 = vmatmul.bf16.gmra.mxu0 %v2663
    %v4170 = vpop.f32.mrf.mxu0
    %v4171 = vadd.f32 %v4157, %v4170
    %v4172 = vpop.f32.mrf.mxu0
    %v4173 = vadd.f32 %v4159, %v4172
    %4174 = vdwg.mxu0
    %4175 = vmatpush.bf16.msra.mxu0 %v3777
    %4176 = vmatpush.bf16.msra.mxu0 %v3771
    %4177 = vmatpush.bf16.msra.mxu0 %v3765
    %4178 = vmatpush.bf16.msra.mxu0 %v3759
    %4179 = vmatpush.bf16.msra.mxu0 %v3753
    %4180 = vmatpush.bf16.msra.mxu0 %v3747
    %4181 = vmatpush.bf16.msra.mxu0 %v3741
    %4182 = vmatpush.bf16.msra.mxu0 %v3735
    %4183 = vmatmul.bf16.gmra.mxu0 %v2664
    %v4184 = vpop.f32.mrf.mxu0
    %v4185 = vadd.f32 %v4171, %v4184
    %v4186 = vpop.f32.mrf.mxu0
    %v4187 = vadd.f32 %v4173, %v4186
    %4188 = vdwg.mxu0
    %4189 = vmatpush.bf16.msra.mxu0 %v3825
    %4190 = vmatpush.bf16.msra.mxu0 %v3819
    %4191 = vmatpush.bf16.msra.mxu0 %v3813
    %4192 = vmatpush.bf16.msra.mxu0 %v3807
    %4193 = vmatpush.bf16.msra.mxu0 %v3801
    %4194 = vmatpush.bf16.msra.mxu0 %v3795
    %4195 = vmatpush.bf16.msra.mxu0 %v3789
    %4196 = vmatpush.bf16.msra.mxu0 %v3783
    %4197 = vmatmul.bf16.gmra.mxu0 %v2665
    %v4198 = vpop.f32.mrf.mxu0
    %v4199 = vadd.f32 %v4185, %v4198
    %v4200 = vpop.f32.mrf.mxu0
    %v4201 = vadd.f32 %v4187, %v4200
    %4202 = vdwg.mxu0
    %4203 = vmatpush.bf16.msra.mxu0 %v3586
    %4204 = vmatpush.bf16.msra.mxu0 %v3580
    %4205 = vmatpush.bf16.msra.mxu0 %v3574
    %4206 = vmatpush.bf16.msra.mxu0 %v3568
    %4207 = vmatpush.bf16.msra.mxu0 %v3562
    %4208 = vmatpush.bf16.msra.mxu0 %v3556
    %4209 = vmatpush.bf16.msra.mxu0 %v3550
    %4210 = vmatpush.bf16.msra.mxu0 %v3544
    %4211 = vmatmul.bf16.gmra.mxu0 %v2660
    %v4212 = vpop.f32.mrf.mxu0
    %v4213 = vadd.f32 %v2668, %v4212
    %v4214 = vpop.f32.mrf.mxu0
    %v4215 = vadd.f32 %v2668, %v4214
    %4216 = vdwg.mxu0
    %4217 = vmatpush.bf16.msra.mxu0 %v3634
    %4218 = vmatpush.bf16.msra.mxu0 %v3628
    %4219 = vmatpush.bf16.msra.mxu0 %v3622
    %4220 = vmatpush.bf16.msra.mxu0 %v3616
    %4221 = vmatpush.bf16.msra.mxu0 %v3610
    %4222 = vmatpush.bf16.msra.mxu0 %v3604
    %4223 = vmatpush.bf16.msra.mxu0 %v3598
    %4224 = vmatpush.bf16.msra.mxu0 %v3592
    %4225 = vmatmul.bf16.gmra.mxu0 %v2661
    %v4226 = vpop.f32.mrf.mxu0
    %v4227 = vadd.f32 %v4213, %v4226
    %v4228 = vpop.f32.mrf.mxu0
    %v4229 = vadd.f32 %v4215, %v4228
    %4230 = vdwg.mxu0
    %4231 = vmatpush.bf16.msra.mxu0 %v3682
    %4232 = vmatpush.bf16.msra.mxu0 %v3676
    %4233 = vmatpush.bf16.msra.mxu0 %v3670
    %4234 = vmatpush.bf16.msra.mxu0 %v3664
    %4235 = vmatpush.bf16.msra.mxu0 %v3658
    %4236 = vmatpush.bf16.msra.mxu0 %v3652
    %4237 = vmatpush.bf16.msra.mxu0 %v3646
    %4238 = vmatpush.bf16.msra.mxu0 %v3640
    %4239 = vmatmul.bf16.gmra.mxu0 %v2662
    %v4240 = vpop.f32.mrf.mxu0
    %v4241 = vadd.f32 %v4227, %v4240
    %v4242 = vpop.f32.mrf.mxu0
    %v4243 = vadd.f32 %v4229, %v4242
    %4244 = vdwg.mxu0
    %4245 = vmatpush.bf16.msra.mxu0 %v3730
    %4246 = vmatpush.bf16.msra.mxu0 %v3724
    %4247 = vmatpush.bf16.msra.mxu0 %v3718
    %4248 = vmatpush.bf16.msra.mxu0 %v3712
    %4249 = vmatpush.bf16.msra.mxu0 %v3706
    %4250 = vmatpush.bf16.msra.mxu0 %v3700
    %4251 = vmatpush.bf16.msra.mxu0 %v3694
    %4252 = vmatpush.bf16.msra.mxu0 %v3688
    %4253 = vmatmul.bf16.gmra.mxu0 %v2663
    %v4254 = vpop.f32.mrf.mxu0
    %v4255 = vadd.f32 %v4241, %v4254
    %v4256 = vpop.f32.mrf.mxu0
    %v4257 = vadd.f32 %v4243, %v4256
    %4258 = vdwg.mxu0
    %4259 = vmatpush.bf16.msra.mxu0 %v3778
    %4260 = vmatpush.bf16.msra.mxu0 %v3772
    %4261 = vmatpush.bf16.msra.mxu0 %v3766
    %4262 = vmatpush.bf16.msra.mxu0 %v3760
    %4263 = vmatpush.bf16.msra.mxu0 %v3754
    %4264 = vmatpush.bf16.msra.mxu0 %v3748
    %4265 = vmatpush.bf16.msra.mxu0 %v3742
    %4266 = vmatpush.bf16.msra.mxu0 %v3736
    %4267 = vmatmul.bf16.gmra.mxu0 %v2664
    %v4268 = vpop.f32.mrf.mxu0
    %v4269 = vadd.f32 %v4255, %v4268
    %v4270 = vpop.f32.mrf.mxu0
    %v4271 = vadd.f32 %v4257, %v4270
    %4272 = vdwg.mxu0
    %4273 = vmatpush.bf16.msra.mxu0 %v3826
    %4274 = vmatpush.bf16.msra.mxu0 %v3820
    %4275 = vmatpush.bf16.msra.mxu0 %v3814
    %4276 = vmatpush.bf16.msra.mxu0 %v3808
    %4277 = vmatpush.bf16.msra.mxu0 %v3802
    %4278 = vmatpush.bf16.msra.mxu0 %v3796
    %4279 = vmatpush.bf16.msra.mxu0 %v3790
    %4280 = vmatpush.bf16.msra.mxu0 %v3784
    %4281 = vmatmul.bf16.gmra.mxu0 %v2665
    %v4282 = vpop.f32.mrf.mxu0
    %v4283 = vadd.f32 %v4269, %v4282
    %v4284 = vpop.f32.mrf.mxu0
    %v4285 = vadd.f32 %v4271, %v4284
    %4286 = vdwg.mxu0
    %4287 = vmatpush.bf16.msra.mxu0 %v3587
    %4288 = vmatpush.bf16.msra.mxu0 %v3581
    %4289 = vmatpush.bf16.msra.mxu0 %v3575
    %4290 = vmatpush.bf16.msra.mxu0 %v3569
    %4291 = vmatpush.bf16.msra.mxu0 %v3563
    %4292 = vmatpush.bf16.msra.mxu0 %v3557
    %4293 = vmatpush.bf16.msra.mxu0 %v3551
    %4294 = vmatpush.bf16.msra.mxu0 %v3545
    %4295 = vmatmul.bf16.gmra.mxu0 %v2660
    %v4296 = vpop.f32.mrf.mxu0
    %v4297 = vadd.f32 %v2669, %v4296
    %v4298 = vpop.f32.mrf.mxu0
    %v4299 = vadd.f32 %v2669, %v4298
    %4300 = vdwg.mxu0
    %4301 = vmatpush.bf16.msra.mxu0 %v3635
    %4302 = vmatpush.bf16.msra.mxu0 %v3629
    %4303 = vmatpush.bf16.msra.mxu0 %v3623
    %4304 = vmatpush.bf16.msra.mxu0 %v3617
    %4305 = vmatpush.bf16.msra.mxu0 %v3611
    %4306 = vmatpush.bf16.msra.mxu0 %v3605
    %4307 = vmatpush.bf16.msra.mxu0 %v3599
    %4308 = vmatpush.bf16.msra.mxu0 %v3593
    %4309 = vmatmul.bf16.gmra.mxu0 %v2661
    %v4310 = vpop.f32.mrf.mxu0
    %v4311 = vadd.f32 %v4297, %v4310
    %v4312 = vpop.f32.mrf.mxu0
    %v4313 = vadd.f32 %v4299, %v4312
    %4314 = vdwg.mxu0
    %4315 = vmatpush.bf16.msra.mxu0 %v3683
    %4316 = vmatpush.bf16.msra.mxu0 %v3677
    %4317 = vmatpush.bf16.msra.mxu0 %v3671
    %4318 = vmatpush.bf16.msra.mxu0 %v3665
    %4319 = vmatpush.bf16.msra.mxu0 %v3659
    %4320 = vmatpush.bf16.msra.mxu0 %v3653
    %4321 = vmatpush.bf16.msra.mxu0 %v3647
    %4322 = vmatpush.bf16.msra.mxu0 %v3641
    %4323 = vmatmul.bf16.gmra.mxu0 %v2662
    %v4324 = vpop.f32.mrf.mxu0
    %v4325 = vadd.f32 %v4311, %v4324
    %v4326 = vpop.f32.mrf.mxu0
    %v4327 = vadd.f32 %v4313, %v4326
    %4328 = vdwg.mxu0
    %4329 = vmatpush.bf16.msra.mxu0 %v3731
    %4330 = vmatpush.bf16.msra.mxu0 %v3725
    %4331 = vmatpush.bf16.msra.mxu0 %v3719
    %4332 = vmatpush.bf16.msra.mxu0 %v3713
    %4333 = vmatpush.bf16.msra.mxu0 %v3707
    %4334 = vmatpush.bf16.msra.mxu0 %v3701
    %4335 = vmatpush.bf16.msra.mxu0 %v3695
    %4336 = vmatpush.bf16.msra.mxu0 %v3689
    %4337 = vmatmul.bf16.gmra.mxu0 %v2663
    %v4338 = vpop.f32.mrf.mxu0
    %v4339 = vadd.f32 %v4325, %v4338
    %v4340 = vpop.f32.mrf.mxu0
    %v4341 = vadd.f32 %v4327, %v4340
    %4342 = vdwg.mxu0
    %4343 = vmatpush.bf16.msra.mxu0 %v3779
    %4344 = vmatpush.bf16.msra.mxu0 %v3773
    %4345 = vmatpush.bf16.msra.mxu0 %v3767
    %4346 = vmatpush.bf16.msra.mxu0 %v3761
    %4347 = vmatpush.bf16.msra.mxu0 %v3755
    %4348 = vmatpush.bf16.msra.mxu0 %v3749
    %4349 = vmatpush.bf16.msra.mxu0 %v3743
    %4350 = vmatpush.bf16.msra.mxu0 %v3737
    %4351 = vmatmul.bf16.gmra.mxu0 %v2664
    %v4352 = vpop.f32.mrf.mxu0
    %v4353 = vadd.f32 %v4339, %v4352
    %v4354 = vpop.f32.mrf.mxu0
    %v4355 = vadd.f32 %v4341, %v4354
    %4356 = vdwg.mxu0
    %4357 = vmatpush.bf16.msra.mxu0 %v3827
    %4358 = vmatpush.bf16.msra.mxu0 %v3821
    %4359 = vmatpush.bf16.msra.mxu0 %v3815
    %4360 = vmatpush.bf16.msra.mxu0 %v3809
    %4361 = vmatpush.bf16.msra.mxu0 %v3803
    %4362 = vmatpush.bf16.msra.mxu0 %v3797
    %4363 = vmatpush.bf16.msra.mxu0 %v3791
    %4364 = vmatpush.bf16.msra.mxu0 %v3785
    %4365 = vmatmul.bf16.gmra.mxu0 %v2665
    %v4366 = vpop.f32.mrf.mxu0
    %v4367 = vadd.f32 %v4353, %v4366
    %v4368 = vpop.f32.mrf.mxu0
    %v4369 = vadd.f32 %v4355, %v4368
    %4370 = vdwg.mxu0
    %4371 = vmatpush.bf16.msra.mxu0 %v3588
    %4372 = vmatpush.bf16.msra.mxu0 %v3582
    %4373 = vmatpush.bf16.msra.mxu0 %v3576
    %4374 = vmatpush.bf16.msra.mxu0 %v3570
    %4375 = vmatpush.bf16.msra.mxu0 %v3564
    %4376 = vmatpush.bf16.msra.mxu0 %v3558
    %4377 = vmatpush.bf16.msra.mxu0 %v3552
    %4378 = vmatpush.bf16.msra.mxu0 %v3546
    %4379 = vmatmul.bf16.gmra.mxu0 %v2660
    %v4380 = vpop.f32.mrf.mxu0
    %v4381 = vadd.f32 %v2670, %v4380
    %v4382 = vpop.f32.mrf.mxu0
    %v4383 = vadd.f32 %v2670, %v4382
    %4384 = vdwg.mxu0
    %4385 = vmatpush.bf16.msra.mxu0 %v3636
    %4386 = vmatpush.bf16.msra.mxu0 %v3630
    %4387 = vmatpush.bf16.msra.mxu0 %v3624
    %4388 = vmatpush.bf16.msra.mxu0 %v3618
    %4389 = vmatpush.bf16.msra.mxu0 %v3612
    %4390 = vmatpush.bf16.msra.mxu0 %v3606
    %4391 = vmatpush.bf16.msra.mxu0 %v3600
    %4392 = vmatpush.bf16.msra.mxu0 %v3594
    %4393 = vmatmul.bf16.gmra.mxu0 %v2661
    %v4394 = vpop.f32.mrf.mxu0
    %v4395 = vadd.f32 %v4381, %v4394
    %v4396 = vpop.f32.mrf.mxu0
    %v4397 = vadd.f32 %v4383, %v4396
    %4398 = vdwg.mxu0
    %4399 = vmatpush.bf16.msra.mxu0 %v3684
    %4400 = vmatpush.bf16.msra.mxu0 %v3678
    %4401 = vmatpush.bf16.msra.mxu0 %v3672
    %4402 = vmatpush.bf16.msra.mxu0 %v3666
    %4403 = vmatpush.bf16.msra.mxu0 %v3660
    %4404 = vmatpush.bf16.msra.mxu0 %v3654
    %4405 = vmatpush.bf16.msra.mxu0 %v3648
    %4406 = vmatpush.bf16.msra.mxu0 %v3642
    %4407 = vmatmul.bf16.gmra.mxu0 %v2662
    %v4408 = vpop.f32.mrf.mxu0
    %v4409 = vadd.f32 %v4395, %v4408
    %v4410 = vpop.f32.mrf.mxu0
    %v4411 = vadd.f32 %v4397, %v4410
    %4412 = vdwg.mxu0
    %4413 = vmatpush.bf16.msra.mxu0 %v3732
    %4414 = vmatpush.bf16.msra.mxu0 %v3726
    %4415 = vmatpush.bf16.msra.mxu0 %v3720
    %4416 = vmatpush.bf16.msra.mxu0 %v3714
    %4417 = vmatpush.bf16.msra.mxu0 %v3708
    %4418 = vmatpush.bf16.msra.mxu0 %v3702
    %4419 = vmatpush.bf16.msra.mxu0 %v3696
    %4420 = vmatpush.bf16.msra.mxu0 %v3690
    %4421 = vmatmul.bf16.gmra.mxu0 %v2663
    %v4422 = vpop.f32.mrf.mxu0
    %v4423 = vadd.f32 %v4409, %v4422
    %v4424 = vpop.f32.mrf.mxu0
    %v4425 = vadd.f32 %v4411, %v4424
    %4426 = vdwg.mxu0
    %4427 = vmatpush.bf16.msra.mxu0 %v3780
    %4428 = vmatpush.bf16.msra.mxu0 %v3774
    %4429 = vmatpush.bf16.msra.mxu0 %v3768
    %4430 = vmatpush.bf16.msra.mxu0 %v3762
    %4431 = vmatpush.bf16.msra.mxu0 %v3756
    %4432 = vmatpush.bf16.msra.mxu0 %v3750
    %4433 = vmatpush.bf16.msra.mxu0 %v3744
    %4434 = vmatpush.bf16.msra.mxu0 %v3738
    %4435 = vmatmul.bf16.gmra.mxu0 %v2664
    %v4436 = vpop.f32.mrf.mxu0
    %v4437 = vadd.f32 %v4423, %v4436
    %v4438 = vpop.f32.mrf.mxu0
    %v4439 = vadd.f32 %v4425, %v4438
    %4440 = vdwg.mxu0
    %4441 = vmatpush.bf16.msra.mxu0 %v3828
    %4442 = vmatpush.bf16.msra.mxu0 %v3822
    %4443 = vmatpush.bf16.msra.mxu0 %v3816
    %4444 = vmatpush.bf16.msra.mxu0 %v3810
    %4445 = vmatpush.bf16.msra.mxu0 %v3804
    %4446 = vmatpush.bf16.msra.mxu0 %v3798
    %4447 = vmatpush.bf16.msra.mxu0 %v3792
    %4448 = vmatpush.bf16.msra.mxu0 %v3786
    %4449 = vmatmul.bf16.gmra.mxu0 %v2665
    %v4450 = vpop.f32.mrf.mxu0
    %v4451 = vadd.f32 %v4437, %v4450
    %v4452 = vpop.f32.mrf.mxu0
    %v4453 = vadd.f32 %v4439, %v4452
    %4454 = vdwg.mxu0
    %4455 = vmatpush.bf16.msra.mxu0 %v3589
    %4456 = vmatpush.bf16.msra.mxu0 %v3583
    %4457 = vmatpush.bf16.msra.mxu0 %v3577
    %4458 = vmatpush.bf16.msra.mxu0 %v3571
    %4459 = vmatpush.bf16.msra.mxu0 %v3565
    %4460 = vmatpush.bf16.msra.mxu0 %v3559
    %4461 = vmatpush.bf16.msra.mxu0 %v3553
    %4462 = vmatpush.bf16.msra.mxu0 %v3547
    %4463 = vmatmul.bf16.gmra.mxu0 %v2660
    %v4464 = vpop.f32.mrf.mxu0
    %v4465 = vadd.f32 %v2671, %v4464
    %v4466 = vpop.f32.mrf.mxu0
    %v4467 = vadd.f32 %v2671, %v4466
    %4468 = vdwg.mxu0
    %4469 = vmatpush.bf16.msra.mxu0 %v3637
    %4470 = vmatpush.bf16.msra.mxu0 %v3631
    %4471 = vmatpush.bf16.msra.mxu0 %v3625
    %4472 = vmatpush.bf16.msra.mxu0 %v3619
    %4473 = vmatpush.bf16.msra.mxu0 %v3613
    %4474 = vmatpush.bf16.msra.mxu0 %v3607
    %4475 = vmatpush.bf16.msra.mxu0 %v3601
    %4476 = vmatpush.bf16.msra.mxu0 %v3595
    %4477 = vmatmul.bf16.gmra.mxu0 %v2661
    %v4478 = vpop.f32.mrf.mxu0
    %v4479 = vadd.f32 %v4465, %v4478
    %v4480 = vpop.f32.mrf.mxu0
    %v4481 = vadd.f32 %v4467, %v4480
    %4482 = vdwg.mxu0
    %4483 = vmatpush.bf16.msra.mxu0 %v3685
    %4484 = vmatpush.bf16.msra.mxu0 %v3679
    %4485 = vmatpush.bf16.msra.mxu0 %v3673
    %4486 = vmatpush.bf16.msra.mxu0 %v3667
    %4487 = vmatpush.bf16.msra.mxu0 %v3661
    %4488 = vmatpush.bf16.msra.mxu0 %v3655
    %4489 = vmatpush.bf16.msra.mxu0 %v3649
    %4490 = vmatpush.bf16.msra.mxu0 %v3643
    %4491 = vmatmul.bf16.gmra.mxu0 %v2662
    %v4492 = vpop.f32.mrf.mxu0
    %v4493 = vadd.f32 %v4479, %v4492
    %v4494 = vpop.f32.mrf.mxu0
    %v4495 = vadd.f32 %v4481, %v4494
    %4496 = vdwg.mxu0
    %4497 = vmatpush.bf16.msra.mxu0 %v3733
    %4498 = vmatpush.bf16.msra.mxu0 %v3727
    %4499 = vmatpush.bf16.msra.mxu0 %v3721
    %4500 = vmatpush.bf16.msra.mxu0 %v3715
    %4501 = vmatpush.bf16.msra.mxu0 %v3709
    %4502 = vmatpush.bf16.msra.mxu0 %v3703
    %4503 = vmatpush.bf16.msra.mxu0 %v3697
    %4504 = vmatpush.bf16.msra.mxu0 %v3691
    %4505 = vmatmul.bf16.gmra.mxu0 %v2663
    %v4506 = vpop.f32.mrf.mxu0
    %v4507 = vadd.f32 %v4493, %v4506
    %v4508 = vpop.f32.mrf.mxu0
    %v4509 = vadd.f32 %v4495, %v4508
    %4510 = vdwg.mxu0
    %4511 = vmatpush.bf16.msra.mxu0 %v3781
    %4512 = vmatpush.bf16.msra.mxu0 %v3775
    %4513 = vmatpush.bf16.msra.mxu0 %v3769
    %4514 = vmatpush.bf16.msra.mxu0 %v3763
    %4515 = vmatpush.bf16.msra.mxu0 %v3757
    %4516 = vmatpush.bf16.msra.mxu0 %v3751
    %4517 = vmatpush.bf16.msra.mxu0 %v3745
    %4518 = vmatpush.bf16.msra.mxu0 %v3739
    %4519 = vmatmul.bf16.gmra.mxu0 %v2664
    %v4520 = vpop.f32.mrf.mxu0
    %v4521 = vadd.f32 %v4507, %v4520
    %v4522 = vpop.f32.mrf.mxu0
    %v4523 = vadd.f32 %v4509, %v4522
    %4524 = vdwg.mxu0
    %4525 = vmatpush.bf16.msra.mxu0 %v3829
    %4526 = vmatpush.bf16.msra.mxu0 %v3823
    %4527 = vmatpush.bf16.msra.mxu0 %v3817
    %4528 = vmatpush.bf16.msra.mxu0 %v3811
    %4529 = vmatpush.bf16.msra.mxu0 %v3805
    %4530 = vmatpush.bf16.msra.mxu0 %v3799
    %4531 = vmatpush.bf16.msra.mxu0 %v3793
    %4532 = vmatpush.bf16.msra.mxu0 %v3787
    %4533 = vmatmul.bf16.gmra.mxu0 %v2665
    %v4534 = vpop.f32.mrf.mxu0
    %v4535 = vadd.f32 %v4521, %v4534
    %v4536 = vpop.f32.mrf.mxu0
    %v4537 = vadd.f32 %v4523, %v4536
    %4538 = vdwg.mxu0
    %4539 = vmatpush.bf16.msra.mxu0 %v3590
    %4540 = vmatpush.bf16.msra.mxu0 %v3584
    %4541 = vmatpush.bf16.msra.mxu0 %v3578
    %4542 = vmatpush.bf16.msra.mxu0 %v3572
    %4543 = vmatpush.bf16.msra.mxu0 %v3566
    %4544 = vmatpush.bf16.msra.mxu0 %v3560
    %4545 = vmatpush.bf16.msra.mxu0 %v3554
    %4546 = vmatpush.bf16.msra.mxu0 %v3548
    %4547 = vmatmul.bf16.gmra.mxu0 %v2660
    %v4548 = vpop.f32.mrf.mxu0
    %v4549 = vadd.f32 %v2672, %v4548
    %v4550 = vpop.f32.mrf.mxu0
    %v4551 = vadd.f32 %v2672, %v4550
    %4552 = vdwg.mxu0
    %4553 = vmatpush.bf16.msra.mxu0 %v3638
    %4554 = vmatpush.bf16.msra.mxu0 %v3632
    %4555 = vmatpush.bf16.msra.mxu0 %v3626
    %4556 = vmatpush.bf16.msra.mxu0 %v3620
    %4557 = vmatpush.bf16.msra.mxu0 %v3614
    %4558 = vmatpush.bf16.msra.mxu0 %v3608
    %4559 = vmatpush.bf16.msra.mxu0 %v3602
    %4560 = vmatpush.bf16.msra.mxu0 %v3596
    %4561 = vmatmul.bf16.gmra.mxu0 %v2661
    %v4562 = vpop.f32.mrf.mxu0
    %v4563 = vadd.f32 %v4549, %v4562
    %v4564 = vpop.f32.mrf.mxu0
    %v4565 = vadd.f32 %v4551, %v4564
    %4566 = vdwg.mxu0
    %4567 = vmatpush.bf16.msra.mxu0 %v3686
    %4568 = vmatpush.bf16.msra.mxu0 %v3680
    %4569 = vmatpush.bf16.msra.mxu0 %v3674
    %4570 = vmatpush.bf16.msra.mxu0 %v3668
    %4571 = vmatpush.bf16.msra.mxu0 %v3662
    %4572 = vmatpush.bf16.msra.mxu0 %v3656
    %4573 = vmatpush.bf16.msra.mxu0 %v3650
    %4574 = vmatpush.bf16.msra.mxu0 %v3644
    %4575 = vmatmul.bf16.gmra.mxu0 %v2662
    %v4576 = vpop.f32.mrf.mxu0
    %v4577 = vadd.f32 %v4563, %v4576
    %v4578 = vpop.f32.mrf.mxu0
    %v4579 = vadd.f32 %v4565, %v4578
    %4580 = vdwg.mxu0
    %4581 = vmatpush.bf16.msra.mxu0 %v3734
    %4582 = vmatpush.bf16.msra.mxu0 %v3728
    %4583 = vmatpush.bf16.msra.mxu0 %v3722
    %4584 = vmatpush.bf16.msra.mxu0 %v3716
    %4585 = vmatpush.bf16.msra.mxu0 %v3710
    %4586 = vmatpush.bf16.msra.mxu0 %v3704
    %4587 = vmatpush.bf16.msra.mxu0 %v3698
    %4588 = vmatpush.bf16.msra.mxu0 %v3692
    %4589 = vmatmul.bf16.gmra.mxu0 %v2663
    %v4590 = vpop.f32.mrf.mxu0
    %v4591 = vadd.f32 %v4577, %v4590
    %v4592 = vpop.f32.mrf.mxu0
    %v4593 = vadd.f32 %v4579, %v4592
    %4594 = vdwg.mxu0
    %4595 = vmatpush.bf16.msra.mxu0 %v3782
    %4596 = vmatpush.bf16.msra.mxu0 %v3776
    %4597 = vmatpush.bf16.msra.mxu0 %v3770
    %4598 = vmatpush.bf16.msra.mxu0 %v3764
    %4599 = vmatpush.bf16.msra.mxu0 %v3758
    %4600 = vmatpush.bf16.msra.mxu0 %v3752
    %4601 = vmatpush.bf16.msra.mxu0 %v3746
    %4602 = vmatpush.bf16.msra.mxu0 %v3740
    %4603 = vmatmul.bf16.gmra.mxu0 %v2664
    %v4604 = vpop.f32.mrf.mxu0
    %v4605 = vadd.f32 %v4591, %v4604
    %v4606 = vpop.f32.mrf.mxu0
    %v4607 = vadd.f32 %v4593, %v4606
    %4608 = vdwg.mxu0
    %4609 = vmatpush.bf16.msra.mxu0 %v3830
    %4610 = vmatpush.bf16.msra.mxu0 %v3824
    %4611 = vmatpush.bf16.msra.mxu0 %v3818
    %4612 = vmatpush.bf16.msra.mxu0 %v3812
    %4613 = vmatpush.bf16.msra.mxu0 %v3806
    %4614 = vmatpush.bf16.msra.mxu0 %v3800
    %4615 = vmatpush.bf16.msra.mxu0 %v3794
    %4616 = vmatpush.bf16.msra.mxu0 %v3788
    %4617 = vmatmul.bf16.gmra.mxu0 %v2665
    %v4618 = vpop.f32.mrf.mxu0
    %v4619 = vadd.f32 %v4605, %v4618
    %v4620 = vpop.f32.mrf.mxu0
    %v4621 = vadd.f32 %v4607, %v4620
    %4622 = vdwg.mxu0
    %4623 = vst [vmem:[#allocation11] sm:$0xff] %v4199
    %4624 = vst [vmem:[#allocation11 + $0x8] sm:$0xff] %v4283
    %4625 = vst [vmem:[#allocation11 + $0x10] sm:$0xff] %v4367
    %4626 = vst [vmem:[#allocation11 + $0x18] sm:$0xff] %v4451
    %4627 = vst [vmem:[#allocation11 + $0x20] sm:$0xff] %v4535
    %4628 = vst [vmem:[#allocation11 + $0x28] sm:$0xff] %v4619
    %4629 = vst [vmem:[#allocation11 + $0x30] sm:$0xff] %v4201
    %4630 = vst [vmem:[#allocation11 + $0x38] sm:$0xff] %v4285
    %4631 = vst [vmem:[#allocation11 + $0x40] sm:$0xff] %v4369
    %4632 = vst [vmem:[#allocation11 + $0x48] sm:$0xff] %v4453
    %4633 = vst [vmem:[#allocation11 + $0x50] sm:$0xff] %v4537
    %4634 = vst [vmem:[#allocation11 + $0x58] sm:$0xff] %v4621
    // Predicated region
    $region42: #{_contrastive_head_2d.1} parent=1 // pred_check
      _
    $region43: #{_contrastive_head_2d.1} parent=1 // pred_check_branch
      %4636 = sbr.rel (0) target = $region45
    $region44: #{_contrastive_head_2d.1} parent=1 // pred_region
      %4638 = vsyncadd [#allocation4], 0
      %s4639 = sshll.u32 [#allocation11], 4
      %s4640 = int_to_ptr.vmem [resolvable:$true] %s4639
      %s4641 = sshll.u32 %s5, 4
      %s4642 = int_to_ptr.hbm [resolvable:$true] %s4641
      %4647 = dma.vmem_to_hbm [thread:$0]  %s4640, 1536, %s4642, [#allocation4], 768, 768, 48
    $region45: #{_contrastive_head_2d.1} parent=1 // pred_fallthru
      _
    // Predicated region
    $region46: #{_contrastive_head_2d.1} parent=1 // pred_check
      _
    $region47: #{_contrastive_head_2d.1} parent=1 // pred_check_branch
      %4649 = sbr.rel (0) target = $region49
    $region48: #{_contrastive_head_2d.1} parent=1 // pred_region
      %4651 = dma.done [#allocation4], 1536
    $region49: #{_contrastive_head_2d.1} parent=1 // pred_fallthru
      _
    %4652 = vsyncpa [#allocation3], 1
    %4653 = vsyncpa [#allocation6], 1
    %4654 = vsyncpa [#allocation9], 1
    %4655 = vsyncpa [#allocation4], 1

</llo_original>
